<compile_context>
chip_gen: v7x
topology: tpu7x:2x2x1
jax: 0.10.0
libtpu: 0.0.40
codegen_flags: <defaults>
</compile_context>

<pallas_src>
import functools

import jax
import jax.numpy as jnp
from jax.experimental import pallas as pl
from jax.experimental.pallas import tpu as pltpu

LEAKY_SLOPE = 0.01   # torch.nn.LeakyReLU default
BN_EPS = 1e-5        # torch.nn.BatchNorm1d default (eval mode / running stats)


def _leaky(x):
    return jnp.where(x >= 0, x, LEAKY_SLOPE * x)


# -----------------------------------------------------------------------------
# Chip-generation heuristics (safe string checks; default to v6e/v7x settings).
# -----------------------------------------------------------------------------
def _device_kind():
    try:
        return jax.devices()[0].device_kind.lower()
    except Exception:
        return ""


def _is_pre_v6():
    kind = _device_kind()
    return any(tag in kind for tag in ("v2", "v3", "v4", "v5"))


def _default_tile_n():
    # v6e/v7x MXUs are 2x256^2 -> fill the M dim with 256 rows; v5e and older
    # (128x128 MXU, tighter scoped VMEM) stay at 128.
    return 128 if _is_pre_v6() else 256


def _epilogue_dtype():
    # v6e/v7x VPUs are bf16-native: run the wide bias+LeakyReLU epilogue packed
    # in bf16.  v5e and older have no bf16 VALU -> keep f32 there.
    return jnp.float32 if _is_pre_v6() else jnp.bfloat16


def _choose_tile_n(n, requested):
    # When the whole batch fits a single tile, split it so the "parallel" row
    # axis has >=2 grid steps (v7x has 2 TensorCores; with grid=(1,) one idles).
    if n > requested:
        return requested
    half = (-(-n // 2) + 7) // 8 * 8          # ceil(n/2) rounded up to sublanes
    return max(8, min(requested, half))


# -----------------------------------------------------------------------------
# Kernel: discriminator MLP (BN folded into the linears) + per-row BCE.
# -----------------------------------------------------------------------------
def _disc_bce_kernel(n_pos, tile_n,
                     x_ref, w1_ref, b1_ref, w2_ref, b2_ref, out_ref):
    """One row-tile of: LeakyReLU -> [BN0-folded] Linear(H) -> LeakyReLU ->
    [BN1-folded] Linear(1) -> BCEWithLogits.  Output packs [logits, bce]
    into a single (tile_n, 2) block."""
    i = pl.program_id(0)

    # First LeakyReLU directly on the bf16 input (no f32 round trip).
    h = _leaky(x_ref[...])                                         # (tile_n, Din) bf16
    # Big matmul on the MXU, f32 accumulation.
    h = jnp.dot(h, w1_ref[...], preferred_element_type=jnp.float32)
    # Wide epilogue (bias + LeakyReLU) in the chip's epilogue dtype
    # (bf16 on v6e/v7x, f32 on v5e) -- this phase dominates the VALU slots.
    h = _leaky(h.astype(b1_ref.dtype) + b1_ref[...])               # (tile_n, Hp)

    # Final Linear(1) as an N=1 MXU matmul (MXU has slack; the VPU/XLU do not).
    logits = jnp.dot(h.astype(jnp.bfloat16), w2_ref[...],
                     preferred_element_type=jnp.float32) + b2_ref[...]   # (tile_n, 1)

    # Analytic targets: 1 for the first n_pos global rows, 0 afterwards.
    row = i * tile_n + jax.lax.broadcasted_iota(jnp.int32, (tile_n, 1), 0)
    z = (row < n_pos).astype(jnp.float32)
    # BCEWithLogitsLoss, numerically stable: max(x,0) - x*z + log1p(exp(-|x|))
    bce = (jnp.maximum(logits, 0.0) - logits * z
           + jnp.log1p(jnp.exp(-jnp.abs(logits))))

    # Single packed output block -> one output DMA per grid step.
    out_ref[:, 0:1] = logits
    out_ref[:, 1:2] = bce


# -----------------------------------------------------------------------------
# Trace-time parameter folding (BatchNorm -> Linear) and lane padding.
# -----------------------------------------------------------------------------
def _fold_discriminator_params(params, ep_dtype):
    """Fold the two BatchNorm1d affine transforms (running stats / eval mode)
    into the adjacent Linears and pad the hidden dim to a multiple of 128.

    Returns (w1 bf16 (Din, Hp), b1 ep_dtype (1, Hp), w2 bf16 (Hp, 1), b2 f32 (1,1)).
    """
    s0 = params["bn0_g"] * jax.lax.rsqrt(params["bn0_v"] + BN_EPS)   # (1, Din)
    t0 = params["bn0_b"] - params["bn0_m"] * s0
    w1 = s0.reshape(-1, 1) * params["w1"]                            # (Din, H)
    b1 = params["b1"] + t0 @ params["w1"]                            # (1, H)

    s1 = params["bn1_g"] * jax.lax.rsqrt(params["bn1_v"] + BN_EPS)   # (1, H)
    t1 = params["bn1_b"] - params["bn1_m"] * s1
    w2 = s1.reshape(-1, 1) * params["w2"]                            # (H, 1) column
    b2 = params["b2"] + t1 @ params["w2"]                            # (1, 1)

    h = w1.shape[1]
    hp = ((h + 127) // 128) * 128          # 3000 -> 3072: explicit lane padding
    if hp != h:
        w1 = jnp.pad(w1, ((0, 0), (0, hp - h)))
        b1 = jnp.pad(b1, ((0, 0), (0, hp - h)))
        w2 = jnp.pad(w2, ((0, hp - h), (0, 0)))
    return (w1.astype(jnp.bfloat16), b1.astype(ep_dtype),
            w2.astype(jnp.bfloat16), b2.astype(jnp.float32))


def discriminator_bce(samples, n_pos, params, *, tile_n=None):
    """samples: (N, 1, Din); rows [0, n_pos) have target 1, the rest target 0.

    Returns (logits (N,1,1), per-row BCE (N,1,1)).
    """
    n, t_dim, d_in = samples.shape
    assert t_dim == 1
    if tile_n is None:
        tile_n = _default_tile_n()
    tile_n = _choose_tile_n(n, tile_n)

    x = samples.reshape(n, d_in)
    if x.dtype != jnp.bfloat16:
        x = x.astype(jnp.bfloat16)
    num_tiles = pl.cdiv(n, tile_n)
    n_pad = num_tiles * tile_n
    if n_pad != n:
        x = jnp.pad(x, ((0, n_pad - n), (0, 0)))

    w1, b1, w2, b2 = _fold_discriminator_params(params, _epilogue_dtype())
    hp = w1.shape[1]

    # Grid-invariant operands: fetched once and single-buffered so the big W1
    # block does not get a second pipeline buffer (matters for v5e's 16 MiB
    # default scoped VMEM and v7x's 64 MiB per-TC VMEM).
    def const(shape):
        return pl.BlockSpec(shape, lambda i: (0, 0),
                            pipeline_mode=pl.Buffered(1))

    in_specs = [
        pl.BlockSpec((tile_n, d_in), lambda i: (i, 0)),   # x row tile (bf16)
        const((d_in, hp)),                                # folded W1 (bf16)
        const((1, hp)),                                   # folded b1 (epilogue dtype)
        const((hp, 1)),                                   # folded w2 column (bf16)
        const((1, 1)),                                    # folded b2 (f32)
    ]
    out_specs = pl.BlockSpec((tile_n, 2), lambda i: (i, 0))
    out_shape = jax.ShapeDtypeStruct((n_pad, 2), jnp.float32)

    packed = pl.pallas_call(
        functools.partial(_disc_bce_kernel, int(n_pos), int(tile_n)),
        out_shape=out_shape,
        grid_spec=pltpu.PrefetchScalarGridSpec(
            num_scalar_prefetch=0,
            grid=(num_tiles,),
            in_specs=in_specs,
            out_specs=out_specs,
        ),
        # Per-tile outputs are independent -> row axis shards across the two
        # TensorCores on v7x; neutral on single-TC v5e/v6e.
        compiler_params=pltpu.CompilerParams(
            dimension_semantics=("parallel",),
            vmem_limit_bytes=48 * 1024 * 1024,
        ),
    )(x, w1, b1, w2, b2)

    logits = packed[:n, 0:1].reshape(n, 1, 1)
    bce = packed[:n, 1:2].reshape(n, 1, 1)
    return logits, bce


def contrastive_forward(emb_clean, emb_aug, params, reduce=True, tile_n=None):
    """Triplet branch of ContrastiveLearner.forward, given encoder outputs.

    emb_clean / emb_aug: (3*B, 1, D) = encode(signal_clean) / encode(signal_aug).
    """
    # TODO(synk): pretrained feature encoders, _match() cropping and the audio
    # augmentation pipeline have no Pallas equivalent; embeddings are inputs here.
    # Cast to bf16 *before* building the pair views so the concatenation writes
    # bf16 directly (no separate cast pass over the 12x-duplicated buffer).
    emb_clean = emb_clean.astype(jnp.bfloat16)
    emb_aug = emb_aug.astype(jnp.bfloat16)

    b3 = emb_clean.shape[0]
    b = b3 // 3
    eca, ecp, ecn = emb_clean[:b], emb_clean[b:2 * b], emb_clean[2 * b:]
    eaa, eap, ean = emb_aug[:b], emb_aug[b:2 * b], emb_aug[2 * b:]
    cat = lambda u, v: jnp.concatenate([u, v], axis=2)

    # TODO(synk): the 12 pair views are still materialized in HBM with
    # jnp.concatenate; for large D an in-kernel gather (scalar-prefetched index
    # tables over emb_clean/emb_aug) would remove the ~6x duplication.
    positive = jnp.concatenate(
        [cat(eca, ecp), cat(eaa, eap), cat(eca, eap),
         cat(ecp, eca), cat(eap, eaa), cat(ecp, eaa)], axis=0)
    negative = jnp.concatenate(
        [cat(eca, ecn), cat(eaa, ean), cat(eca, ean),
         cat(ecn, eca), cat(ean, eaa), cat(ecn, eaa)], axis=0)
    samples = jnp.concatenate([positive, negative], axis=0)          # (12B, 1, 2D)
    n_pos = positive.shape[0]                                        # first half -> target 1

    logits, bce = discriminator_bce(samples, n_pos, params, tile_n=tile_n)
    if reduce:
        return jnp.mean(bce), logits          # BCEWithLogitsLoss(reduction='mean')
    return bce, logits                        # reduction='none'


def init_discriminator_params(key, d_in, n_hidden=3000):
    ks = jax.random.split(key, 12)
    scale1 = 1.0 / jnp.sqrt(float(d_in))
    scale2 = 1.0 / jnp.sqrt(float(n_hidden))
    return {
        "bn0_g": 1.0 + 0.1 * jax.random.normal(ks[0], (1, d_in), jnp.float32),
        "bn0_b": 0.1 * jax.random.normal(ks[1], (1, d_in), jnp.float32),
        "bn0_m": 0.05 * jax.random.normal(ks[2], (1, d_in), jnp.float32),
        "bn0_v": 1.0 + 0.2 * jax.random.uniform(ks[3], (1, d_in), jnp.float32),
        "w1": scale1 * jax.random.normal(ks[4], (d_in, n_hidden), jnp.float32),
        "b1": 0.01 * jax.random.normal(ks[5], (1, n_hidden), jnp.float32),
        "bn1_g": 1.0 + 0.1 * jax.random.normal(ks[6], (1, n_hidden), jnp.float32),
        "bn1_b": 0.1 * jax.random.normal(ks[7], (1, n_hidden), jnp.float32),
        "bn1_m": 0.05 * jax.random.normal(ks[8], (1, n_hidden), jnp.float32),
        "bn1_v": 1.0 + 0.2 * jax.random.uniform(ks[9], (1, n_hidden), jnp.float32),
        "w2": scale2 * jax.random.normal(ks[10], (n_hidden, 1), jnp.float32),
        "b2": 0.01 * jax.random.normal(ks[11], (1, 1), jnp.float32),
    }


def _reference_disc_bce(samples, targets, p):
    """Pure-JAX f32 reference (same math as the PyTorch Classifier + BCEWithLogits,
    eval-mode BatchNorm / identity dropout)."""
    x = samples.reshape(samples.shape[0], -1)
    t = targets.reshape(targets.shape[0], 1)
    h = _leaky(x)
    h = (h - p["bn0_m"]) / jnp.sqrt(p["bn0_v"] + BN_EPS) * p["bn0_g"] + p["bn0_b"]
    h = h @ p["w1"] + p["b1"]
    h = _leaky(h)
    h = (h - p["bn1_m"]) / jnp.sqrt(p["bn1_v"] + BN_EPS) * p["bn1_g"] + p["bn1_b"]
    logits = h @ p["w2"] + p["b2"]
    per = jnp.maximum(logits, 0.0) - logits * t + jnp.log1p(jnp.exp(-jnp.abs(logits)))
    return logits, jnp.mean(per)


if __name__ == "__main__":
    key = jax.random.PRNGKey(0)
    B, D = 2, 64                         # batch per triplet member, embedding dim
    k_clean, k_aug, k_par = jax.random.split(key, 3)

    # Stand-ins for encode(signal_clean) / encode(augment(signal_clean)):
    emb_clean = jax.random.normal(k_clean, (3 * B, 1, D), jnp.float32)
    emb_aug = jax.random.normal(k_aug, (3 * B, 1, D), jnp.float32)

    params = init_discriminator_params(k_par, 2 * D, n_hidden=3000)

    loss, logits = contrastive_forward(emb_clean, emb_aug, params, reduce=True)
    loss = jax.block_until_ready(loss)
    logits = jax.block_until_ready(logits)

    # Correctness check against a pure-f32 JAX reference of the same forward.
    b = emb_clean.shape[0] // 3
    eca, ecp, ecn = emb_clean[:b], emb_clean[b:2 * b], emb_clean[2 * b:]
    eaa, eap, ean = emb_aug[:b], emb_aug[b:2 * b], emb_aug[2 * b:]
    cat = lambda u, v: jnp.concatenate([u, v], axis=2)
    pos = jnp.concatenate([cat(eca, ecp), cat(eaa, eap), cat(eca, eap),
                           cat(ecp, eca), cat(eap, eaa), cat(ecp, eaa)], axis=0)
    neg = jnp.concatenate([cat(eca, ecn), cat(eaa, ean), cat(eca, ean),
                           cat(ecn, eca), cat(ean, eaa), cat(ecn, eaa)], axis=0)
    samples = jnp.concatenate([pos, neg], axis=0)
    targets = jnp.concatenate([jnp.ones((pos.shape[0],)),
                               jnp.zeros((neg.shape[0],))])[:, None, None]
    ref_logits, ref_loss = _reference_disc_bce(samples, targets, params)

    # Kernel uses bf16 MXU operands (and a bf16 epilogue on v6e/v7x) ->
    # looser-than-f32 tolerance.
    assert jnp.allclose(logits.reshape(-1), ref_logits.reshape(-1), rtol=5e-2, atol=5e-2)
    assert jnp.allclose(loss, ref_loss, rtol=5e-2, atol=5e-2)
    assert bool(jnp.isfinite(loss))
    print("KERNEL_OK")
</pallas_src>

<mosaic_0001>
module attributes {stable_mosaic.version = 11 : i64} {
  func.func @_disc_bce_kernel(%arg0: i32, %arg1: memref<16x128xbf16, #tpu.memory_space<vmem>>, %arg2: memref<128x3072xbf16, #tpu.memory_space<vmem>>, %arg3: memref<1x3072xbf16, #tpu.memory_space<vmem>>, %arg4: memref<3072x1xbf16, #tpu.memory_space<vmem>>, %arg5: memref<1x1xf32, #tpu.memory_space<vmem>>, %arg6: memref<16x2xf32, #tpu.memory_space<vmem>>) attributes {dimension_semantics = [#tpu.dimension_semantics<parallel>], iteration_bounds = array<i64: 2>, scalar_prefetch = 0 : i64, scratch_operands = 0 : i64, tpu.core_type = #tpu.core_type<tc>, window_params = [{transform_indices = @transform_0, window_bounds = array<i64: 16, 128>}, {pipeline_mode = #tpu.pipeline_mode<synchronous>, transform_indices = @transform_1, window_bounds = array<i64: 128, 3072>}, {pipeline_mode = #tpu.pipeline_mode<synchronous>, transform_indices = @transform_2, window_bounds = array<i64: 1, 3072>}, {pipeline_mode = #tpu.pipeline_mode<synchronous>, transform_indices = @transform_3, window_bounds = array<i64: 3072, 1>}, {pipeline_mode = #tpu.pipeline_mode<synchronous>, transform_indices = @transform_4, window_bounds = array<i64: 1, 1>}, {transform_indices = @transform_5, window_bounds = array<i64: 16, 2>}]} {
    %c0 = arith.constant 0 : index
    %c0_0 = arith.constant 0 : index
    %0 = vector.load %arg1[%c0, %c0_0] : memref<16x128xbf16, #tpu.memory_space<vmem>>, vector<16x128xbf16>
    %cst = arith.constant 0.000000e+00 : bf16
    %1 = vector.broadcast %cst : bf16 to vector<16x128xbf16>
    %2 = arith.cmpf oge, %0, %1 : vector<16x128xbf16>
    %cst_1 = arith.constant 1.000980e-02 : bf16
    %3 = vector.broadcast %cst_1 : bf16 to vector<16x128xbf16>
    %4 = arith.mulf %3, %0 : vector<16x128xbf16>
    %5 = arith.select %2, %0, %4 : vector<16x128xi1>, vector<16x128xbf16>
    %c0_2 = arith.constant 0 : index
    %c0_3 = arith.constant 0 : index
    %6 = vector.load %arg2[%c0_2, %c0_3] : memref<128x3072xbf16, #tpu.memory_space<vmem>>, vector<128x3072xbf16>
    %cst_4 = arith.constant dense<0.000000e+00> : vector<16x3072xf32>
    %7 = tpu.matmul %5, %6, %cst_4 {dimension_numbers = #tpu.dot_dimension_numbers<[1], [0], [0], [1], [0, 0, 1, 1], [], []>} : vector<16x128xbf16>, vector<128x3072xbf16>, vector<16x3072xf32> -> vector<16x3072xf32>
    %8 = arith.truncf %7 : vector<16x3072xf32> to vector<16x3072xbf16>
    %c0_5 = arith.constant 0 : index
    %c0_6 = arith.constant 0 : index
    %9 = vector.load %arg3[%c0_5, %c0_6] : memref<1x3072xbf16, #tpu.memory_space<vmem>>, vector<1x3072xbf16>
    %10 = vector.broadcast %9 : vector<1x3072xbf16> to vector<16x3072xbf16>
    %11 = arith.addf %8, %10 : vector<16x3072xbf16>
    %cst_7 = arith.constant 0.000000e+00 : bf16
    %12 = vector.broadcast %cst_7 : bf16 to vector<16x3072xbf16>
    %13 = arith.cmpf oge, %11, %12 : vector<16x3072xbf16>
    %cst_8 = arith.constant 1.000980e-02 : bf16
    %14 = vector.broadcast %cst_8 : bf16 to vector<16x3072xbf16>
    %15 = arith.mulf %14, %11 : vector<16x3072xbf16>
    %16 = arith.select %13, %11, %15 : vector<16x3072xi1>, vector<16x3072xbf16>
    %c0_9 = arith.constant 0 : index
    %c0_10 = arith.constant 0 : index
    %17 = vector.load %arg4[%c0_9, %c0_10] : memref<3072x1xbf16, #tpu.memory_space<vmem>>, vector<3072x1xbf16>
    %cst_11 = arith.constant dense<0.000000e+00> : vector<16x1xf32>
    %18 = tpu.matmul %16, %17, %cst_11 {dimension_numbers = #tpu.dot_dimension_numbers<[1], [0], [0], [1], [0, 0, 1, 1], [], []>} : vector<16x3072xbf16>, vector<3072x1xbf16>, vector<16x1xf32> -> vector<16x1xf32>
    %c0_12 = arith.constant 0 : index
    %c0_13 = arith.constant 0 : index
    %19 = vector.load %arg5[%c0_12, %c0_13] : memref<1x1xf32, #tpu.memory_space<vmem>>, vector<1x1xf32>
    %20 = vector.broadcast %19 : vector<1x1xf32> to vector<16x1xf32>
    %21 = arith.addf %18, %20 : vector<16x1xf32>
    %c16_i32 = arith.constant 16 : i32
    %22 = arith.muli %arg0, %c16_i32 : i32
    %23 = tpu.iota {dimensions = array<i32: 0>} : vector<16x1xi32>
    %24 = vector.broadcast %22 : i32 to vector<16x1xi32>
    %25 = arith.addi %24, %23 : vector<16x1xi32>
    %c12_i32 = arith.constant 12 : i32
    %26 = vector.broadcast %c12_i32 : i32 to vector<16x1xi32>
    %27 = arith.cmpi slt, %25, %26 : vector<16x1xi32>
    %28 = arith.extui %27 : vector<16x1xi1> to vector<16x1xi32>
    %29 = arith.sitofp %28 : vector<16x1xi32> to vector<16x1xf32>
    %cst_14 = arith.constant 0.000000e+00 : f32
    %30 = vector.broadcast %cst_14 : f32 to vector<16x1xf32>
    %31 = arith.maximumf %21, %30 : vector<16x1xf32>
    %32 = arith.mulf %21, %29 : vector<16x1xf32>
    %33 = arith.subf %31, %32 : vector<16x1xf32>
    %34 = math.absf %21 : vector<16x1xf32>
    %cst_15 = arith.constant 0.000000e+00 : f32
    %35 = vector.broadcast %cst_15 : f32 to vector<16x1xf32>
    %36 = arith.subf %35, %34 : vector<16x1xf32>
    %37 = math.exp %36 : vector<16x1xf32>
    %38 = math.log1p %37 : vector<16x1xf32>
    %39 = arith.addf %33, %38 : vector<16x1xf32>
    %c0_16 = arith.constant 0 : index
    %c0_17 = arith.constant 0 : index
    %40 = vector.load %arg6[%c0_16, %c0_17] : memref<16x2xf32, #tpu.memory_space<vmem>>, vector<16x1xf32>
    tpu.vector_store %arg6[%c0_16, %c0_17], %21 {strides = array<i32>} : memref<16x2xf32, #tpu.memory_space<vmem>>, vector<16x1xf32>,
    %c0_18 = arith.constant 0 : index
    %c1 = arith.constant 1 : index
    %41 = vector.load %arg6[%c0_18, %c1] : memref<16x2xf32, #tpu.memory_space<vmem>>, vector<16x1xf32>
    tpu.vector_store %arg6[%c0_18, %c1], %39 {strides = array<i32>} : memref<16x2xf32, #tpu.memory_space<vmem>>, vector<16x1xf32>,
    return
  }
  func.func @transform_0(%arg0: i32) -> (i32, i32) {
    %c0_i32 = arith.constant 0 : i32
    %c0_i32_0 = arith.constant 0 : i32
    return %arg0, %c0_i32 : i32, i32
  }
  func.func @transform_1(%arg0: i32) -> (i32, i32) {
    %c0_i32 = arith.constant 0 : i32
    %c0_i32_0 = arith.constant 0 : i32
    %c0_i32_1 = arith.constant 0 : i32
    return %c0_i32, %c0_i32_0 : i32, i32
  }
  func.func @transform_2(%arg0: i32) -> (i32, i32) {
    %c0_i32 = arith.constant 0 : i32
    %c0_i32_0 = arith.constant 0 : i32
    %c0_i32_1 = arith.constant 0 : i32
    return %c0_i32, %c0_i32_0 : i32, i32
  }
  func.func @transform_3(%arg0: i32) -> (i32, i32) {
    %c0_i32 = arith.constant 0 : i32
    %c0_i32_0 = arith.constant 0 : i32
    %c0_i32_1 = arith.constant 0 : i32
    return %c0_i32, %c0_i32_0 : i32, i32
  }
  func.func @transform_4(%arg0: i32) -> (i32, i32) {
    %c0_i32 = arith.constant 0 : i32
    %c0_i32_0 = arith.constant 0 : i32
    %c0_i32_1 = arith.constant 0 : i32
    return %c0_i32, %c0_i32_0 : i32, i32
  }
  func.func @transform_5(%arg0: i32) -> (i32, i32) {
    %c0_i32 = arith.constant 0 : i32
    %c0_i32_0 = arith.constant 0 : i32
    return %arg0, %c0_i32 : i32, i32
  }
}

</mosaic_0001>

<llo_original>
// kernel: tpu_custom_call.1
$region0: #{tpu_custom_call.1}
  #allocation0 [shape = 'u32[]', space=smem, size = 0x4, offset = 0x4, fixed_abs, tag = 'smem constant byte address 0x4 - core index']
  #allocation1 [shape = 'u32[144,128]{1,0:T(1,128)}', space=vmem, size = 0x12000, scoped, tag = 'internal scratch']
  #allocation2 [shape = 'f32[1,1]{1,0:T(1,128)S(1)}', space=vmem, size = 0x200, scoped, tag = 'scoped memory for tpu_custom_call.1']
  %s0 = inlined_call_operand.hbm [shape: bf16[32,128], index: 0, kind: input, shape index: {}]
  %s1 = inlined_call_operand.vmem [shape: bf16[128,3072], index: 1, kind: input, shape index: {}]
  %s2 = inlined_call_operand.vmem [shape: bf16[1,3072], index: 2, kind: input, shape index: {}]
  %s3 = inlined_call_operand.vmem [shape: bf16[3072,1], index: 3, kind: input, shape index: {}]
  %s4 = inlined_call_operand.<no memory space> [shape: f32[1,1], index: 4, kind: input, shape index: {}]
  %s5 = inlined_call_operand.vmem [shape: f32[32,2], index: 5, kind: output, shape index: {}]
  %s6 = sld [smem:[#allocation0]]
  $region57: #{tpu_custom_call.1} parent=0
    _
  %s8 = ssub.s32 1, %s6
  %s9 = scalar_select 0, %s8, %s6
  %v10 = vstv %s4
  %11 = vst [vmem:[#allocation2] sm:$0x1] %v10
  $region1: #{tpu_custom_call.1} parent=0
    #allocation3 [shape = 'u8[8192]{0}', space=vmem, size = 0x2000, scoped, tag = 'input window, operand 0']
    #allocation4 [shape = 's32[2]{0}', space=sflag, size = 0x8, scoped, tag = 'scoped memory for tpu_custom_call.1']
    %12 = vsyncpa [#allocation4], 0
    %s13 = scalar_lea.sflag [#allocation4], 1
    %14 = vsyncpa %s13, 0
    loop: start=0, step=1, limit=4
    $region2: #{tpu_custom_call.1} parent=1 // loop_pre_header
      _
    $region3: #{tpu_custom_call.1} parent=1 // loop_header
      %s16 = sphi 0, %s20
      %p17 = scmp.ge.s32.totalorder %s16, 4
      %s26 = sphi 0, %s28
      %s29 = sphi 0, %s26
      %s30 = sphi 0, %s29
      %s46 = sphi 0, %s30
      %s50 = sphi 0, %s50
      %s52 = sphi 0, %s50
      %s53 = sphi 0, %s52
      %s67 = sphi 0, %s53
      %s71 = sphi 0, %s71
      %s73 = sphi 0, %s71
      %s74 = sphi 0, %s73
      %s88 = sphi 0, %s74
      %s92 = sphi 0, %s92
      %s94 = sphi 0, %s92
      %s95 = sphi 0, %s94
      %s109 = sphi 0, %s95
      %s113 = sphi 0, %s113
      %s115 = sphi 0, %s113
      %s116 = sphi 0, %s115
      %s130 = sphi 0, %s116
      %s136 = sphi 0, %s138
      %s139 = sphi 0, %s136
      %s140 = sphi 0, %s139
      %s156 = sphi 0, %s140
    $region4: #{tpu_custom_call.1} parent=1 // loop_header_branch
      %19 = sbr.rel (%p17) target = $region8
    $region5: #{tpu_custom_call.1} parent=1 // loop_body
      %s21 = ssub.s32 %s16, 1
      %s22 = ssub.s32 %s16, 2
      %s23 = sadd.s32 %s16, 1
      %s24 = ssub.s32 %s16, %s23
      %p25 = scmp.eq.s32.totalorder %s24, 0
      %s27 = sadd.s32 %s26, 1
      %s28 = scalar_select %p25, %s26, %s27
      %p31 = pneg %p25
      %p32 = scmp.eq.s32.totalorder %s16, 1
      %p33 = por %p31, %p32
      %p34 = scmp.ne.s32.totalorder %s26, %s29
      %p35 = scmp.eq.s32.totalorder %s16, 0
      %p36 = por %p34, %p35
      %p37 = scmp.ne.s32.totalorder %s26, %s29
      %p38 = scmp.eq.s32.totalorder %s21, 1
      %p39 = por %p37, %p38
      %p40 = scmp.ne.s32.totalorder %s29, %s30
      %p41 = scmp.eq.s32.totalorder %s21, 0
      %p42 = por %p40, %p41
      %p43 = scmp.ne.s32.totalorder %s29, %s30
      %p44 = scmp.eq.s32.totalorder %s22, 1
      %p45 = por %p43, %p44
      %p47 = scmp.ne.s32.totalorder %s30, %s46
      %p48 = scmp.eq.s32.totalorder %s22, 0
      %p49 = por %p47, %p48
      %s51 = sadd.s32 %s50, 1
      %p54 = scmp.eq.s32.totalorder %s16, 1
      %p55 = scmp.ne.s32.totalorder %s50, %s52
      %p56 = scmp.eq.s32.totalorder %s16, 0
      %p57 = por %p55, %p56
      %p58 = scmp.ne.s32.totalorder %s50, %s52
      %p59 = scmp.eq.s32.totalorder %s21, 1
      %p60 = por %p58, %p59
      %p61 = scmp.ne.s32.totalorder %s52, %s53
      %p62 = scmp.eq.s32.totalorder %s21, 0
      %p63 = por %p61, %p62
      %p64 = scmp.ne.s32.totalorder %s52, %s53
      %p65 = scmp.eq.s32.totalorder %s22, 1
      %p66 = por %p64, %p65
      %p68 = scmp.ne.s32.totalorder %s53, %s67
      %p69 = scmp.eq.s32.totalorder %s22, 0
      %p70 = por %p68, %p69
      %s72 = sadd.s32 %s71, 1
      %p75 = scmp.eq.s32.totalorder %s16, 1
      %p76 = scmp.ne.s32.totalorder %s71, %s73
      %p77 = scmp.eq.s32.totalorder %s16, 0
      %p78 = por %p76, %p77
      %p79 = scmp.ne.s32.totalorder %s71, %s73
      %p80 = scmp.eq.s32.totalorder %s21, 1
      %p81 = por %p79, %p80
      %p82 = scmp.ne.s32.totalorder %s73, %s74
      %p83 = scmp.eq.s32.totalorder %s21, 0
      %p84 = por %p82, %p83
      %p85 = scmp.ne.s32.totalorder %s73, %s74
      %p86 = scmp.eq.s32.totalorder %s22, 1
      %p87 = por %p85, %p86
      %p89 = scmp.ne.s32.totalorder %s74, %s88
      %p90 = scmp.eq.s32.totalorder %s22, 0
      %p91 = por %p89, %p90
      %s93 = sadd.s32 %s92, 1
      %p96 = scmp.eq.s32.totalorder %s16, 1
      %p97 = scmp.ne.s32.totalorder %s92, %s94
      %p98 = scmp.eq.s32.totalorder %s16, 0
      %p99 = por %p97, %p98
      %p100 = scmp.ne.s32.totalorder %s92, %s94
      %p101 = scmp.eq.s32.totalorder %s21, 1
      %p102 = por %p100, %p101
      %p103 = scmp.ne.s32.totalorder %s94, %s95
      %p104 = scmp.eq.s32.totalorder %s21, 0
      %p105 = por %p103, %p104
      %p106 = scmp.ne.s32.totalorder %s94, %s95
      %p107 = scmp.eq.s32.totalorder %s22, 1
      %p108 = por %p106, %p107
      %p110 = scmp.ne.s32.totalorder %s95, %s109
      %p111 = scmp.eq.s32.totalorder %s22, 0
      %p112 = por %p110, %p111
      %s114 = sadd.s32 %s113, 1
      %p117 = scmp.eq.s32.totalorder %s16, 1
      %p118 = scmp.ne.s32.totalorder %s113, %s115
      %p119 = scmp.eq.s32.totalorder %s16, 0
      %p120 = por %p118, %p119
      %p121 = scmp.ne.s32.totalorder %s113, %s115
      %p122 = scmp.eq.s32.totalorder %s21, 1
      %p123 = por %p121, %p122
      %p124 = scmp.ne.s32.totalorder %s115, %s116
      %p125 = scmp.eq.s32.totalorder %s21, 0
      %p126 = por %p124, %p125
      %p127 = scmp.ne.s32.totalorder %s115, %s116
      %p128 = scmp.eq.s32.totalorder %s22, 1
      %p129 = por %p127, %p128
      %p131 = scmp.ne.s32.totalorder %s116, %s130
      %p132 = scmp.eq.s32.totalorder %s22, 0
      %p133 = por %p131, %p132
      %s134 = ssub.s32 %s16, %s23
      %p135 = scmp.eq.s32.totalorder %s134, 0
      %s137 = sadd.s32 %s136, 1
      %s138 = scalar_select %p135, %s136, %s137
      %p141 = pneg %p135
      %p142 = scmp.eq.s32.totalorder %s16, 1
      %p143 = por %p141, %p142
      %p144 = scmp.ne.s32.totalorder %s136, %s139
      %p145 = scmp.eq.s32.totalorder %s16, 0
      %p146 = por %p144, %p145
      %p147 = scmp.ne.s32.totalorder %s136, %s139
      %p148 = scmp.eq.s32.totalorder %s21, 1
      %p149 = por %p147, %p148
      %p150 = scmp.ne.s32.totalorder %s139, %s140
      %p151 = scmp.eq.s32.totalorder %s21, 0
      %p152 = por %p150, %p151
      %p153 = scmp.ne.s32.totalorder %s139, %s140
      %p154 = scmp.eq.s32.totalorder %s22, 1
      %p155 = por %p153, %p154
      %p157 = scmp.ne.s32.totalorder %s140, %s156
      %p158 = scmp.eq.s32.totalorder %s22, 0
      %p159 = por %p157, %p158
      %p160 = scmp.le.s32.totalorder 1, %s16
      %p161 = scmp.lt.s32.totalorder %s16, 3
      %p162 = pnand %p160, %p161
      %p163 = pneg %p162
      // Predicated region
      $region9: #{tpu_custom_call.1} parent=5 // pred_check
        _
      $region10: #{tpu_custom_call.1} parent=5 // pred_check_branch
        %165 = sbr.rel (%p162) target = $region12
      $region11: #{tpu_custom_call.1} parent=5 // pred_region
        %s166 = ssub.s32 %s16, 1
        // Predicated region
        $region13: #{tpu_custom_call.1} parent=11 // pred_check
          %p167 = pneg %p63
        $region14: #{tpu_custom_call.1} parent=11 // pred_check_branch
          %169 = sbr.rel (%p167) target = $region16
        $region15: #{tpu_custom_call.1} parent=11 // pred_region
          _
        $region16: #{tpu_custom_call.1} parent=11 // pred_fallthru
          _
        // Predicated region
        $region17: #{tpu_custom_call.1} parent=11 // pred_check
          %p170 = pneg %p84
        $region18: #{tpu_custom_call.1} parent=11 // pred_check_branch
          %172 = sbr.rel (%p170) target = $region20
        $region19: #{tpu_custom_call.1} parent=11 // pred_region
          _
        $region20: #{tpu_custom_call.1} parent=11 // pred_fallthru
          _
        // Predicated region
        $region21: #{tpu_custom_call.1} parent=11 // pred_check
          %p173 = pneg %p105
        $region22: #{tpu_custom_call.1} parent=11 // pred_check_branch
          %175 = sbr.rel (%p173) target = $region24
        $region23: #{tpu_custom_call.1} parent=11 // pred_region
          _
        $region24: #{tpu_custom_call.1} parent=11 // pred_fallthru
          _
        // Predicated region
        $region25: #{tpu_custom_call.1} parent=11 // pred_check
          %p176 = pneg %p126
        $region26: #{tpu_custom_call.1} parent=11 // pred_check_branch
          %178 = sbr.rel (%p176) target = $region28
        $region27: #{tpu_custom_call.1} parent=11 // pred_region
          _
        $region28: #{tpu_custom_call.1} parent=11 // pred_fallthru
          _
      $region12: #{tpu_custom_call.1} parent=5 // pred_fallthru
        _
      %p179 = scmp.lt.s32.totalorder %s16, 2
      // Predicated region
      $region29: #{tpu_custom_call.1} parent=5 // pred_check
        %p180 = pneg %p179
      $region30: #{tpu_custom_call.1} parent=5 // pred_check_branch
        %182 = sbr.rel (%p180) target = $region32
      $region31: #{tpu_custom_call.1} parent=5 // pred_region
        // Predicated region
        $region33: #{tpu_custom_call.1} parent=31 // pred_check
          %p183 = pneg %p36
        $region34: #{tpu_custom_call.1} parent=31 // pred_check_branch
          %185 = sbr.rel (%p183) target = $region36
        $region35: #{tpu_custom_call.1} parent=31 // pred_region
          %s186 = sand.u32 %s26, 1
          %s187 = scalar_lea.sflag [#allocation4], %s186
          %s188 = sand.u32 %s26, 1
          %s189 = smul.addr %s188, 8
          %s190 = scalar_lea.vmem [#allocation3], %s189
          %s191 = smul.u32 2, %s16
          %s193 = ssub.s32 128, 128
          %194 = vsyncadd %s187, %s193
          %s195 = smul.addr %s191, 64
          %s196 = scalar_lea.hbm %s0, %s195
          %s197 = sshll.u32 %s190, 4
          %s198 = int_to_ptr.vmem [resolvable:$true] %s197
          %203 = dma.hbm_to_vmem [thread:$0]  %s196, 128, %s198, %s187, 64, 64, 4
        $region36: #{tpu_custom_call.1} parent=31 // pred_fallthru
          _
      $region32: #{tpu_custom_call.1} parent=5 // pred_fallthru
        _
      %p204 = scmp.le.s32.totalorder 1, %s16
      %p205 = scmp.lt.s32.totalorder %s16, 3
      %p206 = pnand %p204, %p205
      %p207 = pneg %p206
      // Predicated region
      $region37: #{tpu_custom_call.1} parent=5 // pred_check
        _
      $region38: #{tpu_custom_call.1} parent=5 // pred_check_branch
        %209 = sbr.rel (%p206) target = $region40
      $region39: #{tpu_custom_call.1} parent=5 // pred_region
        %s210 = ssub.s32 %s16, 1
        %s211 = sand.u32 %s29, 1
        %s212 = scalar_lea.sflag [#allocation4], %s211
        %s213 = sand.u32 %s29, 1
        %s214 = smul.addr %s213, 8
        %s215 = scalar_lea.vmem [#allocation3], %s214
        // Predicated region
        $region41: #{tpu_custom_call.1} parent=39 // pred_check
          %p216 = pneg %p42
        $region42: #{tpu_custom_call.1} parent=39 // pred_check_branch
          %218 = sbr.rel (%p216) target = $region44
        $region43: #{tpu_custom_call.1} parent=39 // pred_region
          %219 = dma.done %s212, 128
        $region44: #{tpu_custom_call.1} parent=39 // pred_fallthru
          _
        %s220 = sand.u32 %s29, 1
        %s221 = scalar_lea.sflag [#allocation4], %s220
        %s222 = sand.u32 %s29, 1
        %s223 = smul.addr %s222, 8
        %s224 = scalar_lea.vmem [#allocation3], %s223
        %p225 = pneg %p42
        %p226 = pneg %p39
        %p227 = pneg %p63
        %p228 = pneg %p60
        %p229 = pneg %p84
        %p230 = pneg %p81
        %p231 = pneg %p105
        %p232 = pneg %p102
        %p233 = pneg %p126
        %p234 = pneg %p123
        %p235 = pneg %p152
        %p236 = pneg %p149
        %s237 = smul.u32 2, %s21
        %p238 = scmp.lt.s32.totalorder %s237, 3
        %s239 = scalar_select %p238, %s237, 3
        %s240 = smul.addr %s239, 8
        %s241 = scalar_lea.vmem %s5, %s240
        %s242 = smul.u32 2, %s21
        %s243 = smul.u32 2, %s21
        %p244 = scmp.lt.s32.totalorder %s243, 3
        %s245 = scalar_select %p244, %s243, 3
        %s246 = smul.addr %s245, 8
        %s247 = scalar_lea.vmem %s5, %s246
        %s248 = smul.u32 2, %s21
        %v251 = vld [vmem:[%s215] sm:$0xf]
        %v252 = vld [vmem:[%s215 + $0x4] sm:$0xf]
        %vm253 = vcmp.ge.bf16.partialorder %v251, 0
        %vm254 = vcmp.ge.bf16.partialorder %v252, 0
        %v255 = vmul.bf16 %v251, 1009007652
        %v256 = vmul.bf16 %v252, 1009007652
        %v257 = vsel %vm253, %v251, %v255
        %v258 = vsel %vm254, %v252, %v256
        %v259 = vld [vmem:[%s1] sm:$0xff]
        %v260 = vld [vmem:[%s1 + $0x8] sm:$0xff]
        %v261 = vld [vmem:[%s1 + $0x10] sm:$0xff]
        %v262 = vld [vmem:[%s1 + $0x18] sm:$0xff]
        %v263 = vld [vmem:[%s1 + $0x20] sm:$0xff]
        %v264 = vld [vmem:[%s1 + $0x28] sm:$0xff]
        %v265 = vld [vmem:[%s1 + $0x30] sm:$0xff]
        %v266 = vld [vmem:[%s1 + $0x38] sm:$0xff]
        %v267 = vld [vmem:[%s1 + $0x40] sm:$0xff]
        %v268 = vld [vmem:[%s1 + $0x48] sm:$0xff]
        %v269 = vld [vmem:[%s1 + $0x50] sm:$0xff]
        %v270 = vld [vmem:[%s1 + $0x58] sm:$0xff]
        %v271 = vld [vmem:[%s1 + $0x60] sm:$0xff]
        %v272 = vld [vmem:[%s1 + $0x68] sm:$0xff]
        %v273 = vld [vmem:[%s1 + $0x70] sm:$0xff]
        %v274 = vld [vmem:[%s1 + $0x78] sm:$0xff]
        %v275 = vld [vmem:[%s1 + $0x80] sm:$0xff]
        %v276 = vld [vmem:[%s1 + $0x88] sm:$0xff]
        %v277 = vld [vmem:[%s1 + $0x90] sm:$0xff]
        %v278 = vld [vmem:[%s1 + $0x98] sm:$0xff]
        %v279 = vld [vmem:[%s1 + $0xa0] sm:$0xff]
        %v280 = vld [vmem:[%s1 + $0xa8] sm:$0xff]
        %v281 = vld [vmem:[%s1 + $0xb0] sm:$0xff]
        %v282 = vld [vmem:[%s1 + $0xb8] sm:$0xff]
        %v283 = vld [vmem:[%s1 + $0xc0] sm:$0xff]
        %v284 = vld [vmem:[%s1 + $0xc8] sm:$0xff]
        %v285 = vld [vmem:[%s1 + $0xd0] sm:$0xff]
        %v286 = vld [vmem:[%s1 + $0xd8] sm:$0xff]
        %v287 = vld [vmem:[%s1 + $0xe0] sm:$0xff]
        %v288 = vld [vmem:[%s1 + $0xe8] sm:$0xff]
        %v289 = vld [vmem:[%s1 + $0xf0] sm:$0xff]
        %v290 = vld [vmem:[%s1 + $0xf8] sm:$0xff]
        %v291 = vld [vmem:[%s1 + $0x100] sm:$0xff]
        %v292 = vld [vmem:[%s1 + $0x108] sm:$0xff]
        %v293 = vld [vmem:[%s1 + $0x110] sm:$0xff]
        %v294 = vld [vmem:[%s1 + $0x118] sm:$0xff]
        %v295 = vld [vmem:[%s1 + $0x120] sm:$0xff]
        %v296 = vld [vmem:[%s1 + $0x128] sm:$0xff]
        %v297 = vld [vmem:[%s1 + $0x130] sm:$0xff]
        %v298 = vld [vmem:[%s1 + $0x138] sm:$0xff]
        %v299 = vld [vmem:[%s1 + $0x140] sm:$0xff]
        %v300 = vld [vmem:[%s1 + $0x148] sm:$0xff]
        %v301 = vld [vmem:[%s1 + $0x150] sm:$0xff]
        %v302 = vld [vmem:[%s1 + $0x158] sm:$0xff]
        %v303 = vld [vmem:[%s1 + $0x160] sm:$0xff]
        %v304 = vld [vmem:[%s1 + $0x168] sm:$0xff]
        %v305 = vld [vmem:[%s1 + $0x170] sm:$0xff]
        %v306 = vld [vmem:[%s1 + $0x178] sm:$0xff]
        %v307 = vld [vmem:[%s1 + $0x180] sm:$0xff]
        %v308 = vld [vmem:[%s1 + $0x188] sm:$0xff]
        %v309 = vld [vmem:[%s1 + $0x190] sm:$0xff]
        %v310 = vld [vmem:[%s1 + $0x198] sm:$0xff]
        %v311 = vld [vmem:[%s1 + $0x1a0] sm:$0xff]
        %v312 = vld [vmem:[%s1 + $0x1a8] sm:$0xff]
        %v313 = vld [vmem:[%s1 + $0x1b0] sm:$0xff]
        %v314 = vld [vmem:[%s1 + $0x1b8] sm:$0xff]
        %v315 = vld [vmem:[%s1 + $0x1c0] sm:$0xff]
        %v316 = vld [vmem:[%s1 + $0x1c8] sm:$0xff]
        %v317 = vld [vmem:[%s1 + $0x1d0] sm:$0xff]
        %v318 = vld [vmem:[%s1 + $0x1d8] sm:$0xff]
        %v319 = vld [vmem:[%s1 + $0x1e0] sm:$0xff]
        %v320 = vld [vmem:[%s1 + $0x1e8] sm:$0xff]
        %v321 = vld [vmem:[%s1 + $0x1f0] sm:$0xff]
        %v322 = vld [vmem:[%s1 + $0x1f8] sm:$0xff]
        %v323 = vld [vmem:[%s1 + $0x200] sm:$0xff]
        %v324 = vld [vmem:[%s1 + $0x208] sm:$0xff]
        %v325 = vld [vmem:[%s1 + $0x210] sm:$0xff]
        %v326 = vld [vmem:[%s1 + $0x218] sm:$0xff]
        %v327 = vld [vmem:[%s1 + $0x220] sm:$0xff]
        %v328 = vld [vmem:[%s1 + $0x228] sm:$0xff]
        %v329 = vld [vmem:[%s1 + $0x230] sm:$0xff]
        %v330 = vld [vmem:[%s1 + $0x238] sm:$0xff]
        %v331 = vld [vmem:[%s1 + $0x240] sm:$0xff]
        %v332 = vld [vmem:[%s1 + $0x248] sm:$0xff]
        %v333 = vld [vmem:[%s1 + $0x250] sm:$0xff]
        %v334 = vld [vmem:[%s1 + $0x258] sm:$0xff]
        %v335 = vld [vmem:[%s1 + $0x260] sm:$0xff]
        %v336 = vld [vmem:[%s1 + $0x268] sm:$0xff]
        %v337 = vld [vmem:[%s1 + $0x270] sm:$0xff]
        %v338 = vld [vmem:[%s1 + $0x278] sm:$0xff]
        %v339 = vld [vmem:[%s1 + $0x280] sm:$0xff]
        %v340 = vld [vmem:[%s1 + $0x288] sm:$0xff]
        %v341 = vld [vmem:[%s1 + $0x290] sm:$0xff]
        %v342 = vld [vmem:[%s1 + $0x298] sm:$0xff]
        %v343 = vld [vmem:[%s1 + $0x2a0] sm:$0xff]
        %v344 = vld [vmem:[%s1 + $0x2a8] sm:$0xff]
        %v345 = vld [vmem:[%s1 + $0x2b0] sm:$0xff]
        %v346 = vld [vmem:[%s1 + $0x2b8] sm:$0xff]
        %v347 = vld [vmem:[%s1 + $0x2c0] sm:$0xff]
        %v348 = vld [vmem:[%s1 + $0x2c8] sm:$0xff]
        %v349 = vld [vmem:[%s1 + $0x2d0] sm:$0xff]
        %v350 = vld [vmem:[%s1 + $0x2d8] sm:$0xff]
        %v351 = vld [vmem:[%s1 + $0x2e0] sm:$0xff]
        %v352 = vld [vmem:[%s1 + $0x2e8] sm:$0xff]
        %v353 = vld [vmem:[%s1 + $0x2f0] sm:$0xff]
        %v354 = vld [vmem:[%s1 + $0x2f8] sm:$0xff]
        %v355 = vld [vmem:[%s1 + $0x300] sm:$0xff]
        %v356 = vld [vmem:[%s1 + $0x308] sm:$0xff]
        %v357 = vld [vmem:[%s1 + $0x310] sm:$0xff]
        %v358 = vld [vmem:[%s1 + $0x318] sm:$0xff]
        %v359 = vld [vmem:[%s1 + $0x320] sm:$0xff]
        %v360 = vld [vmem:[%s1 + $0x328] sm:$0xff]
        %v361 = vld [vmem:[%s1 + $0x330] sm:$0xff]
        %v362 = vld [vmem:[%s1 + $0x338] sm:$0xff]
        %v363 = vld [vmem:[%s1 + $0x340] sm:$0xff]
        %v364 = vld [vmem:[%s1 + $0x348] sm:$0xff]
        %v365 = vld [vmem:[%s1 + $0x350] sm:$0xff]
        %v366 = vld [vmem:[%s1 + $0x358] sm:$0xff]
        %v367 = vld [vmem:[%s1 + $0x360] sm:$0xff]
        %v368 = vld [vmem:[%s1 + $0x368] sm:$0xff]
        %v369 = vld [vmem:[%s1 + $0x370] sm:$0xff]
        %v370 = vld [vmem:[%s1 + $0x378] sm:$0xff]
        %v371 = vld [vmem:[%s1 + $0x380] sm:$0xff]
        %v372 = vld [vmem:[%s1 + $0x388] sm:$0xff]
        %v373 = vld [vmem:[%s1 + $0x390] sm:$0xff]
        %v374 = vld [vmem:[%s1 + $0x398] sm:$0xff]
        %v375 = vld [vmem:[%s1 + $0x3a0] sm:$0xff]
        %v376 = vld [vmem:[%s1 + $0x3a8] sm:$0xff]
        %v377 = vld [vmem:[%s1 + $0x3b0] sm:$0xff]
        %v378 = vld [vmem:[%s1 + $0x3b8] sm:$0xff]
        %v379 = vld [vmem:[%s1 + $0x3c0] sm:$0xff]
        %v380 = vld [vmem:[%s1 + $0x3c8] sm:$0xff]
        %v381 = vld [vmem:[%s1 + $0x3d0] sm:$0xff]
        %v382 = vld [vmem:[%s1 + $0x3d8] sm:$0xff]
        %v383 = vld [vmem:[%s1 + $0x3e0] sm:$0xff]
        %v384 = vld [vmem:[%s1 + $0x3e8] sm:$0xff]
        %v385 = vld [vmem:[%s1 + $0x3f0] sm:$0xff]
        %v386 = vld [vmem:[%s1 + $0x3f8] sm:$0xff]
        %v387 = vld [vmem:[%s1 + $0x400] sm:$0xff]
        %v388 = vld [vmem:[%s1 + $0x408] sm:$0xff]
        %v389 = vld [vmem:[%s1 + $0x410] sm:$0xff]
        %v390 = vld [vmem:[%s1 + $0x418] sm:$0xff]
        %v391 = vld [vmem:[%s1 + $0x420] sm:$0xff]
        %v392 = vld [vmem:[%s1 + $0x428] sm:$0xff]
        %v393 = vld [vmem:[%s1 + $0x430] sm:$0xff]
        %v394 = vld [vmem:[%s1 + $0x438] sm:$0xff]
        %v395 = vld [vmem:[%s1 + $0x440] sm:$0xff]
        %v396 = vld [vmem:[%s1 + $0x448] sm:$0xff]
        %v397 = vld [vmem:[%s1 + $0x450] sm:$0xff]
        %v398 = vld [vmem:[%s1 + $0x458] sm:$0xff]
        %v399 = vld [vmem:[%s1 + $0x460] sm:$0xff]
        %v400 = vld [vmem:[%s1 + $0x468] sm:$0xff]
        %v401 = vld [vmem:[%s1 + $0x470] sm:$0xff]
        %v402 = vld [vmem:[%s1 + $0x478] sm:$0xff]
        %v403 = vld [vmem:[%s1 + $0x480] sm:$0xff]
        %v404 = vld [vmem:[%s1 + $0x488] sm:$0xff]
        %v405 = vld [vmem:[%s1 + $0x490] sm:$0xff]
        %v406 = vld [vmem:[%s1 + $0x498] sm:$0xff]
        %v407 = vld [vmem:[%s1 + $0x4a0] sm:$0xff]
        %v408 = vld [vmem:[%s1 + $0x4a8] sm:$0xff]
        %v409 = vld [vmem:[%s1 + $0x4b0] sm:$0xff]
        %v410 = vld [vmem:[%s1 + $0x4b8] sm:$0xff]
        %v411 = vld [vmem:[%s1 + $0x4c0] sm:$0xff]
        %v412 = vld [vmem:[%s1 + $0x4c8] sm:$0xff]
        %v413 = vld [vmem:[%s1 + $0x4d0] sm:$0xff]
        %v414 = vld [vmem:[%s1 + $0x4d8] sm:$0xff]
        %v415 = vld [vmem:[%s1 + $0x4e0] sm:$0xff]
        %v416 = vld [vmem:[%s1 + $0x4e8] sm:$0xff]
        %v417 = vld [vmem:[%s1 + $0x4f0] sm:$0xff]
        %v418 = vld [vmem:[%s1 + $0x4f8] sm:$0xff]
        %v419 = vld [vmem:[%s1 + $0x500] sm:$0xff]
        %v420 = vld [vmem:[%s1 + $0x508] sm:$0xff]
        %v421 = vld [vmem:[%s1 + $0x510] sm:$0xff]
        %v422 = vld [vmem:[%s1 + $0x518] sm:$0xff]
        %v423 = vld [vmem:[%s1 + $0x520] sm:$0xff]
        %v424 = vld [vmem:[%s1 + $0x528] sm:$0xff]
        %v425 = vld [vmem:[%s1 + $0x530] sm:$0xff]
        %v426 = vld [vmem:[%s1 + $0x538] sm:$0xff]
        %v427 = vld [vmem:[%s1 + $0x540] sm:$0xff]
        %v428 = vld [vmem:[%s1 + $0x548] sm:$0xff]
        %v429 = vld [vmem:[%s1 + $0x550] sm:$0xff]
        %v430 = vld [vmem:[%s1 + $0x558] sm:$0xff]
        %v431 = vld [vmem:[%s1 + $0x560] sm:$0xff]
        %v432 = vld [vmem:[%s1 + $0x568] sm:$0xff]
        %v433 = vld [vmem:[%s1 + $0x570] sm:$0xff]
        %v434 = vld [vmem:[%s1 + $0x578] sm:$0xff]
        %v435 = vld [vmem:[%s1 + $0x580] sm:$0xff]
        %v436 = vld [vmem:[%s1 + $0x588] sm:$0xff]
        %v437 = vld [vmem:[%s1 + $0x590] sm:$0xff]
        %v438 = vld [vmem:[%s1 + $0x598] sm:$0xff]
        %v439 = vld [vmem:[%s1 + $0x5a0] sm:$0xff]
        %v440 = vld [vmem:[%s1 + $0x5a8] sm:$0xff]
        %v441 = vld [vmem:[%s1 + $0x5b0] sm:$0xff]
        %v442 = vld [vmem:[%s1 + $0x5b8] sm:$0xff]
        %v443 = vld [vmem:[%s1 + $0x5c0] sm:$0xff]
        %v444 = vld [vmem:[%s1 + $0x5c8] sm:$0xff]
        %v445 = vld [vmem:[%s1 + $0x5d0] sm:$0xff]
        %v446 = vld [vmem:[%s1 + $0x5d8] sm:$0xff]
        %v447 = vld [vmem:[%s1 + $0x5e0] sm:$0xff]
        %v448 = vld [vmem:[%s1 + $0x5e8] sm:$0xff]
        %v449 = vld [vmem:[%s1 + $0x5f0] sm:$0xff]
        %v450 = vld [vmem:[%s1 + $0x5f8] sm:$0xff]
        %v453 = vunpack.c.l.b16 %v257
        %v454 = vunpack.c.l.b16 %v258
        %v455 = vpack.c.b16 %v454, %v453
        %v649 = vunpack.c.l.b16 %v259
        %v650 = vunpack.c.h.b16 %v259
        %v651 = vunpack.c.l.b16 %v260
        %v652 = vunpack.c.h.b16 %v260
        %v653 = vunpack.c.l.b16 %v261
        %v654 = vunpack.c.h.b16 %v261
        %v655 = vunpack.c.l.b16 %v262
        %v656 = vunpack.c.h.b16 %v262
        %v657 = vunpack.c.l.b16 %v263
        %v658 = vunpack.c.h.b16 %v263
        %v659 = vunpack.c.l.b16 %v264
        %v660 = vunpack.c.h.b16 %v264
        %v661 = vunpack.c.l.b16 %v265
        %v662 = vunpack.c.h.b16 %v265
        %v663 = vunpack.c.l.b16 %v266
        %v664 = vunpack.c.h.b16 %v266
        %v665 = vunpack.c.l.b16 %v267
        %v666 = vunpack.c.h.b16 %v267
        %v667 = vunpack.c.l.b16 %v268
        %v668 = vunpack.c.h.b16 %v268
        %v669 = vunpack.c.l.b16 %v269
        %v670 = vunpack.c.h.b16 %v269
        %v671 = vunpack.c.l.b16 %v270
        %v672 = vunpack.c.h.b16 %v270
        %v673 = vunpack.c.l.b16 %v271
        %v674 = vunpack.c.h.b16 %v271
        %v675 = vunpack.c.l.b16 %v272
        %v676 = vunpack.c.h.b16 %v272
        %v677 = vunpack.c.l.b16 %v273
        %v678 = vunpack.c.h.b16 %v273
        %v679 = vunpack.c.l.b16 %v274
        %v680 = vunpack.c.h.b16 %v274
        %v681 = vunpack.c.l.b16 %v275
        %v682 = vunpack.c.h.b16 %v275
        %v683 = vunpack.c.l.b16 %v276
        %v684 = vunpack.c.h.b16 %v276
        %v685 = vunpack.c.l.b16 %v277
        %v686 = vunpack.c.h.b16 %v277
        %v687 = vunpack.c.l.b16 %v278
        %v688 = vunpack.c.h.b16 %v278
        %v689 = vunpack.c.l.b16 %v279
        %v690 = vunpack.c.h.b16 %v279
        %v691 = vunpack.c.l.b16 %v280
        %v692 = vunpack.c.h.b16 %v280
        %v693 = vunpack.c.l.b16 %v281
        %v694 = vunpack.c.h.b16 %v281
        %v695 = vunpack.c.l.b16 %v282
        %v696 = vunpack.c.h.b16 %v282
        %v697 = vunpack.c.l.b16 %v283
        %v698 = vunpack.c.h.b16 %v283
        %v699 = vunpack.c.l.b16 %v284
        %v700 = vunpack.c.h.b16 %v284
        %v701 = vunpack.c.l.b16 %v285
        %v702 = vunpack.c.h.b16 %v285
        %v703 = vunpack.c.l.b16 %v286
        %v704 = vunpack.c.h.b16 %v286
        %v705 = vunpack.c.l.b16 %v287
        %v706 = vunpack.c.h.b16 %v287
        %v707 = vunpack.c.l.b16 %v288
        %v708 = vunpack.c.h.b16 %v288
        %v709 = vunpack.c.l.b16 %v289
        %v710 = vunpack.c.h.b16 %v289
        %v711 = vunpack.c.l.b16 %v290
        %v712 = vunpack.c.h.b16 %v290
        %v713 = vunpack.c.l.b16 %v291
        %v714 = vunpack.c.h.b16 %v291
        %v715 = vunpack.c.l.b16 %v292
        %v716 = vunpack.c.h.b16 %v292
        %v717 = vunpack.c.l.b16 %v293
        %v718 = vunpack.c.h.b16 %v293
        %v719 = vunpack.c.l.b16 %v294
        %v720 = vunpack.c.h.b16 %v294
        %v721 = vunpack.c.l.b16 %v295
        %v722 = vunpack.c.h.b16 %v295
        %v723 = vunpack.c.l.b16 %v296
        %v724 = vunpack.c.h.b16 %v296
        %v725 = vunpack.c.l.b16 %v297
        %v726 = vunpack.c.h.b16 %v297
        %v727 = vunpack.c.l.b16 %v298
        %v728 = vunpack.c.h.b16 %v298
        %v729 = vunpack.c.l.b16 %v299
        %v730 = vunpack.c.h.b16 %v299
        %v731 = vunpack.c.l.b16 %v300
        %v732 = vunpack.c.h.b16 %v300
        %v733 = vunpack.c.l.b16 %v301
        %v734 = vunpack.c.h.b16 %v301
        %v735 = vunpack.c.l.b16 %v302
        %v736 = vunpack.c.h.b16 %v302
        %v737 = vunpack.c.l.b16 %v303
        %v738 = vunpack.c.h.b16 %v303
        %v739 = vunpack.c.l.b16 %v304
        %v740 = vunpack.c.h.b16 %v304
        %v741 = vunpack.c.l.b16 %v305
        %v742 = vunpack.c.h.b16 %v305
        %v743 = vunpack.c.l.b16 %v306
        %v744 = vunpack.c.h.b16 %v306
        %v745 = vunpack.c.l.b16 %v307
        %v746 = vunpack.c.h.b16 %v307
        %v747 = vunpack.c.l.b16 %v308
        %v748 = vunpack.c.h.b16 %v308
        %v749 = vunpack.c.l.b16 %v309
        %v750 = vunpack.c.h.b16 %v309
        %v751 = vunpack.c.l.b16 %v310
        %v752 = vunpack.c.h.b16 %v310
        %v753 = vunpack.c.l.b16 %v311
        %v754 = vunpack.c.h.b16 %v311
        %v755 = vunpack.c.l.b16 %v312
        %v756 = vunpack.c.h.b16 %v312
        %v757 = vunpack.c.l.b16 %v313
        %v758 = vunpack.c.h.b16 %v313
        %v759 = vunpack.c.l.b16 %v314
        %v760 = vunpack.c.h.b16 %v314
        %v761 = vunpack.c.l.b16 %v315
        %v762 = vunpack.c.h.b16 %v315
        %v763 = vunpack.c.l.b16 %v316
        %v764 = vunpack.c.h.b16 %v316
        %v765 = vunpack.c.l.b16 %v317
        %v766 = vunpack.c.h.b16 %v317
        %v767 = vunpack.c.l.b16 %v318
        %v768 = vunpack.c.h.b16 %v318
        %v769 = vunpack.c.l.b16 %v319
        %v770 = vunpack.c.h.b16 %v319
        %v771 = vunpack.c.l.b16 %v320
        %v772 = vunpack.c.h.b16 %v320
        %v773 = vunpack.c.l.b16 %v321
        %v774 = vunpack.c.h.b16 %v321
        %v775 = vunpack.c.l.b16 %v322
        %v776 = vunpack.c.h.b16 %v322
        %v777 = vunpack.c.l.b16 %v323
        %v778 = vunpack.c.h.b16 %v323
        %v779 = vunpack.c.l.b16 %v324
        %v780 = vunpack.c.h.b16 %v324
        %v781 = vunpack.c.l.b16 %v325
        %v782 = vunpack.c.h.b16 %v325
        %v783 = vunpack.c.l.b16 %v326
        %v784 = vunpack.c.h.b16 %v326
        %v785 = vunpack.c.l.b16 %v327
        %v786 = vunpack.c.h.b16 %v327
        %v787 = vunpack.c.l.b16 %v328
        %v788 = vunpack.c.h.b16 %v328
        %v789 = vunpack.c.l.b16 %v329
        %v790 = vunpack.c.h.b16 %v329
        %v791 = vunpack.c.l.b16 %v330
        %v792 = vunpack.c.h.b16 %v330
        %v793 = vunpack.c.l.b16 %v331
        %v794 = vunpack.c.h.b16 %v331
        %v795 = vunpack.c.l.b16 %v332
        %v796 = vunpack.c.h.b16 %v332
        %v797 = vunpack.c.l.b16 %v333
        %v798 = vunpack.c.h.b16 %v333
        %v799 = vunpack.c.l.b16 %v334
        %v800 = vunpack.c.h.b16 %v334
        %v801 = vunpack.c.l.b16 %v335
        %v802 = vunpack.c.h.b16 %v335
        %v803 = vunpack.c.l.b16 %v336
        %v804 = vunpack.c.h.b16 %v336
        %v805 = vunpack.c.l.b16 %v337
        %v806 = vunpack.c.h.b16 %v337
        %v807 = vunpack.c.l.b16 %v338
        %v808 = vunpack.c.h.b16 %v338
        %v809 = vunpack.c.l.b16 %v339
        %v810 = vunpack.c.h.b16 %v339
        %v811 = vunpack.c.l.b16 %v340
        %v812 = vunpack.c.h.b16 %v340
        %v813 = vunpack.c.l.b16 %v341
        %v814 = vunpack.c.h.b16 %v341
        %v815 = vunpack.c.l.b16 %v342
        %v816 = vunpack.c.h.b16 %v342
        %v817 = vunpack.c.l.b16 %v343
        %v818 = vunpack.c.h.b16 %v343
        %v819 = vunpack.c.l.b16 %v344
        %v820 = vunpack.c.h.b16 %v344
        %v821 = vunpack.c.l.b16 %v345
        %v822 = vunpack.c.h.b16 %v345
        %v823 = vunpack.c.l.b16 %v346
        %v824 = vunpack.c.h.b16 %v346
        %v825 = vunpack.c.l.b16 %v347
        %v826 = vunpack.c.h.b16 %v347
        %v827 = vunpack.c.l.b16 %v348
        %v828 = vunpack.c.h.b16 %v348
        %v829 = vunpack.c.l.b16 %v349
        %v830 = vunpack.c.h.b16 %v349
        %v831 = vunpack.c.l.b16 %v350
        %v832 = vunpack.c.h.b16 %v350
        %v833 = vunpack.c.l.b16 %v351
        %v834 = vunpack.c.h.b16 %v351
        %v835 = vunpack.c.l.b16 %v352
        %v836 = vunpack.c.h.b16 %v352
        %v837 = vunpack.c.l.b16 %v353
        %v838 = vunpack.c.h.b16 %v353
        %v839 = vunpack.c.l.b16 %v354
        %v840 = vunpack.c.h.b16 %v354
        %v841 = vunpack.c.l.b16 %v355
        %v842 = vunpack.c.h.b16 %v355
        %v843 = vunpack.c.l.b16 %v356
        %v844 = vunpack.c.h.b16 %v356
        %v845 = vunpack.c.l.b16 %v357
        %v846 = vunpack.c.h.b16 %v357
        %v847 = vunpack.c.l.b16 %v358
        %v848 = vunpack.c.h.b16 %v358
        %v849 = vunpack.c.l.b16 %v359
        %v850 = vunpack.c.h.b16 %v359
        %v851 = vunpack.c.l.b16 %v360
        %v852 = vunpack.c.h.b16 %v360
        %v853 = vunpack.c.l.b16 %v361
        %v854 = vunpack.c.h.b16 %v361
        %v855 = vunpack.c.l.b16 %v362
        %v856 = vunpack.c.h.b16 %v362
        %v857 = vunpack.c.l.b16 %v363
        %v858 = vunpack.c.h.b16 %v363
        %v859 = vunpack.c.l.b16 %v364
        %v860 = vunpack.c.h.b16 %v364
        %v861 = vunpack.c.l.b16 %v365
        %v862 = vunpack.c.h.b16 %v365
        %v863 = vunpack.c.l.b16 %v366
        %v864 = vunpack.c.h.b16 %v366
        %v865 = vunpack.c.l.b16 %v367
        %v866 = vunpack.c.h.b16 %v367
        %v867 = vunpack.c.l.b16 %v368
        %v868 = vunpack.c.h.b16 %v368
        %v869 = vunpack.c.l.b16 %v369
        %v870 = vunpack.c.h.b16 %v369
        %v871 = vunpack.c.l.b16 %v370
        %v872 = vunpack.c.h.b16 %v370
        %v873 = vunpack.c.l.b16 %v371
        %v874 = vunpack.c.h.b16 %v371
        %v875 = vunpack.c.l.b16 %v372
        %v876 = vunpack.c.h.b16 %v372
        %v877 = vunpack.c.l.b16 %v373
        %v878 = vunpack.c.h.b16 %v373
        %v879 = vunpack.c.l.b16 %v374
        %v880 = vunpack.c.h.b16 %v374
        %v881 = vunpack.c.l.b16 %v375
        %v882 = vunpack.c.h.b16 %v375
        %v883 = vunpack.c.l.b16 %v376
        %v884 = vunpack.c.h.b16 %v376
        %v885 = vunpack.c.l.b16 %v377
        %v886 = vunpack.c.h.b16 %v377
        %v887 = vunpack.c.l.b16 %v378
        %v888 = vunpack.c.h.b16 %v378
        %v889 = vunpack.c.l.b16 %v379
        %v890 = vunpack.c.h.b16 %v379
        %v891 = vunpack.c.l.b16 %v380
        %v892 = vunpack.c.h.b16 %v380
        %v893 = vunpack.c.l.b16 %v381
        %v894 = vunpack.c.h.b16 %v381
        %v895 = vunpack.c.l.b16 %v382
        %v896 = vunpack.c.h.b16 %v382
        %v897 = vunpack.c.l.b16 %v383
        %v898 = vunpack.c.h.b16 %v383
        %v899 = vunpack.c.l.b16 %v384
        %v900 = vunpack.c.h.b16 %v384
        %v901 = vunpack.c.l.b16 %v385
        %v902 = vunpack.c.h.b16 %v385
        %v903 = vunpack.c.l.b16 %v386
        %v904 = vunpack.c.h.b16 %v386
        %v905 = vunpack.c.l.b16 %v387
        %v906 = vunpack.c.h.b16 %v387
        %v907 = vunpack.c.l.b16 %v388
        %v908 = vunpack.c.h.b16 %v388
        %v909 = vunpack.c.l.b16 %v389
        %v910 = vunpack.c.h.b16 %v389
        %v911 = vunpack.c.l.b16 %v390
        %v912 = vunpack.c.h.b16 %v390
        %v913 = vunpack.c.l.b16 %v391
        %v914 = vunpack.c.h.b16 %v391
        %v915 = vunpack.c.l.b16 %v392
        %v916 = vunpack.c.h.b16 %v392
        %v917 = vunpack.c.l.b16 %v393
        %v918 = vunpack.c.h.b16 %v393
        %v919 = vunpack.c.l.b16 %v394
        %v920 = vunpack.c.h.b16 %v394
        %v921 = vunpack.c.l.b16 %v395
        %v922 = vunpack.c.h.b16 %v395
        %v923 = vunpack.c.l.b16 %v396
        %v924 = vunpack.c.h.b16 %v396
        %v925 = vunpack.c.l.b16 %v397
        %v926 = vunpack.c.h.b16 %v397
        %v927 = vunpack.c.l.b16 %v398
        %v928 = vunpack.c.h.b16 %v398
        %v929 = vunpack.c.l.b16 %v399
        %v930 = vunpack.c.h.b16 %v399
        %v931 = vunpack.c.l.b16 %v400
        %v932 = vunpack.c.h.b16 %v400
        %v933 = vunpack.c.l.b16 %v401
        %v934 = vunpack.c.h.b16 %v401
        %v935 = vunpack.c.l.b16 %v402
        %v936 = vunpack.c.h.b16 %v402
        %v937 = vunpack.c.l.b16 %v403
        %v938 = vunpack.c.h.b16 %v403
        %v939 = vunpack.c.l.b16 %v404
        %v940 = vunpack.c.h.b16 %v404
        %v941 = vunpack.c.l.b16 %v405
        %v942 = vunpack.c.h.b16 %v405
        %v943 = vunpack.c.l.b16 %v406
        %v944 = vunpack.c.h.b16 %v406
        %v945 = vunpack.c.l.b16 %v407
        %v946 = vunpack.c.h.b16 %v407
        %v947 = vunpack.c.l.b16 %v408
        %v948 = vunpack.c.h.b16 %v408
        %v949 = vunpack.c.l.b16 %v409
        %v950 = vunpack.c.h.b16 %v409
        %v951 = vunpack.c.l.b16 %v410
        %v952 = vunpack.c.h.b16 %v410
        %v953 = vunpack.c.l.b16 %v411
        %v954 = vunpack.c.h.b16 %v411
        %v955 = vunpack.c.l.b16 %v412
        %v956 = vunpack.c.h.b16 %v412
        %v957 = vunpack.c.l.b16 %v413
        %v958 = vunpack.c.h.b16 %v413
        %v959 = vunpack.c.l.b16 %v414
        %v960 = vunpack.c.h.b16 %v414
        %v961 = vunpack.c.l.b16 %v415
        %v962 = vunpack.c.h.b16 %v415
        %v963 = vunpack.c.l.b16 %v416
        %v964 = vunpack.c.h.b16 %v416
        %v965 = vunpack.c.l.b16 %v417
        %v966 = vunpack.c.h.b16 %v417
        %v967 = vunpack.c.l.b16 %v418
        %v968 = vunpack.c.h.b16 %v418
        %v969 = vunpack.c.l.b16 %v419
        %v970 = vunpack.c.h.b16 %v419
        %v971 = vunpack.c.l.b16 %v420
        %v972 = vunpack.c.h.b16 %v420
        %v973 = vunpack.c.l.b16 %v421
        %v974 = vunpack.c.h.b16 %v421
        %v975 = vunpack.c.l.b16 %v422
        %v976 = vunpack.c.h.b16 %v422
        %v977 = vunpack.c.l.b16 %v423
        %v978 = vunpack.c.h.b16 %v423
        %v979 = vunpack.c.l.b16 %v424
        %v980 = vunpack.c.h.b16 %v424
        %v981 = vunpack.c.l.b16 %v425
        %v982 = vunpack.c.h.b16 %v425
        %v983 = vunpack.c.l.b16 %v426
        %v984 = vunpack.c.h.b16 %v426
        %v985 = vunpack.c.l.b16 %v427
        %v986 = vunpack.c.h.b16 %v427
        %v987 = vunpack.c.l.b16 %v428
        %v988 = vunpack.c.h.b16 %v428
        %v989 = vunpack.c.l.b16 %v429
        %v990 = vunpack.c.h.b16 %v429
        %v991 = vunpack.c.l.b16 %v430
        %v992 = vunpack.c.h.b16 %v430
        %v993 = vunpack.c.l.b16 %v431
        %v994 = vunpack.c.h.b16 %v431
        %v995 = vunpack.c.l.b16 %v432
        %v996 = vunpack.c.h.b16 %v432
        %v997 = vunpack.c.l.b16 %v433
        %v998 = vunpack.c.h.b16 %v433
        %v999 = vunpack.c.l.b16 %v434
        %v1000 = vunpack.c.h.b16 %v434
        %v1001 = vunpack.c.l.b16 %v435
        %v1002 = vunpack.c.h.b16 %v435
        %v1003 = vunpack.c.l.b16 %v436
        %v1004 = vunpack.c.h.b16 %v436
        %v1005 = vunpack.c.l.b16 %v437
        %v1006 = vunpack.c.h.b16 %v437
        %v1007 = vunpack.c.l.b16 %v438
        %v1008 = vunpack.c.h.b16 %v438
        %v1009 = vunpack.c.l.b16 %v439
        %v1010 = vunpack.c.h.b16 %v439
        %v1011 = vunpack.c.l.b16 %v440
        %v1012 = vunpack.c.h.b16 %v440
        %v1013 = vunpack.c.l.b16 %v441
        %v1014 = vunpack.c.h.b16 %v441
        %v1015 = vunpack.c.l.b16 %v442
        %v1016 = vunpack.c.h.b16 %v442
        %v1017 = vunpack.c.l.b16 %v443
        %v1018 = vunpack.c.h.b16 %v443
        %v1019 = vunpack.c.l.b16 %v444
        %v1020 = vunpack.c.h.b16 %v444
        %v1021 = vunpack.c.l.b16 %v445
        %v1022 = vunpack.c.h.b16 %v445
        %v1023 = vunpack.c.l.b16 %v446
        %v1024 = vunpack.c.h.b16 %v446
        %v1025 = vunpack.c.l.b16 %v447
        %v1026 = vunpack.c.h.b16 %v447
        %v1027 = vunpack.c.l.b16 %v448
        %v1028 = vunpack.c.h.b16 %v448
        %v1029 = vunpack.c.l.b16 %v449
        %v1030 = vunpack.c.h.b16 %v449
        %v1031 = vunpack.c.l.b16 %v450
        %v1032 = vunpack.c.h.b16 %v450
        %v1033 = vpack.c.b16 %v673, %v649
        %v1034 = vpack.c.b16 %v674, %v650
        %v1035 = vpack.c.b16 %v675, %v651
        %v1036 = vpack.c.b16 %v676, %v652
        %v1037 = vpack.c.b16 %v677, %v653
        %v1038 = vpack.c.b16 %v678, %v654
        %v1039 = vpack.c.b16 %v679, %v655
        %v1040 = vpack.c.b16 %v680, %v656
        %v1041 = vpack.c.b16 %v681, %v657
        %v1042 = vpack.c.b16 %v682, %v658
        %v1043 = vpack.c.b16 %v683, %v659
        %v1044 = vpack.c.b16 %v684, %v660
        %v1045 = vpack.c.b16 %v685, %v661
        %v1046 = vpack.c.b16 %v686, %v662
        %v1047 = vpack.c.b16 %v687, %v663
        %v1048 = vpack.c.b16 %v688, %v664
        %v1049 = vpack.c.b16 %v689, %v665
        %v1050 = vpack.c.b16 %v690, %v666
        %v1051 = vpack.c.b16 %v691, %v667
        %v1052 = vpack.c.b16 %v692, %v668
        %v1053 = vpack.c.b16 %v693, %v669
        %v1054 = vpack.c.b16 %v694, %v670
        %v1055 = vpack.c.b16 %v695, %v671
        %v1056 = vpack.c.b16 %v696, %v672
        %v1057 = vpack.c.b16 %v721, %v697
        %v1058 = vpack.c.b16 %v722, %v698
        %v1059 = vpack.c.b16 %v723, %v699
        %v1060 = vpack.c.b16 %v724, %v700
        %v1061 = vpack.c.b16 %v725, %v701
        %v1062 = vpack.c.b16 %v726, %v702
        %v1063 = vpack.c.b16 %v727, %v703
        %v1064 = vpack.c.b16 %v728, %v704
        %v1065 = vpack.c.b16 %v729, %v705
        %v1066 = vpack.c.b16 %v730, %v706
        %v1067 = vpack.c.b16 %v731, %v707
        %v1068 = vpack.c.b16 %v732, %v708
        %v1069 = vpack.c.b16 %v733, %v709
        %v1070 = vpack.c.b16 %v734, %v710
        %v1071 = vpack.c.b16 %v735, %v711
        %v1072 = vpack.c.b16 %v736, %v712
        %v1073 = vpack.c.b16 %v737, %v713
        %v1074 = vpack.c.b16 %v738, %v714
        %v1075 = vpack.c.b16 %v739, %v715
        %v1076 = vpack.c.b16 %v740, %v716
        %v1077 = vpack.c.b16 %v741, %v717
        %v1078 = vpack.c.b16 %v742, %v718
        %v1079 = vpack.c.b16 %v743, %v719
        %v1080 = vpack.c.b16 %v744, %v720
        %v1081 = vpack.c.b16 %v769, %v745
        %v1082 = vpack.c.b16 %v770, %v746
        %v1083 = vpack.c.b16 %v771, %v747
        %v1084 = vpack.c.b16 %v772, %v748
        %v1085 = vpack.c.b16 %v773, %v749
        %v1086 = vpack.c.b16 %v774, %v750
        %v1087 = vpack.c.b16 %v775, %v751
        %v1088 = vpack.c.b16 %v776, %v752
        %v1089 = vpack.c.b16 %v777, %v753
        %v1090 = vpack.c.b16 %v778, %v754
        %v1091 = vpack.c.b16 %v779, %v755
        %v1092 = vpack.c.b16 %v780, %v756
        %v1093 = vpack.c.b16 %v781, %v757
        %v1094 = vpack.c.b16 %v782, %v758
        %v1095 = vpack.c.b16 %v783, %v759
        %v1096 = vpack.c.b16 %v784, %v760
        %v1097 = vpack.c.b16 %v785, %v761
        %v1098 = vpack.c.b16 %v786, %v762
        %v1099 = vpack.c.b16 %v787, %v763
        %v1100 = vpack.c.b16 %v788, %v764
        %v1101 = vpack.c.b16 %v789, %v765
        %v1102 = vpack.c.b16 %v790, %v766
        %v1103 = vpack.c.b16 %v791, %v767
        %v1104 = vpack.c.b16 %v792, %v768
        %v1105 = vpack.c.b16 %v817, %v793
        %v1106 = vpack.c.b16 %v818, %v794
        %v1107 = vpack.c.b16 %v819, %v795
        %v1108 = vpack.c.b16 %v820, %v796
        %v1109 = vpack.c.b16 %v821, %v797
        %v1110 = vpack.c.b16 %v822, %v798
        %v1111 = vpack.c.b16 %v823, %v799
        %v1112 = vpack.c.b16 %v824, %v800
        %v1113 = vpack.c.b16 %v825, %v801
        %v1114 = vpack.c.b16 %v826, %v802
        %v1115 = vpack.c.b16 %v827, %v803
        %v1116 = vpack.c.b16 %v828, %v804
        %v1117 = vpack.c.b16 %v829, %v805
        %v1118 = vpack.c.b16 %v830, %v806
        %v1119 = vpack.c.b16 %v831, %v807
        %v1120 = vpack.c.b16 %v832, %v808
        %v1121 = vpack.c.b16 %v833, %v809
        %v1122 = vpack.c.b16 %v834, %v810
        %v1123 = vpack.c.b16 %v835, %v811
        %v1124 = vpack.c.b16 %v836, %v812
        %v1125 = vpack.c.b16 %v837, %v813
        %v1126 = vpack.c.b16 %v838, %v814
        %v1127 = vpack.c.b16 %v839, %v815
        %v1128 = vpack.c.b16 %v840, %v816
        %v1129 = vpack.c.b16 %v865, %v841
        %v1130 = vpack.c.b16 %v866, %v842
        %v1131 = vpack.c.b16 %v867, %v843
        %v1132 = vpack.c.b16 %v868, %v844
        %v1133 = vpack.c.b16 %v869, %v845
        %v1134 = vpack.c.b16 %v870, %v846
        %v1135 = vpack.c.b16 %v871, %v847
        %v1136 = vpack.c.b16 %v872, %v848
        %v1137 = vpack.c.b16 %v873, %v849
        %v1138 = vpack.c.b16 %v874, %v850
        %v1139 = vpack.c.b16 %v875, %v851
        %v1140 = vpack.c.b16 %v876, %v852
        %v1141 = vpack.c.b16 %v877, %v853
        %v1142 = vpack.c.b16 %v878, %v854
        %v1143 = vpack.c.b16 %v879, %v855
        %v1144 = vpack.c.b16 %v880, %v856
        %v1145 = vpack.c.b16 %v881, %v857
        %v1146 = vpack.c.b16 %v882, %v858
        %v1147 = vpack.c.b16 %v883, %v859
        %v1148 = vpack.c.b16 %v884, %v860
        %v1149 = vpack.c.b16 %v885, %v861
        %v1150 = vpack.c.b16 %v886, %v862
        %v1151 = vpack.c.b16 %v887, %v863
        %v1152 = vpack.c.b16 %v888, %v864
        %v1153 = vpack.c.b16 %v913, %v889
        %v1154 = vpack.c.b16 %v914, %v890
        %v1155 = vpack.c.b16 %v915, %v891
        %v1156 = vpack.c.b16 %v916, %v892
        %v1157 = vpack.c.b16 %v917, %v893
        %v1158 = vpack.c.b16 %v918, %v894
        %v1159 = vpack.c.b16 %v919, %v895
        %v1160 = vpack.c.b16 %v920, %v896
        %v1161 = vpack.c.b16 %v921, %v897
        %v1162 = vpack.c.b16 %v922, %v898
        %v1163 = vpack.c.b16 %v923, %v899
        %v1164 = vpack.c.b16 %v924, %v900
        %v1165 = vpack.c.b16 %v925, %v901
        %v1166 = vpack.c.b16 %v926, %v902
        %v1167 = vpack.c.b16 %v927, %v903
        %v1168 = vpack.c.b16 %v928, %v904
        %v1169 = vpack.c.b16 %v929, %v905
        %v1170 = vpack.c.b16 %v930, %v906
        %v1171 = vpack.c.b16 %v931, %v907
        %v1172 = vpack.c.b16 %v932, %v908
        %v1173 = vpack.c.b16 %v933, %v909
        %v1174 = vpack.c.b16 %v934, %v910
        %v1175 = vpack.c.b16 %v935, %v911
        %v1176 = vpack.c.b16 %v936, %v912
        %v1177 = vpack.c.b16 %v961, %v937
        %v1178 = vpack.c.b16 %v962, %v938
        %v1179 = vpack.c.b16 %v963, %v939
        %v1180 = vpack.c.b16 %v964, %v940
        %v1181 = vpack.c.b16 %v965, %v941
        %v1182 = vpack.c.b16 %v966, %v942
        %v1183 = vpack.c.b16 %v967, %v943
        %v1184 = vpack.c.b16 %v968, %v944
        %v1185 = vpack.c.b16 %v969, %v945
        %v1186 = vpack.c.b16 %v970, %v946
        %v1187 = vpack.c.b16 %v971, %v947
        %v1188 = vpack.c.b16 %v972, %v948
        %v1189 = vpack.c.b16 %v973, %v949
        %v1190 = vpack.c.b16 %v974, %v950
        %v1191 = vpack.c.b16 %v975, %v951
        %v1192 = vpack.c.b16 %v976, %v952
        %v1193 = vpack.c.b16 %v977, %v953
        %v1194 = vpack.c.b16 %v978, %v954
        %v1195 = vpack.c.b16 %v979, %v955
        %v1196 = vpack.c.b16 %v980, %v956
        %v1197 = vpack.c.b16 %v981, %v957
        %v1198 = vpack.c.b16 %v982, %v958
        %v1199 = vpack.c.b16 %v983, %v959
        %v1200 = vpack.c.b16 %v984, %v960
        %v1201 = vpack.c.b16 %v1009, %v985
        %v1202 = vpack.c.b16 %v1010, %v986
        %v1203 = vpack.c.b16 %v1011, %v987
        %v1204 = vpack.c.b16 %v1012, %v988
        %v1205 = vpack.c.b16 %v1013, %v989
        %v1206 = vpack.c.b16 %v1014, %v990
        %v1207 = vpack.c.b16 %v1015, %v991
        %v1208 = vpack.c.b16 %v1016, %v992
        %v1209 = vpack.c.b16 %v1017, %v993
        %v1210 = vpack.c.b16 %v1018, %v994
        %v1211 = vpack.c.b16 %v1019, %v995
        %v1212 = vpack.c.b16 %v1020, %v996
        %v1213 = vpack.c.b16 %v1021, %v997
        %v1214 = vpack.c.b16 %v1022, %v998
        %v1215 = vpack.c.b16 %v1023, %v999
        %v1216 = vpack.c.b16 %v1024, %v1000
        %v1217 = vpack.c.b16 %v1025, %v1001
        %v1218 = vpack.c.b16 %v1026, %v1002
        %v1219 = vpack.c.b16 %v1027, %v1003
        %v1220 = vpack.c.b16 %v1028, %v1004
        %v1221 = vpack.c.b16 %v1029, %v1005
        %v1222 = vpack.c.b16 %v1030, %v1006
        %v1223 = vpack.c.b16 %v1031, %v1007
        %v1224 = vpack.c.b16 %v1032, %v1008
        %1417 = vmatprep.subr.bf16.mxu0 %v1034
        %1418 = vmatpush1.bf16.msra.mxu0 %v1033
        %1419 = vmatprep.subr.bf16.mxu0 %v1058
        %1420 = vmatpush1.bf16.msra.mxu0 %v1057
        %1421 = vmatprep.subr.bf16.mxu0 %v1082
        %1422 = vmatpush1.bf16.msra.mxu0 %v1081
        %1423 = vmatprep.subr.bf16.mxu0 %v1106
        %1424 = vmatpush1.bf16.msra.mxu0 %v1105
        %1425 = vmatprep.subr.bf16.mxu0 %v1130
        %1426 = vmatpush1.bf16.msra.mxu0 %v1129
        %1427 = vmatprep.subr.bf16.mxu0 %v1154
        %1428 = vmatpush1.bf16.msra.mxu0 %v1153
        %1429 = vmatprep.subr.bf16.mxu0 %v1178
        %1430 = vmatpush1.bf16.msra.mxu0 %v1177
        %1431 = vmatprep.subr.bf16.mxu0 %v1202
        %1432 = vmatpush1.bf16.msra.mxu0 %v1201
        %1433 = vmatprep.subr.bf16.mxu0 0
        %1434 = vmatpush1.bf16.msra.mxu0 0
        %1435 = vmatprep.subr.bf16.mxu0 0
        %1436 = vmatpush1.bf16.msra.mxu0 0
        %1437 = vmatprep.subr.bf16.mxu0 0
        %1438 = vmatpush1.bf16.msra.mxu0 0
        %1439 = vmatprep.subr.bf16.mxu0 0
        %1440 = vmatpush1.bf16.msra.mxu0 0
        %1441 = vmatprep.subr.bf16.mxu0 0
        %1442 = vmatpush1.bf16.msra.mxu0 0
        %1443 = vmatprep.subr.bf16.mxu0 0
        %1444 = vmatpush1.bf16.msra.mxu0 0
        %1445 = vmatprep.subr.bf16.mxu0 0
        %1446 = vmatpush1.bf16.msra.mxu0 0
        %1447 = vmatprep.subr.bf16.mxu0 0
        %1448 = vmatpush1.bf16.msra.mxu0 0
        %1449 = vmatprep.mubr.bf16.mxu0 0
        %1450 = vmatmul.mubr.bf16.gmra.mrb[0].mxu0 %v455
        %v1451 = vpop.f32.mrb[0].mxu0
        %v1452 = vadd.f32 0.0, %v1451
        %v1453 = vpop.f32.mrb[0].mxu0
        %v1454 = vadd.f32 0.0, %v1453
        %v1455 = vpop.f32.mrb[0].mxu0
        %v1456 = vadd.f32 0.0, %v1455
        %v1457 = vpop.f32.mrb[0].mxu0
        %v1458 = vadd.f32 0.0, %v1457
        %1459 = vdwg.mxu0
        %1460 = vmatprep.subr.bf16.mxu0 %v1036
        %1461 = vmatpush1.bf16.msra.mxu0 %v1035
        %1462 = vmatprep.subr.bf16.mxu0 %v1060
        %1463 = vmatpush1.bf16.msra.mxu0 %v1059
        %1464 = vmatprep.subr.bf16.mxu0 %v1084
        %1465 = vmatpush1.bf16.msra.mxu0 %v1083
        %1466 = vmatprep.subr.bf16.mxu0 %v1108
        %1467 = vmatpush1.bf16.msra.mxu0 %v1107
        %1468 = vmatprep.subr.bf16.mxu0 %v1132
        %1469 = vmatpush1.bf16.msra.mxu0 %v1131
        %1470 = vmatprep.subr.bf16.mxu0 %v1156
        %1471 = vmatpush1.bf16.msra.mxu0 %v1155
        %1472 = vmatprep.subr.bf16.mxu0 %v1180
        %1473 = vmatpush1.bf16.msra.mxu0 %v1179
        %1474 = vmatprep.subr.bf16.mxu0 %v1204
        %1475 = vmatpush1.bf16.msra.mxu0 %v1203
        %1476 = vmatprep.subr.bf16.mxu0 0
        %1477 = vmatpush1.bf16.msra.mxu0 0
        %1478 = vmatprep.subr.bf16.mxu0 0
        %1479 = vmatpush1.bf16.msra.mxu0 0
        %1480 = vmatprep.subr.bf16.mxu0 0
        %1481 = vmatpush1.bf16.msra.mxu0 0
        %1482 = vmatprep.subr.bf16.mxu0 0
        %1483 = vmatpush1.bf16.msra.mxu0 0
        %1484 = vmatprep.subr.bf16.mxu0 0
        %1485 = vmatpush1.bf16.msra.mxu0 0
        %1486 = vmatprep.subr.bf16.mxu0 0
        %1487 = vmatpush1.bf16.msra.mxu0 0
        %1488 = vmatprep.subr.bf16.mxu0 0
        %1489 = vmatpush1.bf16.msra.mxu0 0
        %1490 = vmatprep.subr.bf16.mxu0 0
        %1491 = vmatpush1.bf16.msra.mxu0 0
        %1492 = vmatprep.mubr.bf16.mxu0 0
        %1493 = vmatmul.mubr.bf16.gmra.mrb[0].mxu0 %v455
        %v1494 = vpop.f32.mrb[0].mxu0
        %v1495 = vadd.f32 0.0, %v1494
        %v1496 = vpop.f32.mrb[0].mxu0
        %v1497 = vadd.f32 0.0, %v1496
        %v1498 = vpop.f32.mrb[0].mxu0
        %v1499 = vadd.f32 0.0, %v1498
        %v1500 = vpop.f32.mrb[0].mxu0
        %v1501 = vadd.f32 0.0, %v1500
        %1502 = vdwg.mxu0
        %1503 = vmatprep.subr.bf16.mxu0 %v1038
        %1504 = vmatpush1.bf16.msra.mxu0 %v1037
        %1505 = vmatprep.subr.bf16.mxu0 %v1062
        %1506 = vmatpush1.bf16.msra.mxu0 %v1061
        %1507 = vmatprep.subr.bf16.mxu0 %v1086
        %1508 = vmatpush1.bf16.msra.mxu0 %v1085
        %1509 = vmatprep.subr.bf16.mxu0 %v1110
        %1510 = vmatpush1.bf16.msra.mxu0 %v1109
        %1511 = vmatprep.subr.bf16.mxu0 %v1134
        %1512 = vmatpush1.bf16.msra.mxu0 %v1133
        %1513 = vmatprep.subr.bf16.mxu0 %v1158
        %1514 = vmatpush1.bf16.msra.mxu0 %v1157
        %1515 = vmatprep.subr.bf16.mxu0 %v1182
        %1516 = vmatpush1.bf16.msra.mxu0 %v1181
        %1517 = vmatprep.subr.bf16.mxu0 %v1206
        %1518 = vmatpush1.bf16.msra.mxu0 %v1205
        %1519 = vmatprep.subr.bf16.mxu0 0
        %1520 = vmatpush1.bf16.msra.mxu0 0
        %1521 = vmatprep.subr.bf16.mxu0 0
        %1522 = vmatpush1.bf16.msra.mxu0 0
        %1523 = vmatprep.subr.bf16.mxu0 0
        %1524 = vmatpush1.bf16.msra.mxu0 0
        %1525 = vmatprep.subr.bf16.mxu0 0
        %1526 = vmatpush1.bf16.msra.mxu0 0
        %1527 = vmatprep.subr.bf16.mxu0 0
        %1528 = vmatpush1.bf16.msra.mxu0 0
        %1529 = vmatprep.subr.bf16.mxu0 0
        %1530 = vmatpush1.bf16.msra.mxu0 0
        %1531 = vmatprep.subr.bf16.mxu0 0
        %1532 = vmatpush1.bf16.msra.mxu0 0
        %1533 = vmatprep.subr.bf16.mxu0 0
        %1534 = vmatpush1.bf16.msra.mxu0 0
        %1535 = vmatprep.mubr.bf16.mxu0 0
        %1536 = vmatmul.mubr.bf16.gmra.mrb[0].mxu0 %v455
        %v1537 = vpop.f32.mrb[0].mxu0
        %v1538 = vadd.f32 0.0, %v1537
        %v1539 = vpop.f32.mrb[0].mxu0
        %v1540 = vadd.f32 0.0, %v1539
        %v1541 = vpop.f32.mrb[0].mxu0
        %v1542 = vadd.f32 0.0, %v1541
        %v1543 = vpop.f32.mrb[0].mxu0
        %v1544 = vadd.f32 0.0, %v1543
        %1545 = vdwg.mxu0
        %1546 = vmatprep.subr.bf16.mxu0 %v1040
        %1547 = vmatpush1.bf16.msra.mxu0 %v1039
        %1548 = vmatprep.subr.bf16.mxu0 %v1064
        %1549 = vmatpush1.bf16.msra.mxu0 %v1063
        %1550 = vmatprep.subr.bf16.mxu0 %v1088
        %1551 = vmatpush1.bf16.msra.mxu0 %v1087
        %1552 = vmatprep.subr.bf16.mxu0 %v1112
        %1553 = vmatpush1.bf16.msra.mxu0 %v1111
        %1554 = vmatprep.subr.bf16.mxu0 %v1136
        %1555 = vmatpush1.bf16.msra.mxu0 %v1135
        %1556 = vmatprep.subr.bf16.mxu0 %v1160
        %1557 = vmatpush1.bf16.msra.mxu0 %v1159
        %1558 = vmatprep.subr.bf16.mxu0 %v1184
        %1559 = vmatpush1.bf16.msra.mxu0 %v1183
        %1560 = vmatprep.subr.bf16.mxu0 %v1208
        %1561 = vmatpush1.bf16.msra.mxu0 %v1207
        %1562 = vmatprep.subr.bf16.mxu0 0
        %1563 = vmatpush1.bf16.msra.mxu0 0
        %1564 = vmatprep.subr.bf16.mxu0 0
        %1565 = vmatpush1.bf16.msra.mxu0 0
        %1566 = vmatprep.subr.bf16.mxu0 0
        %1567 = vmatpush1.bf16.msra.mxu0 0
        %1568 = vmatprep.subr.bf16.mxu0 0
        %1569 = vmatpush1.bf16.msra.mxu0 0
        %1570 = vmatprep.subr.bf16.mxu0 0
        %1571 = vmatpush1.bf16.msra.mxu0 0
        %1572 = vmatprep.subr.bf16.mxu0 0
        %1573 = vmatpush1.bf16.msra.mxu0 0
        %1574 = vmatprep.subr.bf16.mxu0 0
        %1575 = vmatpush1.bf16.msra.mxu0 0
        %1576 = vmatprep.subr.bf16.mxu0 0
        %1577 = vmatpush1.bf16.msra.mxu0 0
        %1578 = vmatprep.mubr.bf16.mxu0 0
        %1579 = vmatmul.mubr.bf16.gmra.mrb[0].mxu0 %v455
        %v1580 = vpop.f32.mrb[0].mxu0
        %v1581 = vadd.f32 0.0, %v1580
        %v1582 = vpop.f32.mrb[0].mxu0
        %v1583 = vadd.f32 0.0, %v1582
        %v1584 = vpop.f32.mrb[0].mxu0
        %v1585 = vadd.f32 0.0, %v1584
        %v1586 = vpop.f32.mrb[0].mxu0
        %v1587 = vadd.f32 0.0, %v1586
        %1588 = vdwg.mxu0
        %1589 = vmatprep.subr.bf16.mxu0 %v1042
        %1590 = vmatpush1.bf16.msra.mxu0 %v1041
        %1591 = vmatprep.subr.bf16.mxu0 %v1066
        %1592 = vmatpush1.bf16.msra.mxu0 %v1065
        %1593 = vmatprep.subr.bf16.mxu0 %v1090
        %1594 = vmatpush1.bf16.msra.mxu0 %v1089
        %1595 = vmatprep.subr.bf16.mxu0 %v1114
        %1596 = vmatpush1.bf16.msra.mxu0 %v1113
        %1597 = vmatprep.subr.bf16.mxu0 %v1138
        %1598 = vmatpush1.bf16.msra.mxu0 %v1137
        %1599 = vmatprep.subr.bf16.mxu0 %v1162
        %1600 = vmatpush1.bf16.msra.mxu0 %v1161
        %1601 = vmatprep.subr.bf16.mxu0 %v1186
        %1602 = vmatpush1.bf16.msra.mxu0 %v1185
        %1603 = vmatprep.subr.bf16.mxu0 %v1210
        %1604 = vmatpush1.bf16.msra.mxu0 %v1209
        %1605 = vmatprep.subr.bf16.mxu0 0
        %1606 = vmatpush1.bf16.msra.mxu0 0
        %1607 = vmatprep.subr.bf16.mxu0 0
        %1608 = vmatpush1.bf16.msra.mxu0 0
        %1609 = vmatprep.subr.bf16.mxu0 0
        %1610 = vmatpush1.bf16.msra.mxu0 0
        %1611 = vmatprep.subr.bf16.mxu0 0
        %1612 = vmatpush1.bf16.msra.mxu0 0
        %1613 = vmatprep.subr.bf16.mxu0 0
        %1614 = vmatpush1.bf16.msra.mxu0 0
        %1615 = vmatprep.subr.bf16.mxu0 0
        %1616 = vmatpush1.bf16.msra.mxu0 0
        %1617 = vmatprep.subr.bf16.mxu0 0
        %1618 = vmatpush1.bf16.msra.mxu0 0
        %1619 = vmatprep.subr.bf16.mxu0 0
        %1620 = vmatpush1.bf16.msra.mxu0 0
        %1621 = vmatprep.mubr.bf16.mxu0 0
        %1622 = vmatmul.mubr.bf16.gmra.mrb[0].mxu0 %v455
        %v1623 = vpop.f32.mrb[0].mxu0
        %v1624 = vadd.f32 0.0, %v1623
        %v1625 = vpop.f32.mrb[0].mxu0
        %v1626 = vadd.f32 0.0, %v1625
        %v1627 = vpop.f32.mrb[0].mxu0
        %v1628 = vadd.f32 0.0, %v1627
        %v1629 = vpop.f32.mrb[0].mxu0
        %v1630 = vadd.f32 0.0, %v1629
        %1631 = vdwg.mxu0
        %1632 = vmatprep.subr.bf16.mxu0 %v1044
        %1633 = vmatpush1.bf16.msra.mxu0 %v1043
        %1634 = vmatprep.subr.bf16.mxu0 %v1068
        %1635 = vmatpush1.bf16.msra.mxu0 %v1067
        %1636 = vmatprep.subr.bf16.mxu0 %v1092
        %1637 = vmatpush1.bf16.msra.mxu0 %v1091
        %1638 = vmatprep.subr.bf16.mxu0 %v1116
        %1639 = vmatpush1.bf16.msra.mxu0 %v1115
        %1640 = vmatprep.subr.bf16.mxu0 %v1140
        %1641 = vmatpush1.bf16.msra.mxu0 %v1139
        %1642 = vmatprep.subr.bf16.mxu0 %v1164
        %1643 = vmatpush1.bf16.msra.mxu0 %v1163
        %1644 = vmatprep.subr.bf16.mxu0 %v1188
        %1645 = vmatpush1.bf16.msra.mxu0 %v1187
        %1646 = vmatprep.subr.bf16.mxu0 %v1212
        %1647 = vmatpush1.bf16.msra.mxu0 %v1211
        %1648 = vmatprep.subr.bf16.mxu0 0
        %1649 = vmatpush1.bf16.msra.mxu0 0
        %1650 = vmatprep.subr.bf16.mxu0 0
        %1651 = vmatpush1.bf16.msra.mxu0 0
        %1652 = vmatprep.subr.bf16.mxu0 0
        %1653 = vmatpush1.bf16.msra.mxu0 0
        %1654 = vmatprep.subr.bf16.mxu0 0
        %1655 = vmatpush1.bf16.msra.mxu0 0
        %1656 = vmatprep.subr.bf16.mxu0 0
        %1657 = vmatpush1.bf16.msra.mxu0 0
        %1658 = vmatprep.subr.bf16.mxu0 0
        %1659 = vmatpush1.bf16.msra.mxu0 0
        %1660 = vmatprep.subr.bf16.mxu0 0
        %1661 = vmatpush1.bf16.msra.mxu0 0
        %1662 = vmatprep.subr.bf16.mxu0 0
        %1663 = vmatpush1.bf16.msra.mxu0 0
        %1664 = vmatprep.mubr.bf16.mxu0 0
        %1665 = vmatmul.mubr.bf16.gmra.mrb[0].mxu0 %v455
        %v1666 = vpop.f32.mrb[0].mxu0
        %v1667 = vadd.f32 0.0, %v1666
        %v1668 = vpop.f32.mrb[0].mxu0
        %v1669 = vadd.f32 0.0, %v1668
        %v1670 = vpop.f32.mrb[0].mxu0
        %v1671 = vadd.f32 0.0, %v1670
        %v1672 = vpop.f32.mrb[0].mxu0
        %v1673 = vadd.f32 0.0, %v1672
        %1674 = vdwg.mxu0
        %1675 = vmatprep.subr.bf16.mxu0 %v1046
        %1676 = vmatpush1.bf16.msra.mxu0 %v1045
        %1677 = vmatprep.subr.bf16.mxu0 %v1070
        %1678 = vmatpush1.bf16.msra.mxu0 %v1069
        %1679 = vmatprep.subr.bf16.mxu0 %v1094
        %1680 = vmatpush1.bf16.msra.mxu0 %v1093
        %1681 = vmatprep.subr.bf16.mxu0 %v1118
        %1682 = vmatpush1.bf16.msra.mxu0 %v1117
        %1683 = vmatprep.subr.bf16.mxu0 %v1142
        %1684 = vmatpush1.bf16.msra.mxu0 %v1141
        %1685 = vmatprep.subr.bf16.mxu0 %v1166
        %1686 = vmatpush1.bf16.msra.mxu0 %v1165
        %1687 = vmatprep.subr.bf16.mxu0 %v1190
        %1688 = vmatpush1.bf16.msra.mxu0 %v1189
        %1689 = vmatprep.subr.bf16.mxu0 %v1214
        %1690 = vmatpush1.bf16.msra.mxu0 %v1213
        %1691 = vmatprep.subr.bf16.mxu0 0
        %1692 = vmatpush1.bf16.msra.mxu0 0
        %1693 = vmatprep.subr.bf16.mxu0 0
        %1694 = vmatpush1.bf16.msra.mxu0 0
        %1695 = vmatprep.subr.bf16.mxu0 0
        %1696 = vmatpush1.bf16.msra.mxu0 0
        %1697 = vmatprep.subr.bf16.mxu0 0
        %1698 = vmatpush1.bf16.msra.mxu0 0
        %1699 = vmatprep.subr.bf16.mxu0 0
        %1700 = vmatpush1.bf16.msra.mxu0 0
        %1701 = vmatprep.subr.bf16.mxu0 0
        %1702 = vmatpush1.bf16.msra.mxu0 0
        %1703 = vmatprep.subr.bf16.mxu0 0
        %1704 = vmatpush1.bf16.msra.mxu0 0
        %1705 = vmatprep.subr.bf16.mxu0 0
        %1706 = vmatpush1.bf16.msra.mxu0 0
        %1707 = vmatprep.mubr.bf16.mxu0 0
        %1708 = vmatmul.mubr.bf16.gmra.mrb[0].mxu0 %v455
        %v1709 = vpop.f32.mrb[0].mxu0
        %v1710 = vadd.f32 0.0, %v1709
        %v1711 = vpop.f32.mrb[0].mxu0
        %v1712 = vadd.f32 0.0, %v1711
        %v1713 = vpop.f32.mrb[0].mxu0
        %v1714 = vadd.f32 0.0, %v1713
        %v1715 = vpop.f32.mrb[0].mxu0
        %v1716 = vadd.f32 0.0, %v1715
        %1717 = vdwg.mxu0
        %1718 = vmatprep.subr.bf16.mxu0 %v1048
        %1719 = vmatpush1.bf16.msra.mxu0 %v1047
        %1720 = vmatprep.subr.bf16.mxu0 %v1072
        %1721 = vmatpush1.bf16.msra.mxu0 %v1071
        %1722 = vmatprep.subr.bf16.mxu0 %v1096
        %1723 = vmatpush1.bf16.msra.mxu0 %v1095
        %1724 = vmatprep.subr.bf16.mxu0 %v1120
        %1725 = vmatpush1.bf16.msra.mxu0 %v1119
        %1726 = vmatprep.subr.bf16.mxu0 %v1144
        %1727 = vmatpush1.bf16.msra.mxu0 %v1143
        %1728 = vmatprep.subr.bf16.mxu0 %v1168
        %1729 = vmatpush1.bf16.msra.mxu0 %v1167
        %1730 = vmatprep.subr.bf16.mxu0 %v1192
        %1731 = vmatpush1.bf16.msra.mxu0 %v1191
        %1732 = vmatprep.subr.bf16.mxu0 %v1216
        %1733 = vmatpush1.bf16.msra.mxu0 %v1215
        %1734 = vmatprep.subr.bf16.mxu0 0
        %1735 = vmatpush1.bf16.msra.mxu0 0
        %1736 = vmatprep.subr.bf16.mxu0 0
        %1737 = vmatpush1.bf16.msra.mxu0 0
        %1738 = vmatprep.subr.bf16.mxu0 0
        %1739 = vmatpush1.bf16.msra.mxu0 0
        %1740 = vmatprep.subr.bf16.mxu0 0
        %1741 = vmatpush1.bf16.msra.mxu0 0
        %1742 = vmatprep.subr.bf16.mxu0 0
        %1743 = vmatpush1.bf16.msra.mxu0 0
        %1744 = vmatprep.subr.bf16.mxu0 0
        %1745 = vmatpush1.bf16.msra.mxu0 0
        %1746 = vmatprep.subr.bf16.mxu0 0
        %1747 = vmatpush1.bf16.msra.mxu0 0
        %1748 = vmatprep.subr.bf16.mxu0 0
        %1749 = vmatpush1.bf16.msra.mxu0 0
        %1750 = vmatprep.mubr.bf16.mxu0 0
        %1751 = vmatmul.mubr.bf16.gmra.mrb[0].mxu0 %v455
        %v1752 = vpop.f32.mrb[0].mxu0
        %v1753 = vadd.f32 0.0, %v1752
        %v1754 = vpop.f32.mrb[0].mxu0
        %v1755 = vadd.f32 0.0, %v1754
        %v1756 = vpop.f32.mrb[0].mxu0
        %v1757 = vadd.f32 0.0, %v1756
        %v1758 = vpop.f32.mrb[0].mxu0
        %v1759 = vadd.f32 0.0, %v1758
        %1760 = vdwg.mxu0
        %1761 = vmatprep.subr.bf16.mxu0 %v1050
        %1762 = vmatpush1.bf16.msra.mxu0 %v1049
        %1763 = vmatprep.subr.bf16.mxu0 %v1074
        %1764 = vmatpush1.bf16.msra.mxu0 %v1073
        %1765 = vmatprep.subr.bf16.mxu0 %v1098
        %1766 = vmatpush1.bf16.msra.mxu0 %v1097
        %1767 = vmatprep.subr.bf16.mxu0 %v1122
        %1768 = vmatpush1.bf16.msra.mxu0 %v1121
        %1769 = vmatprep.subr.bf16.mxu0 %v1146
        %1770 = vmatpush1.bf16.msra.mxu0 %v1145
        %1771 = vmatprep.subr.bf16.mxu0 %v1170
        %1772 = vmatpush1.bf16.msra.mxu0 %v1169
        %1773 = vmatprep.subr.bf16.mxu0 %v1194
        %1774 = vmatpush1.bf16.msra.mxu0 %v1193
        %1775 = vmatprep.subr.bf16.mxu0 %v1218
        %1776 = vmatpush1.bf16.msra.mxu0 %v1217
        %1777 = vmatprep.subr.bf16.mxu0 0
        %1778 = vmatpush1.bf16.msra.mxu0 0
        %1779 = vmatprep.subr.bf16.mxu0 0
        %1780 = vmatpush1.bf16.msra.mxu0 0
        %1781 = vmatprep.subr.bf16.mxu0 0
        %1782 = vmatpush1.bf16.msra.mxu0 0
        %1783 = vmatprep.subr.bf16.mxu0 0
        %1784 = vmatpush1.bf16.msra.mxu0 0
        %1785 = vmatprep.subr.bf16.mxu0 0
        %1786 = vmatpush1.bf16.msra.mxu0 0
        %1787 = vmatprep.subr.bf16.mxu0 0
        %1788 = vmatpush1.bf16.msra.mxu0 0
        %1789 = vmatprep.subr.bf16.mxu0 0
        %1790 = vmatpush1.bf16.msra.mxu0 0
        %1791 = vmatprep.subr.bf16.mxu0 0
        %1792 = vmatpush1.bf16.msra.mxu0 0
        %1793 = vmatprep.mubr.bf16.mxu0 0
        %1794 = vmatmul.mubr.bf16.gmra.mrb[0].mxu0 %v455
        %v1795 = vpop.f32.mrb[0].mxu0
        %v1796 = vadd.f32 0.0, %v1795
        %v1797 = vpop.f32.mrb[0].mxu0
        %v1798 = vadd.f32 0.0, %v1797
        %v1799 = vpop.f32.mrb[0].mxu0
        %v1800 = vadd.f32 0.0, %v1799
        %v1801 = vpop.f32.mrb[0].mxu0
        %v1802 = vadd.f32 0.0, %v1801
        %1803 = vdwg.mxu0
        %1804 = vmatprep.subr.bf16.mxu0 %v1052
        %1805 = vmatpush1.bf16.msra.mxu0 %v1051
        %1806 = vmatprep.subr.bf16.mxu0 %v1076
        %1807 = vmatpush1.bf16.msra.mxu0 %v1075
        %1808 = vmatprep.subr.bf16.mxu0 %v1100
        %1809 = vmatpush1.bf16.msra.mxu0 %v1099
        %1810 = vmatprep.subr.bf16.mxu0 %v1124
        %1811 = vmatpush1.bf16.msra.mxu0 %v1123
        %1812 = vmatprep.subr.bf16.mxu0 %v1148
        %1813 = vmatpush1.bf16.msra.mxu0 %v1147
        %1814 = vmatprep.subr.bf16.mxu0 %v1172
        %1815 = vmatpush1.bf16.msra.mxu0 %v1171
        %1816 = vmatprep.subr.bf16.mxu0 %v1196
        %1817 = vmatpush1.bf16.msra.mxu0 %v1195
        %1818 = vmatprep.subr.bf16.mxu0 %v1220
        %1819 = vmatpush1.bf16.msra.mxu0 %v1219
        %1820 = vmatprep.subr.bf16.mxu0 0
        %1821 = vmatpush1.bf16.msra.mxu0 0
        %1822 = vmatprep.subr.bf16.mxu0 0
        %1823 = vmatpush1.bf16.msra.mxu0 0
        %1824 = vmatprep.subr.bf16.mxu0 0
        %1825 = vmatpush1.bf16.msra.mxu0 0
        %1826 = vmatprep.subr.bf16.mxu0 0
        %1827 = vmatpush1.bf16.msra.mxu0 0
        %1828 = vmatprep.subr.bf16.mxu0 0
        %1829 = vmatpush1.bf16.msra.mxu0 0
        %1830 = vmatprep.subr.bf16.mxu0 0
        %1831 = vmatpush1.bf16.msra.mxu0 0
        %1832 = vmatprep.subr.bf16.mxu0 0
        %1833 = vmatpush1.bf16.msra.mxu0 0
        %1834 = vmatprep.subr.bf16.mxu0 0
        %1835 = vmatpush1.bf16.msra.mxu0 0
        %1836 = vmatprep.mubr.bf16.mxu0 0
        %1837 = vmatmul.mubr.bf16.gmra.mrb[0].mxu0 %v455
        %v1838 = vpop.f32.mrb[0].mxu0
        %v1839 = vadd.f32 0.0, %v1838
        %v1840 = vpop.f32.mrb[0].mxu0
        %v1841 = vadd.f32 0.0, %v1840
        %v1842 = vpop.f32.mrb[0].mxu0
        %v1843 = vadd.f32 0.0, %v1842
        %v1844 = vpop.f32.mrb[0].mxu0
        %v1845 = vadd.f32 0.0, %v1844
        %1846 = vdwg.mxu0
        %1847 = vmatprep.subr.bf16.mxu0 %v1054
        %1848 = vmatpush1.bf16.msra.mxu0 %v1053
        %1849 = vmatprep.subr.bf16.mxu0 %v1078
        %1850 = vmatpush1.bf16.msra.mxu0 %v1077
        %1851 = vmatprep.subr.bf16.mxu0 %v1102
        %1852 = vmatpush1.bf16.msra.mxu0 %v1101
        %1853 = vmatprep.subr.bf16.mxu0 %v1126
        %1854 = vmatpush1.bf16.msra.mxu0 %v1125
        %1855 = vmatprep.subr.bf16.mxu0 %v1150
        %1856 = vmatpush1.bf16.msra.mxu0 %v1149
        %1857 = vmatprep.subr.bf16.mxu0 %v1174
        %1858 = vmatpush1.bf16.msra.mxu0 %v1173
        %1859 = vmatprep.subr.bf16.mxu0 %v1198
        %1860 = vmatpush1.bf16.msra.mxu0 %v1197
        %1861 = vmatprep.subr.bf16.mxu0 %v1222
        %1862 = vmatpush1.bf16.msra.mxu0 %v1221
        %1863 = vmatprep.subr.bf16.mxu0 0
        %1864 = vmatpush1.bf16.msra.mxu0 0
        %1865 = vmatprep.subr.bf16.mxu0 0
        %1866 = vmatpush1.bf16.msra.mxu0 0
        %1867 = vmatprep.subr.bf16.mxu0 0
        %1868 = vmatpush1.bf16.msra.mxu0 0
        %1869 = vmatprep.subr.bf16.mxu0 0
        %1870 = vmatpush1.bf16.msra.mxu0 0
        %1871 = vmatprep.subr.bf16.mxu0 0
        %1872 = vmatpush1.bf16.msra.mxu0 0
        %1873 = vmatprep.subr.bf16.mxu0 0
        %1874 = vmatpush1.bf16.msra.mxu0 0
        %1875 = vmatprep.subr.bf16.mxu0 0
        %1876 = vmatpush1.bf16.msra.mxu0 0
        %1877 = vmatprep.subr.bf16.mxu0 0
        %1878 = vmatpush1.bf16.msra.mxu0 0
        %1879 = vmatprep.mubr.bf16.mxu0 0
        %1880 = vmatmul.mubr.bf16.gmra.mrb[0].mxu0 %v455
        %v1881 = vpop.f32.mrb[0].mxu0
        %v1882 = vadd.f32 0.0, %v1881
        %v1883 = vpop.f32.mrb[0].mxu0
        %v1884 = vadd.f32 0.0, %v1883
        %v1885 = vpop.f32.mrb[0].mxu0
        %v1886 = vadd.f32 0.0, %v1885
        %v1887 = vpop.f32.mrb[0].mxu0
        %v1888 = vadd.f32 0.0, %v1887
        %1889 = vdwg.mxu0
        %1890 = vmatprep.subr.bf16.mxu0 %v1056
        %1891 = vmatpush1.bf16.msra.mxu0 %v1055
        %1892 = vmatprep.subr.bf16.mxu0 %v1080
        %1893 = vmatpush1.bf16.msra.mxu0 %v1079
        %1894 = vmatprep.subr.bf16.mxu0 %v1104
        %1895 = vmatpush1.bf16.msra.mxu0 %v1103
        %1896 = vmatprep.subr.bf16.mxu0 %v1128
        %1897 = vmatpush1.bf16.msra.mxu0 %v1127
        %1898 = vmatprep.subr.bf16.mxu0 %v1152
        %1899 = vmatpush1.bf16.msra.mxu0 %v1151
        %1900 = vmatprep.subr.bf16.mxu0 %v1176
        %1901 = vmatpush1.bf16.msra.mxu0 %v1175
        %1902 = vmatprep.subr.bf16.mxu0 %v1200
        %1903 = vmatpush1.bf16.msra.mxu0 %v1199
        %1904 = vmatprep.subr.bf16.mxu0 %v1224
        %1905 = vmatpush1.bf16.msra.mxu0 %v1223
        %1906 = vmatprep.subr.bf16.mxu0 0
        %1907 = vmatpush1.bf16.msra.mxu0 0
        %1908 = vmatprep.subr.bf16.mxu0 0
        %1909 = vmatpush1.bf16.msra.mxu0 0
        %1910 = vmatprep.subr.bf16.mxu0 0
        %1911 = vmatpush1.bf16.msra.mxu0 0
        %1912 = vmatprep.subr.bf16.mxu0 0
        %1913 = vmatpush1.bf16.msra.mxu0 0
        %1914 = vmatprep.subr.bf16.mxu0 0
        %1915 = vmatpush1.bf16.msra.mxu0 0
        %1916 = vmatprep.subr.bf16.mxu0 0
        %1917 = vmatpush1.bf16.msra.mxu0 0
        %1918 = vmatprep.subr.bf16.mxu0 0
        %1919 = vmatpush1.bf16.msra.mxu0 0
        %1920 = vmatprep.subr.bf16.mxu0 0
        %1921 = vmatpush1.bf16.msra.mxu0 0
        %1922 = vmatprep.mubr.bf16.mxu0 0
        %1923 = vmatmul.mubr.bf16.gmra.mrb[0].mxu0 %v455
        %v1924 = vpop.f32.mrb[0].mxu0
        %v1925 = vadd.f32 0.0, %v1924
        %v1926 = vpop.f32.mrb[0].mxu0
        %v1927 = vadd.f32 0.0, %v1926
        %v1928 = vpop.f32.mrb[0].mxu0
        %v1929 = vadd.f32 0.0, %v1928
        %v1930 = vpop.f32.mrb[0].mxu0
        %v1931 = vadd.f32 0.0, %v1930
        %1932 = vdwg.mxu0
        %v1933 = vpack.c.bf16 %v1456, %v1452
        %v1934 = vpack.c.bf16 %v1458, %v1454
        %v1935 = vpack.c.bf16 %v1499, %v1495
        %v1936 = vpack.c.bf16 %v1501, %v1497
        %v1937 = vpack.c.bf16 %v1542, %v1538
        %v1938 = vpack.c.bf16 %v1544, %v1540
        %v1939 = vpack.c.bf16 %v1585, %v1581
        %v1940 = vpack.c.bf16 %v1587, %v1583
        %v1941 = vpack.c.bf16 %v1628, %v1624
        %v1942 = vpack.c.bf16 %v1630, %v1626
        %v1943 = vpack.c.bf16 %v1671, %v1667
        %v1944 = vpack.c.bf16 %v1673, %v1669
        %v1945 = vpack.c.bf16 %v1714, %v1710
        %v1946 = vpack.c.bf16 %v1716, %v1712
        %v1947 = vpack.c.bf16 %v1757, %v1753
        %v1948 = vpack.c.bf16 %v1759, %v1755
        %v1949 = vpack.c.bf16 %v1800, %v1796
        %v1950 = vpack.c.bf16 %v1802, %v1798
        %v1951 = vpack.c.bf16 %v1843, %v1839
        %v1952 = vpack.c.bf16 %v1845, %v1841
        %v1953 = vpack.c.bf16 %v1886, %v1882
        %v1954 = vpack.c.bf16 %v1888, %v1884
        %v1955 = vpack.c.bf16 %v1929, %v1925
        %v1956 = vpack.c.bf16 %v1931, %v1927
        %v1957 = vld [vmem:[%s2] sm:$0xff]
        %v1958 = vld [vmem:[%s2 + $0x8] sm:$0xff]
        %v1959 = vld [vmem:[%s2 + $0x10] sm:$0xff]
        %v1963 = vcombine.high %v1957, %v1957
        %v1965 = vunpack.c.l.s4 1966171168
        %v1966 = vunpack.c.0.s8 %v1965
        %v1967 = vlaneseq
        %v1968 = vshrl.u32 %v1967, 7
        %v1969 = vsub.s32 %v1966, %v1968
        %v1970 = vrot.slane %v1957, %v1969
        %v1972 = vunpack.c.l.s4 1966171168
        %v1973 = vunpack.c.0.s8 %v1972
        %v1974 = vlaneseq
        %v1975 = vshrl.u32 %v1974, 7
        %v1976 = vsub.s32 %v1973, %v1975
        %v1977 = vrot.slane %v1963, %v1976
        %v1978 = vcombine.high %v1970, %v1970
        %v1979 = vcombine.high %v1977, %v1977
        %v1981 = vunpack.c.l.s4 1966171168
        %v1982 = vunpack.c.0.s8 %v1981
        %v1983 = vlaneseq
        %v1984 = vshrl.u32 %v1983, 7
        %v1985 = vsub.s32 %v1982, %v1984
        %v1986 = vrot.slane %v1970, %v1985
        %v1988 = vunpack.c.l.s4 1966171168
        %v1989 = vunpack.c.0.s8 %v1988
        %v1990 = vlaneseq
        %v1991 = vshrl.u32 %v1990, 7
        %v1992 = vsub.s32 %v1989, %v1991
        %v1993 = vrot.slane %v1977, %v1992
        %v1995 = vunpack.c.l.s4 1966171168
        %v1996 = vunpack.c.0.s8 %v1995
        %v1997 = vlaneseq
        %v1998 = vshrl.u32 %v1997, 7
        %v1999 = vsub.s32 %v1996, %v1998
        %v2000 = vrot.slane %v1978, %v1999
        %v2002 = vunpack.c.l.s4 1966171168
        %v2003 = vunpack.c.0.s8 %v2002
        %v2004 = vlaneseq
        %v2005 = vshrl.u32 %v2004, 7
        %v2006 = vsub.s32 %v2003, %v2005
        %v2007 = vrot.slane %v1979, %v2006
        %v2008 = vcombine.high %v1986, %v1986
        %v2009 = vcombine.high %v1993, %v1993
        %v2010 = vcombine.high %v2000, %v2000
        %v2011 = vcombine.high %v2007, %v2007
        %v2012 = vcombine.high %v1958, %v1958
        %v2014 = vunpack.c.l.s4 1966171168
        %v2015 = vunpack.c.0.s8 %v2014
        %v2016 = vlaneseq
        %v2017 = vshrl.u32 %v2016, 7
        %v2018 = vsub.s32 %v2015, %v2017
        %v2019 = vrot.slane %v1958, %v2018
        %v2021 = vunpack.c.l.s4 1966171168
        %v2022 = vunpack.c.0.s8 %v2021
        %v2023 = vlaneseq
        %v2024 = vshrl.u32 %v2023, 7
        %v2025 = vsub.s32 %v2022, %v2024
        %v2026 = vrot.slane %v2012, %v2025
        %v2027 = vcombine.high %v2019, %v2019
        %v2028 = vcombine.high %v2026, %v2026
        %v2030 = vunpack.c.l.s4 1966171168
        %v2031 = vunpack.c.0.s8 %v2030
        %v2032 = vlaneseq
        %v2033 = vshrl.u32 %v2032, 7
        %v2034 = vsub.s32 %v2031, %v2033
        %v2035 = vrot.slane %v2019, %v2034
        %v2037 = vunpack.c.l.s4 1966171168
        %v2038 = vunpack.c.0.s8 %v2037
        %v2039 = vlaneseq
        %v2040 = vshrl.u32 %v2039, 7
        %v2041 = vsub.s32 %v2038, %v2040
        %v2042 = vrot.slane %v2026, %v2041
        %v2044 = vunpack.c.l.s4 1966171168
        %v2045 = vunpack.c.0.s8 %v2044
        %v2046 = vlaneseq
        %v2047 = vshrl.u32 %v2046, 7
        %v2048 = vsub.s32 %v2045, %v2047
        %v2049 = vrot.slane %v2027, %v2048
        %v2051 = vunpack.c.l.s4 1966171168
        %v2052 = vunpack.c.0.s8 %v2051
        %v2053 = vlaneseq
        %v2054 = vshrl.u32 %v2053, 7
        %v2055 = vsub.s32 %v2052, %v2054
        %v2056 = vrot.slane %v2028, %v2055
        %v2057 = vcombine.high %v2035, %v2035
        %v2058 = vcombine.high %v2042, %v2042
        %v2059 = vcombine.high %v2049, %v2049
        %v2060 = vcombine.high %v2056, %v2056
        %v2061 = vcombine.high %v1959, %v1959
        %v2063 = vunpack.c.l.s4 1966171168
        %v2064 = vunpack.c.0.s8 %v2063
        %v2065 = vlaneseq
        %v2066 = vshrl.u32 %v2065, 7
        %v2067 = vsub.s32 %v2064, %v2066
        %v2068 = vrot.slane %v1959, %v2067
        %v2070 = vunpack.c.l.s4 1966171168
        %v2071 = vunpack.c.0.s8 %v2070
        %v2072 = vlaneseq
        %v2073 = vshrl.u32 %v2072, 7
        %v2074 = vsub.s32 %v2071, %v2073
        %v2075 = vrot.slane %v2061, %v2074
        %v2076 = vcombine.high %v2068, %v2068
        %v2077 = vcombine.high %v2075, %v2075
        %v2079 = vunpack.c.l.s4 1966171168
        %v2080 = vunpack.c.0.s8 %v2079
        %v2081 = vlaneseq
        %v2082 = vshrl.u32 %v2081, 7
        %v2083 = vsub.s32 %v2080, %v2082
        %v2084 = vrot.slane %v2068, %v2083
        %v2086 = vunpack.c.l.s4 1966171168
        %v2087 = vunpack.c.0.s8 %v2086
        %v2088 = vlaneseq
        %v2089 = vshrl.u32 %v2088, 7
        %v2090 = vsub.s32 %v2087, %v2089
        %v2091 = vrot.slane %v2075, %v2090
        %v2093 = vunpack.c.l.s4 1966171168
        %v2094 = vunpack.c.0.s8 %v2093
        %v2095 = vlaneseq
        %v2096 = vshrl.u32 %v2095, 7
        %v2097 = vsub.s32 %v2094, %v2096
        %v2098 = vrot.slane %v2076, %v2097
        %v2100 = vunpack.c.l.s4 1966171168
        %v2101 = vunpack.c.0.s8 %v2100
        %v2102 = vlaneseq
        %v2103 = vshrl.u32 %v2102, 7
        %v2104 = vsub.s32 %v2101, %v2103
        %v2105 = vrot.slane %v2077, %v2104
        %v2106 = vcombine.high %v2084, %v2084
        %v2107 = vcombine.high %v2091, %v2091
        %v2108 = vcombine.high %v2098, %v2098
        %v2109 = vcombine.high %v2105, %v2105
        %v2111 = vpack.i.b16 %v1986, %v1986
        %v2113 = vlaneseq
        %v2114 = vshrl.u32 %v2113, 7
        %v2115 = vsub.s32 0, %v2114
        %v2116 = vrot.slane %v2111, %v2115
        %v2118 = vpack.i.b16 %v2000, %v2000
        %v2120 = vlaneseq
        %v2121 = vshrl.u32 %v2120, 7
        %v2122 = vsub.s32 0, %v2121
        %v2123 = vrot.slane %v2118, %v2122
        %v2125 = vpack.i.b16 %v2008, %v2008
        %v2127 = vlaneseq
        %v2128 = vshrl.u32 %v2127, 7
        %v2129 = vsub.s32 0, %v2128
        %v2130 = vrot.slane %v2125, %v2129
        %v2132 = vpack.i.b16 %v2010, %v2010
        %v2134 = vlaneseq
        %v2135 = vshrl.u32 %v2134, 7
        %v2136 = vsub.s32 0, %v2135
        %v2137 = vrot.slane %v2132, %v2136
        %v2139 = vpack.i.b16 %v1993, %v1993
        %v2141 = vlaneseq
        %v2142 = vshrl.u32 %v2141, 7
        %v2143 = vsub.s32 0, %v2142
        %v2144 = vrot.slane %v2139, %v2143
        %v2146 = vpack.i.b16 %v2007, %v2007
        %v2148 = vlaneseq
        %v2149 = vshrl.u32 %v2148, 7
        %v2150 = vsub.s32 0, %v2149
        %v2151 = vrot.slane %v2146, %v2150
        %v2153 = vpack.i.b16 %v2009, %v2009
        %v2155 = vlaneseq
        %v2156 = vshrl.u32 %v2155, 7
        %v2157 = vsub.s32 0, %v2156
        %v2158 = vrot.slane %v2153, %v2157
        %v2160 = vpack.i.b16 %v2011, %v2011
        %v2162 = vlaneseq
        %v2163 = vshrl.u32 %v2162, 7
        %v2164 = vsub.s32 0, %v2163
        %v2165 = vrot.slane %v2160, %v2164
        %v2167 = vpack.i.b16 %v2035, %v2035
        %v2169 = vlaneseq
        %v2170 = vshrl.u32 %v2169, 7
        %v2171 = vsub.s32 0, %v2170
        %v2172 = vrot.slane %v2167, %v2171
        %v2174 = vpack.i.b16 %v2049, %v2049
        %v2176 = vlaneseq
        %v2177 = vshrl.u32 %v2176, 7
        %v2178 = vsub.s32 0, %v2177
        %v2179 = vrot.slane %v2174, %v2178
        %v2181 = vpack.i.b16 %v2057, %v2057
        %v2183 = vlaneseq
        %v2184 = vshrl.u32 %v2183, 7
        %v2185 = vsub.s32 0, %v2184
        %v2186 = vrot.slane %v2181, %v2185
        %v2188 = vpack.i.b16 %v2059, %v2059
        %v2190 = vlaneseq
        %v2191 = vshrl.u32 %v2190, 7
        %v2192 = vsub.s32 0, %v2191
        %v2193 = vrot.slane %v2188, %v2192
        %v2195 = vpack.i.b16 %v2042, %v2042
        %v2197 = vlaneseq
        %v2198 = vshrl.u32 %v2197, 7
        %v2199 = vsub.s32 0, %v2198
        %v2200 = vrot.slane %v2195, %v2199
        %v2202 = vpack.i.b16 %v2056, %v2056
        %v2204 = vlaneseq
        %v2205 = vshrl.u32 %v2204, 7
        %v2206 = vsub.s32 0, %v2205
        %v2207 = vrot.slane %v2202, %v2206
        %v2209 = vpack.i.b16 %v2058, %v2058
        %v2211 = vlaneseq
        %v2212 = vshrl.u32 %v2211, 7
        %v2213 = vsub.s32 0, %v2212
        %v2214 = vrot.slane %v2209, %v2213
        %v2216 = vpack.i.b16 %v2060, %v2060
        %v2218 = vlaneseq
        %v2219 = vshrl.u32 %v2218, 7
        %v2220 = vsub.s32 0, %v2219
        %v2221 = vrot.slane %v2216, %v2220
        %v2223 = vpack.i.b16 %v2084, %v2084
        %v2225 = vlaneseq
        %v2226 = vshrl.u32 %v2225, 7
        %v2227 = vsub.s32 0, %v2226
        %v2228 = vrot.slane %v2223, %v2227
        %v2230 = vpack.i.b16 %v2098, %v2098
        %v2232 = vlaneseq
        %v2233 = vshrl.u32 %v2232, 7
        %v2234 = vsub.s32 0, %v2233
        %v2235 = vrot.slane %v2230, %v2234
        %v2237 = vpack.i.b16 %v2106, %v2106
        %v2239 = vlaneseq
        %v2240 = vshrl.u32 %v2239, 7
        %v2241 = vsub.s32 0, %v2240
        %v2242 = vrot.slane %v2237, %v2241
        %v2244 = vpack.i.b16 %v2108, %v2108
        %v2246 = vlaneseq
        %v2247 = vshrl.u32 %v2246, 7
        %v2248 = vsub.s32 0, %v2247
        %v2249 = vrot.slane %v2244, %v2248
        %v2251 = vpack.i.b16 %v2091, %v2091
        %v2253 = vlaneseq
        %v2254 = vshrl.u32 %v2253, 7
        %v2255 = vsub.s32 0, %v2254
        %v2256 = vrot.slane %v2251, %v2255
        %v2258 = vpack.i.b16 %v2105, %v2105
        %v2260 = vlaneseq
        %v2261 = vshrl.u32 %v2260, 7
        %v2262 = vsub.s32 0, %v2261
        %v2263 = vrot.slane %v2258, %v2262
        %v2265 = vpack.i.b16 %v2107, %v2107
        %v2267 = vlaneseq
        %v2268 = vshrl.u32 %v2267, 7
        %v2269 = vsub.s32 0, %v2268
        %v2270 = vrot.slane %v2265, %v2269
        %v2272 = vpack.i.b16 %v2109, %v2109
        %v2274 = vlaneseq
        %v2275 = vshrl.u32 %v2274, 7
        %v2276 = vsub.s32 0, %v2275
        %v2277 = vrot.slane %v2272, %v2276
        %v2278 = vadd.bf16 %v1933, %v2116
        %v2279 = vadd.bf16 %v1934, %v2123
        %v2280 = vadd.bf16 %v1935, %v2130
        %v2281 = vadd.bf16 %v1936, %v2137
        %v2282 = vadd.bf16 %v1937, %v2144
        %v2283 = vadd.bf16 %v1938, %v2151
        %v2284 = vadd.bf16 %v1939, %v2158
        %v2285 = vadd.bf16 %v1940, %v2165
        %v2286 = vadd.bf16 %v1941, %v2172
        %v2287 = vadd.bf16 %v1942, %v2179
        %v2288 = vadd.bf16 %v1943, %v2186
        %v2289 = vadd.bf16 %v1944, %v2193
        %v2290 = vadd.bf16 %v1945, %v2200
        %v2291 = vadd.bf16 %v1946, %v2207
        %v2292 = vadd.bf16 %v1947, %v2214
        %v2293 = vadd.bf16 %v1948, %v2221
        %v2294 = vadd.bf16 %v1949, %v2228
        %v2295 = vadd.bf16 %v1950, %v2235
        %v2296 = vadd.bf16 %v1951, %v2242
        %v2297 = vadd.bf16 %v1952, %v2249
        %v2298 = vadd.bf16 %v1953, %v2256
        %v2299 = vadd.bf16 %v1954, %v2263
        %v2300 = vadd.bf16 %v1955, %v2270
        %v2301 = vadd.bf16 %v1956, %v2277
        %vm2302 = vcmp.ge.bf16.partialorder %v2278, 0
        %vm2303 = vcmp.ge.bf16.partialorder %v2279, 0
        %vm2304 = vcmp.ge.bf16.partialorder %v2280, 0
        %vm2305 = vcmp.ge.bf16.partialorder %v2281, 0
        %vm2306 = vcmp.ge.bf16.partialorder %v2282, 0
        %vm2307 = vcmp.ge.bf16.partialorder %v2283, 0
        %vm2308 = vcmp.ge.bf16.partialorder %v2284, 0
        %vm2309 = vcmp.ge.bf16.partialorder %v2285, 0
        %vm2310 = vcmp.ge.bf16.partialorder %v2286, 0
        %vm2311 = vcmp.ge.bf16.partialorder %v2287, 0
        %vm2312 = vcmp.ge.bf16.partialorder %v2288, 0
        %vm2313 = vcmp.ge.bf16.partialorder %v2289, 0
        %vm2314 = vcmp.ge.bf16.partialorder %v2290, 0
        %vm2315 = vcmp.ge.bf16.partialorder %v2291, 0
        %vm2316 = vcmp.ge.bf16.partialorder %v2292, 0
        %vm2317 = vcmp.ge.bf16.partialorder %v2293, 0
        %vm2318 = vcmp.ge.bf16.partialorder %v2294, 0
        %vm2319 = vcmp.ge.bf16.partialorder %v2295, 0
        %vm2320 = vcmp.ge.bf16.partialorder %v2296, 0
        %vm2321 = vcmp.ge.bf16.partialorder %v2297, 0
        %vm2322 = vcmp.ge.bf16.partialorder %v2298, 0
        %vm2323 = vcmp.ge.bf16.partialorder %v2299, 0
        %vm2324 = vcmp.ge.bf16.partialorder %v2300, 0
        %vm2325 = vcmp.ge.bf16.partialorder %v2301, 0
        %v2326 = vmul.bf16 %v2278, 1009007652
        %v2327 = vmul.bf16 %v2279, 1009007652
        %v2328 = vmul.bf16 %v2280, 1009007652
        %v2329 = vmul.bf16 %v2281, 1009007652
        %v2330 = vmul.bf16 %v2282, 1009007652
        %v2331 = vmul.bf16 %v2283, 1009007652
        %v2332 = vmul.bf16 %v2284, 1009007652
        %v2333 = vmul.bf16 %v2285, 1009007652
        %v2334 = vmul.bf16 %v2286, 1009007652
        %v2335 = vmul.bf16 %v2287, 1009007652
        %v2336 = vmul.bf16 %v2288, 1009007652
        %v2337 = vmul.bf16 %v2289, 1009007652
        %v2338 = vmul.bf16 %v2290, 1009007652
        %v2339 = vmul.bf16 %v2291, 1009007652
        %v2340 = vmul.bf16 %v2292, 1009007652
        %v2341 = vmul.bf16 %v2293, 1009007652
        %v2342 = vmul.bf16 %v2294, 1009007652
        %v2343 = vmul.bf16 %v2295, 1009007652
        %v2344 = vmul.bf16 %v2296, 1009007652
        %v2345 = vmul.bf16 %v2297, 1009007652
        %v2346 = vmul.bf16 %v2298, 1009007652
        %v2347 = vmul.bf16 %v2299, 1009007652
        %v2348 = vmul.bf16 %v2300, 1009007652
        %v2349 = vmul.bf16 %v2301, 1009007652
        %v2350 = vsel %vm2302, %v2278, %v2326
        %v2351 = vsel %vm2303, %v2279, %v2327
        %v2352 = vsel %vm2304, %v2280, %v2328
        %v2353 = vsel %vm2305, %v2281, %v2329
        %v2354 = vsel %vm2306, %v2282, %v2330
        %v2355 = vsel %vm2307, %v2283, %v2331
        %v2356 = vsel %vm2308, %v2284, %v2332
        %v2357 = vsel %vm2309, %v2285, %v2333
        %v2358 = vsel %vm2310, %v2286, %v2334
        %v2359 = vsel %vm2311, %v2287, %v2335
        %v2360 = vsel %vm2312, %v2288, %v2336
        %v2361 = vsel %vm2313, %v2289, %v2337
        %v2362 = vsel %vm2314, %v2290, %v2338
        %v2363 = vsel %vm2315, %v2291, %v2339
        %v2364 = vsel %vm2316, %v2292, %v2340
        %v2365 = vsel %vm2317, %v2293, %v2341
        %v2366 = vsel %vm2318, %v2294, %v2342
        %v2367 = vsel %vm2319, %v2295, %v2343
        %v2368 = vsel %vm2320, %v2296, %v2344
        %v2369 = vsel %vm2321, %v2297, %v2345
        %v2370 = vsel %vm2322, %v2298, %v2346
        %v2371 = vsel %vm2323, %v2299, %v2347
        %v2372 = vsel %vm2324, %v2300, %v2348
        %v2373 = vsel %vm2325, %v2301, %v2349
        %v2374 = vld [vmem:[%s3] sm:$0xf]
        %v2375 = vld [vmem:[%s3 + $0x4] sm:$0xf]
        %v2376 = vld [vmem:[%s3 + $0x8] sm:$0xf]
        %v2377 = vld [vmem:[%s3 + $0xc] sm:$0xf]
        %v2378 = vld [vmem:[%s3 + $0x10] sm:$0xf]
        %v2379 = vld [vmem:[%s3 + $0x14] sm:$0xf]
        %v2380 = vld [vmem:[%s3 + $0x18] sm:$0xf]
        %v2381 = vld [vmem:[%s3 + $0x1c] sm:$0xf]
        %v2382 = vld [vmem:[%s3 + $0x20] sm:$0xf]
        %v2383 = vld [vmem:[%s3 + $0x24] sm:$0xf]
        %v2384 = vld [vmem:[%s3 + $0x28] sm:$0xf]
        %v2385 = vld [vmem:[%s3 + $0x2c] sm:$0xf]
        %v2386 = vld [vmem:[%s3 + $0x30] sm:$0xf]
        %v2387 = vld [vmem:[%s3 + $0x34] sm:$0xf]
        %v2388 = vld [vmem:[%s3 + $0x38] sm:$0xf]
        %v2389 = vld [vmem:[%s3 + $0x3c] sm:$0xf]
        %v2390 = vld [vmem:[%s3 + $0x40] sm:$0xf]
        %v2391 = vld [vmem:[%s3 + $0x44] sm:$0xf]
        %v2392 = vld [vmem:[%s3 + $0x48] sm:$0xf]
        %v2393 = vld [vmem:[%s3 + $0x4c] sm:$0xf]
        %v2394 = vld [vmem:[%s3 + $0x50] sm:$0xf]
        %v2395 = vld [vmem:[%s3 + $0x54] sm:$0xf]
        %v2396 = vld [vmem:[%s3 + $0x58] sm:$0xf]
        %v2397 = vld [vmem:[%s3 + $0x5c] sm:$0xf]
        %v2398 = vld [vmem:[%s3 + $0x60] sm:$0xf]
        %v2399 = vld [vmem:[%s3 + $0x64] sm:$0xf]
        %v2400 = vld [vmem:[%s3 + $0x68] sm:$0xf]
        %v2401 = vld [vmem:[%s3 + $0x6c] sm:$0xf]
        %v2402 = vld [vmem:[%s3 + $0x70] sm:$0xf]
        %v2403 = vld [vmem:[%s3 + $0x74] sm:$0xf]
        %v2404 = vld [vmem:[%s3 + $0x78] sm:$0xf]
        %v2405 = vld [vmem:[%s3 + $0x7c] sm:$0xf]
        %v2406 = vld [vmem:[%s3 + $0x80] sm:$0xf]
        %v2407 = vld [vmem:[%s3 + $0x84] sm:$0xf]
        %v2408 = vld [vmem:[%s3 + $0x88] sm:$0xf]
        %v2409 = vld [vmem:[%s3 + $0x8c] sm:$0xf]
        %v2410 = vld [vmem:[%s3 + $0x90] sm:$0xf]
        %v2411 = vld [vmem:[%s3 + $0x94] sm:$0xf]
        %v2412 = vld [vmem:[%s3 + $0x98] sm:$0xf]
        %v2413 = vld [vmem:[%s3 + $0x9c] sm:$0xf]
        %v2414 = vld [vmem:[%s3 + $0xa0] sm:$0xf]
        %v2415 = vld [vmem:[%s3 + $0xa4] sm:$0xf]
        %v2416 = vld [vmem:[%s3 + $0xa8] sm:$0xf]
        %v2417 = vld [vmem:[%s3 + $0xac] sm:$0xf]
        %v2418 = vld [vmem:[%s3 + $0xb0] sm:$0xf]
        %v2419 = vld [vmem:[%s3 + $0xb4] sm:$0xf]
        %v2420 = vld [vmem:[%s3 + $0xb8] sm:$0xf]
        %v2421 = vld [vmem:[%s3 + $0xbc] sm:$0xf]
        %v2422 = vld [vmem:[%s3 + $0xc0] sm:$0xf]
        %v2423 = vld [vmem:[%s3 + $0xc4] sm:$0xf]
        %v2424 = vld [vmem:[%s3 + $0xc8] sm:$0xf]
        %v2425 = vld [vmem:[%s3 + $0xcc] sm:$0xf]
        %v2426 = vld [vmem:[%s3 + $0xd0] sm:$0xf]
        %v2427 = vld [vmem:[%s3 + $0xd4] sm:$0xf]
        %v2428 = vld [vmem:[%s3 + $0xd8] sm:$0xf]
        %v2429 = vld [vmem:[%s3 + $0xdc] sm:$0xf]
        %v2430 = vld [vmem:[%s3 + $0xe0] sm:$0xf]
        %v2431 = vld [vmem:[%s3 + $0xe4] sm:$0xf]
        %v2432 = vld [vmem:[%s3 + $0xe8] sm:$0xf]
        %v2433 = vld [vmem:[%s3 + $0xec] sm:$0xf]
        %v2434 = vld [vmem:[%s3 + $0xf0] sm:$0xf]
        %v2435 = vld [vmem:[%s3 + $0xf4] sm:$0xf]
        %v2436 = vld [vmem:[%s3 + $0xf8] sm:$0xf]
        %v2437 = vld [vmem:[%s3 + $0xfc] sm:$0xf]
        %v2438 = vld [vmem:[%s3 + $0x100] sm:$0xf]
        %v2439 = vld [vmem:[%s3 + $0x104] sm:$0xf]
        %v2440 = vld [vmem:[%s3 + $0x108] sm:$0xf]
        %v2441 = vld [vmem:[%s3 + $0x10c] sm:$0xf]
        %v2442 = vld [vmem:[%s3 + $0x110] sm:$0xf]
        %v2443 = vld [vmem:[%s3 + $0x114] sm:$0xf]
        %v2444 = vld [vmem:[%s3 + $0x118] sm:$0xf]
        %v2445 = vld [vmem:[%s3 + $0x11c] sm:$0xf]
        %v2446 = vld [vmem:[%s3 + $0x120] sm:$0xf]
        %v2447 = vld [vmem:[%s3 + $0x124] sm:$0xf]
        %v2448 = vld [vmem:[%s3 + $0x128] sm:$0xf]
        %v2449 = vld [vmem:[%s3 + $0x12c] sm:$0xf]
        %v2450 = vld [vmem:[%s3 + $0x130] sm:$0xf]
        %v2451 = vld [vmem:[%s3 + $0x134] sm:$0xf]
        %v2452 = vld [vmem:[%s3 + $0x138] sm:$0xf]
        %v2453 = vld [vmem:[%s3 + $0x13c] sm:$0xf]
        %v2454 = vld [vmem:[%s3 + $0x140] sm:$0xf]
        %v2455 = vld [vmem:[%s3 + $0x144] sm:$0xf]
        %v2456 = vld [vmem:[%s3 + $0x148] sm:$0xf]
        %v2457 = vld [vmem:[%s3 + $0x14c] sm:$0xf]
        %v2458 = vld [vmem:[%s3 + $0x150] sm:$0xf]
        %v2459 = vld [vmem:[%s3 + $0x154] sm:$0xf]
        %v2460 = vld [vmem:[%s3 + $0x158] sm:$0xf]
        %v2461 = vld [vmem:[%s3 + $0x15c] sm:$0xf]
        %v2462 = vld [vmem:[%s3 + $0x160] sm:$0xf]
        %v2463 = vld [vmem:[%s3 + $0x164] sm:$0xf]
        %v2464 = vld [vmem:[%s3 + $0x168] sm:$0xf]
        %v2465 = vld [vmem:[%s3 + $0x16c] sm:$0xf]
        %v2466 = vld [vmem:[%s3 + $0x170] sm:$0xf]
        %v2467 = vld [vmem:[%s3 + $0x174] sm:$0xf]
        %v2468 = vld [vmem:[%s3 + $0x178] sm:$0xf]
        %v2469 = vld [vmem:[%s3 + $0x17c] sm:$0xf]
        %v2470 = vld [vmem:[%s3 + $0x180] sm:$0xf]
        %v2471 = vld [vmem:[%s3 + $0x184] sm:$0xf]
        %v2472 = vld [vmem:[%s3 + $0x188] sm:$0xf]
        %v2473 = vld [vmem:[%s3 + $0x18c] sm:$0xf]
        %v2474 = vld [vmem:[%s3 + $0x190] sm:$0xf]
        %v2475 = vld [vmem:[%s3 + $0x194] sm:$0xf]
        %v2476 = vld [vmem:[%s3 + $0x198] sm:$0xf]
        %v2477 = vld [vmem:[%s3 + $0x19c] sm:$0xf]
        %v2478 = vld [vmem:[%s3 + $0x1a0] sm:$0xf]
        %v2479 = vld [vmem:[%s3 + $0x1a4] sm:$0xf]
        %v2480 = vld [vmem:[%s3 + $0x1a8] sm:$0xf]
        %v2481 = vld [vmem:[%s3 + $0x1ac] sm:$0xf]
        %v2482 = vld [vmem:[%s3 + $0x1b0] sm:$0xf]
        %v2483 = vld [vmem:[%s3 + $0x1b4] sm:$0xf]
        %v2484 = vld [vmem:[%s3 + $0x1b8] sm:$0xf]
        %v2485 = vld [vmem:[%s3 + $0x1bc] sm:$0xf]
        %v2486 = vld [vmem:[%s3 + $0x1c0] sm:$0xf]
        %v2487 = vld [vmem:[%s3 + $0x1c4] sm:$0xf]
        %v2488 = vld [vmem:[%s3 + $0x1c8] sm:$0xf]
        %v2489 = vld [vmem:[%s3 + $0x1cc] sm:$0xf]
        %v2490 = vld [vmem:[%s3 + $0x1d0] sm:$0xf]
        %v2491 = vld [vmem:[%s3 + $0x1d4] sm:$0xf]
        %v2492 = vld [vmem:[%s3 + $0x1d8] sm:$0xf]
        %v2493 = vld [vmem:[%s3 + $0x1dc] sm:$0xf]
        %v2494 = vld [vmem:[%s3 + $0x1e0] sm:$0xf]
        %v2495 = vld [vmem:[%s3 + $0x1e4] sm:$0xf]
        %v2496 = vld [vmem:[%s3 + $0x1e8] sm:$0xf]
        %v2497 = vld [vmem:[%s3 + $0x1ec] sm:$0xf]
        %v2498 = vld [vmem:[%s3 + $0x1f0] sm:$0xf]
        %v2499 = vld [vmem:[%s3 + $0x1f4] sm:$0xf]
        %v2500 = vld [vmem:[%s3 + $0x1f8] sm:$0xf]
        %v2501 = vld [vmem:[%s3 + $0x1fc] sm:$0xf]
        %v2502 = vld [vmem:[%s3 + $0x200] sm:$0xf]
        %v2503 = vld [vmem:[%s3 + $0x204] sm:$0xf]
        %v2504 = vld [vmem:[%s3 + $0x208] sm:$0xf]
        %v2505 = vld [vmem:[%s3 + $0x20c] sm:$0xf]
        %v2506 = vld [vmem:[%s3 + $0x210] sm:$0xf]
        %v2507 = vld [vmem:[%s3 + $0x214] sm:$0xf]
        %v2508 = vld [vmem:[%s3 + $0x218] sm:$0xf]
        %v2509 = vld [vmem:[%s3 + $0x21c] sm:$0xf]
        %v2510 = vld [vmem:[%s3 + $0x220] sm:$0xf]
        %v2511 = vld [vmem:[%s3 + $0x224] sm:$0xf]
        %v2512 = vld [vmem:[%s3 + $0x228] sm:$0xf]
        %v2513 = vld [vmem:[%s3 + $0x22c] sm:$0xf]
        %v2514 = vld [vmem:[%s3 + $0x230] sm:$0xf]
        %v2515 = vld [vmem:[%s3 + $0x234] sm:$0xf]
        %v2516 = vld [vmem:[%s3 + $0x238] sm:$0xf]
        %v2517 = vld [vmem:[%s3 + $0x23c] sm:$0xf]
        %v2518 = vld [vmem:[%s3 + $0x240] sm:$0xf]
        %v2519 = vld [vmem:[%s3 + $0x244] sm:$0xf]
        %v2520 = vld [vmem:[%s3 + $0x248] sm:$0xf]
        %v2521 = vld [vmem:[%s3 + $0x24c] sm:$0xf]
        %v2522 = vld [vmem:[%s3 + $0x250] sm:$0xf]
        %v2523 = vld [vmem:[%s3 + $0x254] sm:$0xf]
        %v2524 = vld [vmem:[%s3 + $0x258] sm:$0xf]
        %v2525 = vld [vmem:[%s3 + $0x25c] sm:$0xf]
        %v2526 = vld [vmem:[%s3 + $0x260] sm:$0xf]
        %v2527 = vld [vmem:[%s3 + $0x264] sm:$0xf]
        %v2528 = vld [vmem:[%s3 + $0x268] sm:$0xf]
        %v2529 = vld [vmem:[%s3 + $0x26c] sm:$0xf]
        %v2530 = vld [vmem:[%s3 + $0x270] sm:$0xf]
        %v2531 = vld [vmem:[%s3 + $0x274] sm:$0xf]
        %v2532 = vld [vmem:[%s3 + $0x278] sm:$0xf]
        %v2533 = vld [vmem:[%s3 + $0x27c] sm:$0xf]
        %v2534 = vld [vmem:[%s3 + $0x280] sm:$0xf]
        %v2535 = vld [vmem:[%s3 + $0x284] sm:$0xf]
        %v2536 = vld [vmem:[%s3 + $0x288] sm:$0xf]
        %v2537 = vld [vmem:[%s3 + $0x28c] sm:$0xf]
        %v2538 = vld [vmem:[%s3 + $0x290] sm:$0xf]
        %v2539 = vld [vmem:[%s3 + $0x294] sm:$0xf]
        %v2540 = vld [vmem:[%s3 + $0x298] sm:$0xf]
        %v2541 = vld [vmem:[%s3 + $0x29c] sm:$0xf]
        %v2542 = vld [vmem:[%s3 + $0x2a0] sm:$0xf]
        %v2543 = vld [vmem:[%s3 + $0x2a4] sm:$0xf]
        %v2544 = vld [vmem:[%s3 + $0x2a8] sm:$0xf]
        %v2545 = vld [vmem:[%s3 + $0x2ac] sm:$0xf]
        %v2546 = vld [vmem:[%s3 + $0x2b0] sm:$0xf]
        %v2547 = vld [vmem:[%s3 + $0x2b4] sm:$0xf]
        %v2548 = vld [vmem:[%s3 + $0x2b8] sm:$0xf]
        %v2549 = vld [vmem:[%s3 + $0x2bc] sm:$0xf]
        %v2550 = vld [vmem:[%s3 + $0x2c0] sm:$0xf]
        %v2551 = vld [vmem:[%s3 + $0x2c4] sm:$0xf]
        %v2552 = vld [vmem:[%s3 + $0x2c8] sm:$0xf]
        %v2553 = vld [vmem:[%s3 + $0x2cc] sm:$0xf]
        %v2554 = vld [vmem:[%s3 + $0x2d0] sm:$0xf]
        %v2555 = vld [vmem:[%s3 + $0x2d4] sm:$0xf]
        %v2556 = vld [vmem:[%s3 + $0x2d8] sm:$0xf]
        %v2557 = vld [vmem:[%s3 + $0x2dc] sm:$0xf]
        %v2558 = vld [vmem:[%s3 + $0x2e0] sm:$0xf]
        %v2559 = vld [vmem:[%s3 + $0x2e4] sm:$0xf]
        %v2560 = vld [vmem:[%s3 + $0x2e8] sm:$0xf]
        %v2561 = vld [vmem:[%s3 + $0x2ec] sm:$0xf]
        %v2562 = vld [vmem:[%s3 + $0x2f0] sm:$0xf]
        %v2563 = vld [vmem:[%s3 + $0x2f4] sm:$0xf]
        %v2564 = vld [vmem:[%s3 + $0x2f8] sm:$0xf]
        %v2565 = vld [vmem:[%s3 + $0x2fc] sm:$0xf]
        %v2566 = vld [vmem:[%s3 + $0x300] sm:$0xf]
        %v2567 = vld [vmem:[%s3 + $0x304] sm:$0xf]
        %v2568 = vld [vmem:[%s3 + $0x308] sm:$0xf]
        %v2569 = vld [vmem:[%s3 + $0x30c] sm:$0xf]
        %v2570 = vld [vmem:[%s3 + $0x310] sm:$0xf]
        %v2571 = vld [vmem:[%s3 + $0x314] sm:$0xf]
        %v2572 = vld [vmem:[%s3 + $0x318] sm:$0xf]
        %v2573 = vld [vmem:[%s3 + $0x31c] sm:$0xf]
        %v2574 = vld [vmem:[%s3 + $0x320] sm:$0xf]
        %v2575 = vld [vmem:[%s3 + $0x324] sm:$0xf]
        %v2576 = vld [vmem:[%s3 + $0x328] sm:$0xf]
        %v2577 = vld [vmem:[%s3 + $0x32c] sm:$0xf]
        %v2578 = vld [vmem:[%s3 + $0x330] sm:$0xf]
        %v2579 = vld [vmem:[%s3 + $0x334] sm:$0xf]
        %v2580 = vld [vmem:[%s3 + $0x338] sm:$0xf]
        %v2581 = vld [vmem:[%s3 + $0x33c] sm:$0xf]
        %v2582 = vld [vmem:[%s3 + $0x340] sm:$0xf]
        %v2583 = vld [vmem:[%s3 + $0x344] sm:$0xf]
        %v2584 = vld [vmem:[%s3 + $0x348] sm:$0xf]
        %v2585 = vld [vmem:[%s3 + $0x34c] sm:$0xf]
        %v2586 = vld [vmem:[%s3 + $0x350] sm:$0xf]
        %v2587 = vld [vmem:[%s3 + $0x354] sm:$0xf]
        %v2588 = vld [vmem:[%s3 + $0x358] sm:$0xf]
        %v2589 = vld [vmem:[%s3 + $0x35c] sm:$0xf]
        %v2590 = vld [vmem:[%s3 + $0x360] sm:$0xf]
        %v2591 = vld [vmem:[%s3 + $0x364] sm:$0xf]
        %v2592 = vld [vmem:[%s3 + $0x368] sm:$0xf]
        %v2593 = vld [vmem:[%s3 + $0x36c] sm:$0xf]
        %v2594 = vld [vmem:[%s3 + $0x370] sm:$0xf]
        %v2595 = vld [vmem:[%s3 + $0x374] sm:$0xf]
        %v2596 = vld [vmem:[%s3 + $0x378] sm:$0xf]
        %v2597 = vld [vmem:[%s3 + $0x37c] sm:$0xf]
        %v2598 = vld [vmem:[%s3 + $0x380] sm:$0xf]
        %v2599 = vld [vmem:[%s3 + $0x384] sm:$0xf]
        %v2600 = vld [vmem:[%s3 + $0x388] sm:$0xf]
        %v2601 = vld [vmem:[%s3 + $0x38c] sm:$0xf]
        %v2602 = vld [vmem:[%s3 + $0x390] sm:$0xf]
        %v2603 = vld [vmem:[%s3 + $0x394] sm:$0xf]
        %v2604 = vld [vmem:[%s3 + $0x398] sm:$0xf]
        %v2605 = vld [vmem:[%s3 + $0x39c] sm:$0xf]
        %v2606 = vld [vmem:[%s3 + $0x3a0] sm:$0xf]
        %v2607 = vld [vmem:[%s3 + $0x3a4] sm:$0xf]
        %v2608 = vld [vmem:[%s3 + $0x3a8] sm:$0xf]
        %v2609 = vld [vmem:[%s3 + $0x3ac] sm:$0xf]
        %v2610 = vld [vmem:[%s3 + $0x3b0] sm:$0xf]
        %v2611 = vld [vmem:[%s3 + $0x3b4] sm:$0xf]
        %v2612 = vld [vmem:[%s3 + $0x3b8] sm:$0xf]
        %v2613 = vld [vmem:[%s3 + $0x3bc] sm:$0xf]
        %v2614 = vld [vmem:[%s3 + $0x3c0] sm:$0xf]
        %v2615 = vld [vmem:[%s3 + $0x3c4] sm:$0xf]
        %v2616 = vld [vmem:[%s3 + $0x3c8] sm:$0xf]
        %v2617 = vld [vmem:[%s3 + $0x3cc] sm:$0xf]
        %v2618 = vld [vmem:[%s3 + $0x3d0] sm:$0xf]
        %v2619 = vld [vmem:[%s3 + $0x3d4] sm:$0xf]
        %v2620 = vld [vmem:[%s3 + $0x3d8] sm:$0xf]
        %v2621 = vld [vmem:[%s3 + $0x3dc] sm:$0xf]
        %v2622 = vld [vmem:[%s3 + $0x3e0] sm:$0xf]
        %v2623 = vld [vmem:[%s3 + $0x3e4] sm:$0xf]
        %v2624 = vld [vmem:[%s3 + $0x3e8] sm:$0xf]
        %v2625 = vld [vmem:[%s3 + $0x3ec] sm:$0xf]
        %v2626 = vld [vmem:[%s3 + $0x3f0] sm:$0xf]
        %v2627 = vld [vmem:[%s3 + $0x3f4] sm:$0xf]
        %v2628 = vld [vmem:[%s3 + $0x3f8] sm:$0xf]
        %v2629 = vld [vmem:[%s3 + $0x3fc] sm:$0xf]
        %v2630 = vld [vmem:[%s3 + $0x400] sm:$0xf]
        %v2631 = vld [vmem:[%s3 + $0x404] sm:$0xf]
        %v2632 = vld [vmem:[%s3 + $0x408] sm:$0xf]
        %v2633 = vld [vmem:[%s3 + $0x40c] sm:$0xf]
        %v2634 = vld [vmem:[%s3 + $0x410] sm:$0xf]
        %v2635 = vld [vmem:[%s3 + $0x414] sm:$0xf]
        %v2636 = vld [vmem:[%s3 + $0x418] sm:$0xf]
        %v2637 = vld [vmem:[%s3 + $0x41c] sm:$0xf]
        %v2638 = vld [vmem:[%s3 + $0x420] sm:$0xf]
        %v2639 = vld [vmem:[%s3 + $0x424] sm:$0xf]
        %v2640 = vld [vmem:[%s3 + $0x428] sm:$0xf]
        %v2641 = vld [vmem:[%s3 + $0x42c] sm:$0xf]
        %v2642 = vld [vmem:[%s3 + $0x430] sm:$0xf]
        %v2643 = vld [vmem:[%s3 + $0x434] sm:$0xf]
        %v2644 = vld [vmem:[%s3 + $0x438] sm:$0xf]
        %v2645 = vld [vmem:[%s3 + $0x43c] sm:$0xf]
        %v2646 = vld [vmem:[%s3 + $0x440] sm:$0xf]
        %v2647 = vld [vmem:[%s3 + $0x444] sm:$0xf]
        %v2648 = vld [vmem:[%s3 + $0x448] sm:$0xf]
        %v2649 = vld [vmem:[%s3 + $0x44c] sm:$0xf]
        %v2650 = vld [vmem:[%s3 + $0x450] sm:$0xf]
        %v2651 = vld [vmem:[%s3 + $0x454] sm:$0xf]
        %v2652 = vld [vmem:[%s3 + $0x458] sm:$0xf]
        %v2653 = vld [vmem:[%s3 + $0x45c] sm:$0xf]
        %v2654 = vld [vmem:[%s3 + $0x460] sm:$0xf]
        %v2655 = vld [vmem:[%s3 + $0x464] sm:$0xf]
        %v2656 = vld [vmem:[%s3 + $0x468] sm:$0xf]
        %v2657 = vld [vmem:[%s3 + $0x46c] sm:$0xf]
        %v2658 = vld [vmem:[%s3 + $0x470] sm:$0xf]
        %v2659 = vld [vmem:[%s3 + $0x474] sm:$0xf]
        %v2660 = vld [vmem:[%s3 + $0x478] sm:$0xf]
        %v2661 = vld [vmem:[%s3 + $0x47c] sm:$0xf]
        %v2662 = vld [vmem:[%s3 + $0x480] sm:$0xf]
        %v2663 = vld [vmem:[%s3 + $0x484] sm:$0xf]
        %v2664 = vld [vmem:[%s3 + $0x488] sm:$0xf]
        %v2665 = vld [vmem:[%s3 + $0x48c] sm:$0xf]
        %v2666 = vld [vmem:[%s3 + $0x490] sm:$0xf]
        %v2667 = vld [vmem:[%s3 + $0x494] sm:$0xf]
        %v2668 = vld [vmem:[%s3 + $0x498] sm:$0xf]
        %v2669 = vld [vmem:[%s3 + $0x49c] sm:$0xf]
        %v2670 = vld [vmem:[%s3 + $0x4a0] sm:$0xf]
        %v2671 = vld [vmem:[%s3 + $0x4a4] sm:$0xf]
        %v2672 = vld [vmem:[%s3 + $0x4a8] sm:$0xf]
        %v2673 = vld [vmem:[%s3 + $0x4ac] sm:$0xf]
        %v2674 = vld [vmem:[%s3 + $0x4b0] sm:$0xf]
        %v2675 = vld [vmem:[%s3 + $0x4b4] sm:$0xf]
        %v2676 = vld [vmem:[%s3 + $0x4b8] sm:$0xf]
        %v2677 = vld [vmem:[%s3 + $0x4bc] sm:$0xf]
        %v2678 = vld [vmem:[%s3 + $0x4c0] sm:$0xf]
        %v2679 = vld [vmem:[%s3 + $0x4c4] sm:$0xf]
        %v2680 = vld [vmem:[%s3 + $0x4c8] sm:$0xf]
        %v2681 = vld [vmem:[%s3 + $0x4cc] sm:$0xf]
        %v2682 = vld [vmem:[%s3 + $0x4d0] sm:$0xf]
        %v2683 = vld [vmem:[%s3 + $0x4d4] sm:$0xf]
        %v2684 = vld [vmem:[%s3 + $0x4d8] sm:$0xf]
        %v2685 = vld [vmem:[%s3 + $0x4dc] sm:$0xf]
        %v2686 = vld [vmem:[%s3 + $0x4e0] sm:$0xf]
        %v2687 = vld [vmem:[%s3 + $0x4e4] sm:$0xf]
        %v2688 = vld [vmem:[%s3 + $0x4e8] sm:$0xf]
        %v2689 = vld [vmem:[%s3 + $0x4ec] sm:$0xf]
        %v2690 = vld [vmem:[%s3 + $0x4f0] sm:$0xf]
        %v2691 = vld [vmem:[%s3 + $0x4f4] sm:$0xf]
        %v2692 = vld [vmem:[%s3 + $0x4f8] sm:$0xf]
        %v2693 = vld [vmem:[%s3 + $0x4fc] sm:$0xf]
        %v2694 = vld [vmem:[%s3 + $0x500] sm:$0xf]
        %v2695 = vld [vmem:[%s3 + $0x504] sm:$0xf]
        %v2696 = vld [vmem:[%s3 + $0x508] sm:$0xf]
        %v2697 = vld [vmem:[%s3 + $0x50c] sm:$0xf]
        %v2698 = vld [vmem:[%s3 + $0x510] sm:$0xf]
        %v2699 = vld [vmem:[%s3 + $0x514] sm:$0xf]
        %v2700 = vld [vmem:[%s3 + $0x518] sm:$0xf]
        %v2701 = vld [vmem:[%s3 + $0x51c] sm:$0xf]
        %v2702 = vld [vmem:[%s3 + $0x520] sm:$0xf]
        %v2703 = vld [vmem:[%s3 + $0x524] sm:$0xf]
        %v2704 = vld [vmem:[%s3 + $0x528] sm:$0xf]
        %v2705 = vld [vmem:[%s3 + $0x52c] sm:$0xf]
        %v2706 = vld [vmem:[%s3 + $0x530] sm:$0xf]
        %v2707 = vld [vmem:[%s3 + $0x534] sm:$0xf]
        %v2708 = vld [vmem:[%s3 + $0x538] sm:$0xf]
        %v2709 = vld [vmem:[%s3 + $0x53c] sm:$0xf]
        %v2710 = vld [vmem:[%s3 + $0x540] sm:$0xf]
        %v2711 = vld [vmem:[%s3 + $0x544] sm:$0xf]
        %v2712 = vld [vmem:[%s3 + $0x548] sm:$0xf]
        %v2713 = vld [vmem:[%s3 + $0x54c] sm:$0xf]
        %v2714 = vld [vmem:[%s3 + $0x550] sm:$0xf]
        %v2715 = vld [vmem:[%s3 + $0x554] sm:$0xf]
        %v2716 = vld [vmem:[%s3 + $0x558] sm:$0xf]
        %v2717 = vld [vmem:[%s3 + $0x55c] sm:$0xf]
        %v2718 = vld [vmem:[%s3 + $0x560] sm:$0xf]
        %v2719 = vld [vmem:[%s3 + $0x564] sm:$0xf]
        %v2720 = vld [vmem:[%s3 + $0x568] sm:$0xf]
        %v2721 = vld [vmem:[%s3 + $0x56c] sm:$0xf]
        %v2722 = vld [vmem:[%s3 + $0x570] sm:$0xf]
        %v2723 = vld [vmem:[%s3 + $0x574] sm:$0xf]
        %v2724 = vld [vmem:[%s3 + $0x578] sm:$0xf]
        %v2725 = vld [vmem:[%s3 + $0x57c] sm:$0xf]
        %v2726 = vld [vmem:[%s3 + $0x580] sm:$0xf]
        %v2727 = vld [vmem:[%s3 + $0x584] sm:$0xf]
        %v2728 = vld [vmem:[%s3 + $0x588] sm:$0xf]
        %v2729 = vld [vmem:[%s3 + $0x58c] sm:$0xf]
        %v2730 = vld [vmem:[%s3 + $0x590] sm:$0xf]
        %v2731 = vld [vmem:[%s3 + $0x594] sm:$0xf]
        %v2732 = vld [vmem:[%s3 + $0x598] sm:$0xf]
        %v2733 = vld [vmem:[%s3 + $0x59c] sm:$0xf]
        %v2734 = vld [vmem:[%s3 + $0x5a0] sm:$0xf]
        %v2735 = vld [vmem:[%s3 + $0x5a4] sm:$0xf]
        %v2736 = vld [vmem:[%s3 + $0x5a8] sm:$0xf]
        %v2737 = vld [vmem:[%s3 + $0x5ac] sm:$0xf]
        %v2738 = vld [vmem:[%s3 + $0x5b0] sm:$0xf]
        %v2739 = vld [vmem:[%s3 + $0x5b4] sm:$0xf]
        %v2740 = vld [vmem:[%s3 + $0x5b8] sm:$0xf]
        %v2741 = vld [vmem:[%s3 + $0x5bc] sm:$0xf]
        %v2742 = vld [vmem:[%s3 + $0x5c0] sm:$0xf]
        %v2743 = vld [vmem:[%s3 + $0x5c4] sm:$0xf]
        %v2744 = vld [vmem:[%s3 + $0x5c8] sm:$0xf]
        %v2745 = vld [vmem:[%s3 + $0x5cc] sm:$0xf]
        %v2746 = vld [vmem:[%s3 + $0x5d0] sm:$0xf]
        %v2747 = vld [vmem:[%s3 + $0x5d4] sm:$0xf]
        %v2748 = vld [vmem:[%s3 + $0x5d8] sm:$0xf]
        %v2749 = vld [vmem:[%s3 + $0x5dc] sm:$0xf]
        %v2750 = vld [vmem:[%s3 + $0x5e0] sm:$0xf]
        %v2751 = vld [vmem:[%s3 + $0x5e4] sm:$0xf]
        %v2752 = vld [vmem:[%s3 + $0x5e8] sm:$0xf]
        %v2753 = vld [vmem:[%s3 + $0x5ec] sm:$0xf]
        %v2754 = vld [vmem:[%s3 + $0x5f0] sm:$0xf]
        %v2755 = vld [vmem:[%s3 + $0x5f4] sm:$0xf]
        %v2756 = vld [vmem:[%s3 + $0x5f8] sm:$0xf]
        %v2757 = vld [vmem:[%s3 + $0x5fc] sm:$0xf]
        %v2758 = vld [vmem:[#allocation2] sm:$0x1]
        %v2760 = vlaneseq
        %v2761 = vshrl.u32 %v2760, 7
        %v2762 = vsub.s32 0, %v2761
        %v2763 = vrot.slane %v2758, %v2762
        %v3149 = vunpack.c.l.b16 %v2374
        %v3150 = vunpack.c.l.b16 %v2375
        %v3151 = vunpack.c.l.b16 %v2376
        %v3152 = vunpack.c.l.b16 %v2377
        %v3153 = vunpack.c.l.b16 %v2378
        %v3154 = vunpack.c.l.b16 %v2379
        %v3155 = vunpack.c.l.b16 %v2380
        %v3156 = vunpack.c.l.b16 %v2381
        %v3157 = vunpack.c.l.b16 %v2382
        %v3158 = vunpack.c.l.b16 %v2383
        %v3159 = vunpack.c.l.b16 %v2384
        %v3160 = vunpack.c.l.b16 %v2385
        %v3161 = vunpack.c.l.b16 %v2386
        %v3162 = vunpack.c.l.b16 %v2387
        %v3163 = vunpack.c.l.b16 %v2388
        %v3164 = vunpack.c.l.b16 %v2389
        %v3165 = vunpack.c.l.b16 %v2390
        %v3166 = vunpack.c.l.b16 %v2391
        %v3167 = vunpack.c.l.b16 %v2392
        %v3168 = vunpack.c.l.b16 %v2393
        %v3169 = vunpack.c.l.b16 %v2394
        %v3170 = vunpack.c.l.b16 %v2395
        %v3171 = vunpack.c.l.b16 %v2396
        %v3172 = vunpack.c.l.b16 %v2397
        %v3173 = vunpack.c.l.b16 %v2398
        %v3174 = vunpack.c.l.b16 %v2399
        %v3175 = vunpack.c.l.b16 %v2400
        %v3176 = vunpack.c.l.b16 %v2401
        %v3177 = vunpack.c.l.b16 %v2402
        %v3178 = vunpack.c.l.b16 %v2403
        %v3179 = vunpack.c.l.b16 %v2404
        %v3180 = vunpack.c.l.b16 %v2405
        %v3181 = vunpack.c.l.b16 %v2406
        %v3182 = vunpack.c.l.b16 %v2407
        %v3183 = vunpack.c.l.b16 %v2408
        %v3184 = vunpack.c.l.b16 %v2409
        %v3185 = vunpack.c.l.b16 %v2410
        %v3186 = vunpack.c.l.b16 %v2411
        %v3187 = vunpack.c.l.b16 %v2412
        %v3188 = vunpack.c.l.b16 %v2413
        %v3189 = vunpack.c.l.b16 %v2414
        %v3190 = vunpack.c.l.b16 %v2415
        %v3191 = vunpack.c.l.b16 %v2416
        %v3192 = vunpack.c.l.b16 %v2417
        %v3193 = vunpack.c.l.b16 %v2418
        %v3194 = vunpack.c.l.b16 %v2419
        %v3195 = vunpack.c.l.b16 %v2420
        %v3196 = vunpack.c.l.b16 %v2421
        %v3197 = vunpack.c.l.b16 %v2422
        %v3198 = vunpack.c.l.b16 %v2423
        %v3199 = vunpack.c.l.b16 %v2424
        %v3200 = vunpack.c.l.b16 %v2425
        %v3201 = vunpack.c.l.b16 %v2426
        %v3202 = vunpack.c.l.b16 %v2427
        %v3203 = vunpack.c.l.b16 %v2428
        %v3204 = vunpack.c.l.b16 %v2429
        %v3205 = vunpack.c.l.b16 %v2430
        %v3206 = vunpack.c.l.b16 %v2431
        %v3207 = vunpack.c.l.b16 %v2432
        %v3208 = vunpack.c.l.b16 %v2433
        %v3209 = vunpack.c.l.b16 %v2434
        %v3210 = vunpack.c.l.b16 %v2435
        %v3211 = vunpack.c.l.b16 %v2436
        %v3212 = vunpack.c.l.b16 %v2437
        %v3213 = vunpack.c.l.b16 %v2438
        %v3214 = vunpack.c.l.b16 %v2439
        %v3215 = vunpack.c.l.b16 %v2440
        %v3216 = vunpack.c.l.b16 %v2441
        %v3217 = vunpack.c.l.b16 %v2442
        %v3218 = vunpack.c.l.b16 %v2443
        %v3219 = vunpack.c.l.b16 %v2444
        %v3220 = vunpack.c.l.b16 %v2445
        %v3221 = vunpack.c.l.b16 %v2446
        %v3222 = vunpack.c.l.b16 %v2447
        %v3223 = vunpack.c.l.b16 %v2448
        %v3224 = vunpack.c.l.b16 %v2449
        %v3225 = vunpack.c.l.b16 %v2450
        %v3226 = vunpack.c.l.b16 %v2451
        %v3227 = vunpack.c.l.b16 %v2452
        %v3228 = vunpack.c.l.b16 %v2453
        %v3229 = vunpack.c.l.b16 %v2454
        %v3230 = vunpack.c.l.b16 %v2455
        %v3231 = vunpack.c.l.b16 %v2456
        %v3232 = vunpack.c.l.b16 %v2457
        %v3233 = vunpack.c.l.b16 %v2458
        %v3234 = vunpack.c.l.b16 %v2459
        %v3235 = vunpack.c.l.b16 %v2460
        %v3236 = vunpack.c.l.b16 %v2461
        %v3237 = vunpack.c.l.b16 %v2462
        %v3238 = vunpack.c.l.b16 %v2463
        %v3239 = vunpack.c.l.b16 %v2464
        %v3240 = vunpack.c.l.b16 %v2465
        %v3241 = vunpack.c.l.b16 %v2466
        %v3242 = vunpack.c.l.b16 %v2467
        %v3243 = vunpack.c.l.b16 %v2468
        %v3244 = vunpack.c.l.b16 %v2469
        %v3245 = vunpack.c.l.b16 %v2470
        %v3246 = vunpack.c.l.b16 %v2471
        %v3247 = vunpack.c.l.b16 %v2472
        %v3248 = vunpack.c.l.b16 %v2473
        %v3249 = vunpack.c.l.b16 %v2474
        %v3250 = vunpack.c.l.b16 %v2475
        %v3251 = vunpack.c.l.b16 %v2476
        %v3252 = vunpack.c.l.b16 %v2477
        %v3253 = vunpack.c.l.b16 %v2478
        %v3254 = vunpack.c.l.b16 %v2479
        %v3255 = vunpack.c.l.b16 %v2480
        %v3256 = vunpack.c.l.b16 %v2481
        %v3257 = vunpack.c.l.b16 %v2482
        %v3258 = vunpack.c.l.b16 %v2483
        %v3259 = vunpack.c.l.b16 %v2484
        %v3260 = vunpack.c.l.b16 %v2485
        %v3261 = vunpack.c.l.b16 %v2486
        %v3262 = vunpack.c.l.b16 %v2487
        %v3263 = vunpack.c.l.b16 %v2488
        %v3264 = vunpack.c.l.b16 %v2489
        %v3265 = vunpack.c.l.b16 %v2490
        %v3266 = vunpack.c.l.b16 %v2491
        %v3267 = vunpack.c.l.b16 %v2492
        %v3268 = vunpack.c.l.b16 %v2493
        %v3269 = vunpack.c.l.b16 %v2494
        %v3270 = vunpack.c.l.b16 %v2495
        %v3271 = vunpack.c.l.b16 %v2496
        %v3272 = vunpack.c.l.b16 %v2497
        %v3273 = vunpack.c.l.b16 %v2498
        %v3274 = vunpack.c.l.b16 %v2499
        %v3275 = vunpack.c.l.b16 %v2500
        %v3276 = vunpack.c.l.b16 %v2501
        %v3277 = vunpack.c.l.b16 %v2502
        %v3278 = vunpack.c.l.b16 %v2503
        %v3279 = vunpack.c.l.b16 %v2504
        %v3280 = vunpack.c.l.b16 %v2505
        %v3281 = vunpack.c.l.b16 %v2506
        %v3282 = vunpack.c.l.b16 %v2507
        %v3283 = vunpack.c.l.b16 %v2508
        %v3284 = vunpack.c.l.b16 %v2509
        %v3285 = vunpack.c.l.b16 %v2510
        %v3286 = vunpack.c.l.b16 %v2511
        %v3287 = vunpack.c.l.b16 %v2512
        %v3288 = vunpack.c.l.b16 %v2513
        %v3289 = vunpack.c.l.b16 %v2514
        %v3290 = vunpack.c.l.b16 %v2515
        %v3291 = vunpack.c.l.b16 %v2516
        %v3292 = vunpack.c.l.b16 %v2517
        %v3293 = vunpack.c.l.b16 %v2518
        %v3294 = vunpack.c.l.b16 %v2519
        %v3295 = vunpack.c.l.b16 %v2520
        %v3296 = vunpack.c.l.b16 %v2521
        %v3297 = vunpack.c.l.b16 %v2522
        %v3298 = vunpack.c.l.b16 %v2523
        %v3299 = vunpack.c.l.b16 %v2524
        %v3300 = vunpack.c.l.b16 %v2525
        %v3301 = vunpack.c.l.b16 %v2526
        %v3302 = vunpack.c.l.b16 %v2527
        %v3303 = vunpack.c.l.b16 %v2528
        %v3304 = vunpack.c.l.b16 %v2529
        %v3305 = vunpack.c.l.b16 %v2530
        %v3306 = vunpack.c.l.b16 %v2531
        %v3307 = vunpack.c.l.b16 %v2532
        %v3308 = vunpack.c.l.b16 %v2533
        %v3309 = vunpack.c.l.b16 %v2534
        %v3310 = vunpack.c.l.b16 %v2535
        %v3311 = vunpack.c.l.b16 %v2536
        %v3312 = vunpack.c.l.b16 %v2537
        %v3313 = vunpack.c.l.b16 %v2538
        %v3314 = vunpack.c.l.b16 %v2539
        %v3315 = vunpack.c.l.b16 %v2540
        %v3316 = vunpack.c.l.b16 %v2541
        %v3317 = vunpack.c.l.b16 %v2542
        %v3318 = vunpack.c.l.b16 %v2543
        %v3319 = vunpack.c.l.b16 %v2544
        %v3320 = vunpack.c.l.b16 %v2545
        %v3321 = vunpack.c.l.b16 %v2546
        %v3322 = vunpack.c.l.b16 %v2547
        %v3323 = vunpack.c.l.b16 %v2548
        %v3324 = vunpack.c.l.b16 %v2549
        %v3325 = vunpack.c.l.b16 %v2550
        %v3326 = vunpack.c.l.b16 %v2551
        %v3327 = vunpack.c.l.b16 %v2552
        %v3328 = vunpack.c.l.b16 %v2553
        %v3329 = vunpack.c.l.b16 %v2554
        %v3330 = vunpack.c.l.b16 %v2555
        %v3331 = vunpack.c.l.b16 %v2556
        %v3332 = vunpack.c.l.b16 %v2557
        %v3333 = vunpack.c.l.b16 %v2558
        %v3334 = vunpack.c.l.b16 %v2559
        %v3335 = vunpack.c.l.b16 %v2560
        %v3336 = vunpack.c.l.b16 %v2561
        %v3337 = vunpack.c.l.b16 %v2562
        %v3338 = vunpack.c.l.b16 %v2563
        %v3339 = vunpack.c.l.b16 %v2564
        %v3340 = vunpack.c.l.b16 %v2565
        %v3341 = vunpack.c.l.b16 %v2566
        %v3342 = vunpack.c.l.b16 %v2567
        %v3343 = vunpack.c.l.b16 %v2568
        %v3344 = vunpack.c.l.b16 %v2569
        %v3345 = vunpack.c.l.b16 %v2570
        %v3346 = vunpack.c.l.b16 %v2571
        %v3347 = vunpack.c.l.b16 %v2572
        %v3348 = vunpack.c.l.b16 %v2573
        %v3349 = vunpack.c.l.b16 %v2574
        %v3350 = vunpack.c.l.b16 %v2575
        %v3351 = vunpack.c.l.b16 %v2576
        %v3352 = vunpack.c.l.b16 %v2577
        %v3353 = vunpack.c.l.b16 %v2578
        %v3354 = vunpack.c.l.b16 %v2579
        %v3355 = vunpack.c.l.b16 %v2580
        %v3356 = vunpack.c.l.b16 %v2581
        %v3357 = vunpack.c.l.b16 %v2582
        %v3358 = vunpack.c.l.b16 %v2583
        %v3359 = vunpack.c.l.b16 %v2584
        %v3360 = vunpack.c.l.b16 %v2585
        %v3361 = vunpack.c.l.b16 %v2586
        %v3362 = vunpack.c.l.b16 %v2587
        %v3363 = vunpack.c.l.b16 %v2588
        %v3364 = vunpack.c.l.b16 %v2589
        %v3365 = vunpack.c.l.b16 %v2590
        %v3366 = vunpack.c.l.b16 %v2591
        %v3367 = vunpack.c.l.b16 %v2592
        %v3368 = vunpack.c.l.b16 %v2593
        %v3369 = vunpack.c.l.b16 %v2594
        %v3370 = vunpack.c.l.b16 %v2595
        %v3371 = vunpack.c.l.b16 %v2596
        %v3372 = vunpack.c.l.b16 %v2597
        %v3373 = vunpack.c.l.b16 %v2598
        %v3374 = vunpack.c.l.b16 %v2599
        %v3375 = vunpack.c.l.b16 %v2600
        %v3376 = vunpack.c.l.b16 %v2601
        %v3377 = vunpack.c.l.b16 %v2602
        %v3378 = vunpack.c.l.b16 %v2603
        %v3379 = vunpack.c.l.b16 %v2604
        %v3380 = vunpack.c.l.b16 %v2605
        %v3381 = vunpack.c.l.b16 %v2606
        %v3382 = vunpack.c.l.b16 %v2607
        %v3383 = vunpack.c.l.b16 %v2608
        %v3384 = vunpack.c.l.b16 %v2609
        %v3385 = vunpack.c.l.b16 %v2610
        %v3386 = vunpack.c.l.b16 %v2611
        %v3387 = vunpack.c.l.b16 %v2612
        %v3388 = vunpack.c.l.b16 %v2613
        %v3389 = vunpack.c.l.b16 %v2614
        %v3390 = vunpack.c.l.b16 %v2615
        %v3391 = vunpack.c.l.b16 %v2616
        %v3392 = vunpack.c.l.b16 %v2617
        %v3393 = vunpack.c.l.b16 %v2618
        %v3394 = vunpack.c.l.b16 %v2619
        %v3395 = vunpack.c.l.b16 %v2620
        %v3396 = vunpack.c.l.b16 %v2621
        %v3397 = vunpack.c.l.b16 %v2622
        %v3398 = vunpack.c.l.b16 %v2623
        %v3399 = vunpack.c.l.b16 %v2624
        %v3400 = vunpack.c.l.b16 %v2625
        %v3401 = vunpack.c.l.b16 %v2626
        %v3402 = vunpack.c.l.b16 %v2627
        %v3403 = vunpack.c.l.b16 %v2628
        %v3404 = vunpack.c.l.b16 %v2629
        %v3405 = vunpack.c.l.b16 %v2630
        %v3406 = vunpack.c.l.b16 %v2631
        %v3407 = vunpack.c.l.b16 %v2632
        %v3408 = vunpack.c.l.b16 %v2633
        %v3409 = vunpack.c.l.b16 %v2634
        %v3410 = vunpack.c.l.b16 %v2635
        %v3411 = vunpack.c.l.b16 %v2636
        %v3412 = vunpack.c.l.b16 %v2637
        %v3413 = vunpack.c.l.b16 %v2638
        %v3414 = vunpack.c.l.b16 %v2639
        %v3415 = vunpack.c.l.b16 %v2640
        %v3416 = vunpack.c.l.b16 %v2641
        %v3417 = vunpack.c.l.b16 %v2642
        %v3418 = vunpack.c.l.b16 %v2643
        %v3419 = vunpack.c.l.b16 %v2644
        %v3420 = vunpack.c.l.b16 %v2645
        %v3421 = vunpack.c.l.b16 %v2646
        %v3422 = vunpack.c.l.b16 %v2647
        %v3423 = vunpack.c.l.b16 %v2648
        %v3424 = vunpack.c.l.b16 %v2649
        %v3425 = vunpack.c.l.b16 %v2650
        %v3426 = vunpack.c.l.b16 %v2651
        %v3427 = vunpack.c.l.b16 %v2652
        %v3428 = vunpack.c.l.b16 %v2653
        %v3429 = vunpack.c.l.b16 %v2654
        %v3430 = vunpack.c.l.b16 %v2655
        %v3431 = vunpack.c.l.b16 %v2656
        %v3432 = vunpack.c.l.b16 %v2657
        %v3433 = vunpack.c.l.b16 %v2658
        %v3434 = vunpack.c.l.b16 %v2659
        %v3435 = vunpack.c.l.b16 %v2660
        %v3436 = vunpack.c.l.b16 %v2661
        %v3437 = vunpack.c.l.b16 %v2662
        %v3438 = vunpack.c.l.b16 %v2663
        %v3439 = vunpack.c.l.b16 %v2664
        %v3440 = vunpack.c.l.b16 %v2665
        %v3441 = vunpack.c.l.b16 %v2666
        %v3442 = vunpack.c.l.b16 %v2667
        %v3443 = vunpack.c.l.b16 %v2668
        %v3444 = vunpack.c.l.b16 %v2669
        %v3445 = vunpack.c.l.b16 %v2670
        %v3446 = vunpack.c.l.b16 %v2671
        %v3447 = vunpack.c.l.b16 %v2672
        %v3448 = vunpack.c.l.b16 %v2673
        %v3449 = vunpack.c.l.b16 %v2674
        %v3450 = vunpack.c.l.b16 %v2675
        %v3451 = vunpack.c.l.b16 %v2676
        %v3452 = vunpack.c.l.b16 %v2677
        %v3453 = vunpack.c.l.b16 %v2678
        %v3454 = vunpack.c.l.b16 %v2679
        %v3455 = vunpack.c.l.b16 %v2680
        %v3456 = vunpack.c.l.b16 %v2681
        %v3457 = vunpack.c.l.b16 %v2682
        %v3458 = vunpack.c.l.b16 %v2683
        %v3459 = vunpack.c.l.b16 %v2684
        %v3460 = vunpack.c.l.b16 %v2685
        %v3461 = vunpack.c.l.b16 %v2686
        %v3462 = vunpack.c.l.b16 %v2687
        %v3463 = vunpack.c.l.b16 %v2688
        %v3464 = vunpack.c.l.b16 %v2689
        %v3465 = vunpack.c.l.b16 %v2690
        %v3466 = vunpack.c.l.b16 %v2691
        %v3467 = vunpack.c.l.b16 %v2692
        %v3468 = vunpack.c.l.b16 %v2693
        %v3469 = vunpack.c.l.b16 %v2694
        %v3470 = vunpack.c.l.b16 %v2695
        %v3471 = vunpack.c.l.b16 %v2696
        %v3472 = vunpack.c.l.b16 %v2697
        %v3473 = vunpack.c.l.b16 %v2698
        %v3474 = vunpack.c.l.b16 %v2699
        %v3475 = vunpack.c.l.b16 %v2700
        %v3476 = vunpack.c.l.b16 %v2701
        %v3477 = vunpack.c.l.b16 %v2702
        %v3478 = vunpack.c.l.b16 %v2703
        %v3479 = vunpack.c.l.b16 %v2704
        %v3480 = vunpack.c.l.b16 %v2705
        %v3481 = vunpack.c.l.b16 %v2706
        %v3482 = vunpack.c.l.b16 %v2707
        %v3483 = vunpack.c.l.b16 %v2708
        %v3484 = vunpack.c.l.b16 %v2709
        %v3485 = vunpack.c.l.b16 %v2710
        %v3486 = vunpack.c.l.b16 %v2711
        %v3487 = vunpack.c.l.b16 %v2712
        %v3488 = vunpack.c.l.b16 %v2713
        %v3489 = vunpack.c.l.b16 %v2714
        %v3490 = vunpack.c.l.b16 %v2715
        %v3491 = vunpack.c.l.b16 %v2716
        %v3492 = vunpack.c.l.b16 %v2717
        %v3493 = vunpack.c.l.b16 %v2718
        %v3494 = vunpack.c.l.b16 %v2719
        %v3495 = vunpack.c.l.b16 %v2720
        %v3496 = vunpack.c.l.b16 %v2721
        %v3497 = vunpack.c.l.b16 %v2722
        %v3498 = vunpack.c.l.b16 %v2723
        %v3499 = vunpack.c.l.b16 %v2724
        %v3500 = vunpack.c.l.b16 %v2725
        %v3501 = vunpack.c.l.b16 %v2726
        %v3502 = vunpack.c.l.b16 %v2727
        %v3503 = vunpack.c.l.b16 %v2728
        %v3504 = vunpack.c.l.b16 %v2729
        %v3505 = vunpack.c.l.b16 %v2730
        %v3506 = vunpack.c.l.b16 %v2731
        %v3507 = vunpack.c.l.b16 %v2732
        %v3508 = vunpack.c.l.b16 %v2733
        %v3509 = vunpack.c.l.b16 %v2734
        %v3510 = vunpack.c.l.b16 %v2735
        %v3511 = vunpack.c.l.b16 %v2736
        %v3512 = vunpack.c.l.b16 %v2737
        %v3513 = vunpack.c.l.b16 %v2738
        %v3514 = vunpack.c.l.b16 %v2739
        %v3515 = vunpack.c.l.b16 %v2740
        %v3516 = vunpack.c.l.b16 %v2741
        %v3517 = vunpack.c.l.b16 %v2742
        %v3518 = vunpack.c.l.b16 %v2743
        %v3519 = vunpack.c.l.b16 %v2744
        %v3520 = vunpack.c.l.b16 %v2745
        %v3521 = vunpack.c.l.b16 %v2746
        %v3522 = vunpack.c.l.b16 %v2747
        %v3523 = vunpack.c.l.b16 %v2748
        %v3524 = vunpack.c.l.b16 %v2749
        %v3525 = vunpack.c.l.b16 %v2750
        %v3526 = vunpack.c.l.b16 %v2751
        %v3527 = vunpack.c.l.b16 %v2752
        %v3528 = vunpack.c.l.b16 %v2753
        %v3529 = vunpack.c.l.b16 %v2754
        %v3530 = vunpack.c.l.b16 %v2755
        %v3531 = vunpack.c.l.b16 %v2756
        %v3532 = vunpack.c.l.b16 %v2757
        %v3533 = vpack.c.b16 %v3150, %v3149
        %v3534 = vpack.c.b16 %v3152, %v3151
        %v3535 = vpack.c.b16 %v3154, %v3153
        %v3536 = vpack.c.b16 %v3156, %v3155
        %v3537 = vpack.c.b16 %v3158, %v3157
        %v3538 = vpack.c.b16 %v3160, %v3159
        %v3539 = vpack.c.b16 %v3162, %v3161
        %v3540 = vpack.c.b16 %v3164, %v3163
        %v3541 = vpack.c.b16 %v3166, %v3165
        %v3542 = vpack.c.b16 %v3168, %v3167
        %v3543 = vpack.c.b16 %v3170, %v3169
        %v3544 = vpack.c.b16 %v3172, %v3171
        %v3545 = vpack.c.b16 %v3174, %v3173
        %v3546 = vpack.c.b16 %v3176, %v3175
        %v3547 = vpack.c.b16 %v3178, %v3177
        %v3548 = vpack.c.b16 %v3180, %v3179
        %v3549 = vpack.c.b16 %v3182, %v3181
        %v3550 = vpack.c.b16 %v3184, %v3183
        %v3551 = vpack.c.b16 %v3186, %v3185
        %v3552 = vpack.c.b16 %v3188, %v3187
        %v3553 = vpack.c.b16 %v3190, %v3189
        %v3554 = vpack.c.b16 %v3192, %v3191
        %v3555 = vpack.c.b16 %v3194, %v3193
        %v3556 = vpack.c.b16 %v3196, %v3195
        %v3557 = vpack.c.b16 %v3198, %v3197
        %v3558 = vpack.c.b16 %v3200, %v3199
        %v3559 = vpack.c.b16 %v3202, %v3201
        %v3560 = vpack.c.b16 %v3204, %v3203
        %v3561 = vpack.c.b16 %v3206, %v3205
        %v3562 = vpack.c.b16 %v3208, %v3207
        %v3563 = vpack.c.b16 %v3210, %v3209
        %v3564 = vpack.c.b16 %v3212, %v3211
        %v3565 = vpack.c.b16 %v3214, %v3213
        %v3566 = vpack.c.b16 %v3216, %v3215
        %v3567 = vpack.c.b16 %v3218, %v3217
        %v3568 = vpack.c.b16 %v3220, %v3219
        %v3569 = vpack.c.b16 %v3222, %v3221
        %v3570 = vpack.c.b16 %v3224, %v3223
        %v3571 = vpack.c.b16 %v3226, %v3225
        %v3572 = vpack.c.b16 %v3228, %v3227
        %v3573 = vpack.c.b16 %v3230, %v3229
        %v3574 = vpack.c.b16 %v3232, %v3231
        %v3575 = vpack.c.b16 %v3234, %v3233
        %v3576 = vpack.c.b16 %v3236, %v3235
        %v3577 = vpack.c.b16 %v3238, %v3237
        %v3578 = vpack.c.b16 %v3240, %v3239
        %v3579 = vpack.c.b16 %v3242, %v3241
        %v3580 = vpack.c.b16 %v3244, %v3243
        %v3581 = vpack.c.b16 %v3246, %v3245
        %v3582 = vpack.c.b16 %v3248, %v3247
        %v3583 = vpack.c.b16 %v3250, %v3249
        %v3584 = vpack.c.b16 %v3252, %v3251
        %v3585 = vpack.c.b16 %v3254, %v3253
        %v3586 = vpack.c.b16 %v3256, %v3255
        %v3587 = vpack.c.b16 %v3258, %v3257
        %v3588 = vpack.c.b16 %v3260, %v3259
        %v3589 = vpack.c.b16 %v3262, %v3261
        %v3590 = vpack.c.b16 %v3264, %v3263
        %v3591 = vpack.c.b16 %v3266, %v3265
        %v3592 = vpack.c.b16 %v3268, %v3267
        %v3593 = vpack.c.b16 %v3270, %v3269
        %v3594 = vpack.c.b16 %v3272, %v3271
        %v3595 = vpack.c.b16 %v3274, %v3273
        %v3596 = vpack.c.b16 %v3276, %v3275
        %v3597 = vpack.c.b16 %v3278, %v3277
        %v3598 = vpack.c.b16 %v3280, %v3279
        %v3599 = vpack.c.b16 %v3282, %v3281
        %v3600 = vpack.c.b16 %v3284, %v3283
        %v3601 = vpack.c.b16 %v3286, %v3285
        %v3602 = vpack.c.b16 %v3288, %v3287
        %v3603 = vpack.c.b16 %v3290, %v3289
        %v3604 = vpack.c.b16 %v3292, %v3291
        %v3605 = vpack.c.b16 %v3294, %v3293
        %v3606 = vpack.c.b16 %v3296, %v3295
        %v3607 = vpack.c.b16 %v3298, %v3297
        %v3608 = vpack.c.b16 %v3300, %v3299
        %v3609 = vpack.c.b16 %v3302, %v3301
        %v3610 = vpack.c.b16 %v3304, %v3303
        %v3611 = vpack.c.b16 %v3306, %v3305
        %v3612 = vpack.c.b16 %v3308, %v3307
        %v3613 = vpack.c.b16 %v3310, %v3309
        %v3614 = vpack.c.b16 %v3312, %v3311
        %v3615 = vpack.c.b16 %v3314, %v3313
        %v3616 = vpack.c.b16 %v3316, %v3315
        %v3617 = vpack.c.b16 %v3318, %v3317
        %v3618 = vpack.c.b16 %v3320, %v3319
        %v3619 = vpack.c.b16 %v3322, %v3321
        %v3620 = vpack.c.b16 %v3324, %v3323
        %v3621 = vpack.c.b16 %v3326, %v3325
        %v3622 = vpack.c.b16 %v3328, %v3327
        %v3623 = vpack.c.b16 %v3330, %v3329
        %v3624 = vpack.c.b16 %v3332, %v3331
        %v3625 = vpack.c.b16 %v3334, %v3333
        %v3626 = vpack.c.b16 %v3336, %v3335
        %v3627 = vpack.c.b16 %v3338, %v3337
        %v3628 = vpack.c.b16 %v3340, %v3339
        %v3629 = vpack.c.b16 %v3342, %v3341
        %v3630 = vpack.c.b16 %v3344, %v3343
        %v3631 = vpack.c.b16 %v3346, %v3345
        %v3632 = vpack.c.b16 %v3348, %v3347
        %v3633 = vpack.c.b16 %v3350, %v3349
        %v3634 = vpack.c.b16 %v3352, %v3351
        %v3635 = vpack.c.b16 %v3354, %v3353
        %v3636 = vpack.c.b16 %v3356, %v3355
        %v3637 = vpack.c.b16 %v3358, %v3357
        %v3638 = vpack.c.b16 %v3360, %v3359
        %v3639 = vpack.c.b16 %v3362, %v3361
        %v3640 = vpack.c.b16 %v3364, %v3363
        %v3641 = vpack.c.b16 %v3366, %v3365
        %v3642 = vpack.c.b16 %v3368, %v3367
        %v3643 = vpack.c.b16 %v3370, %v3369
        %v3644 = vpack.c.b16 %v3372, %v3371
        %v3645 = vpack.c.b16 %v3374, %v3373
        %v3646 = vpack.c.b16 %v3376, %v3375
        %v3647 = vpack.c.b16 %v3378, %v3377
        %v3648 = vpack.c.b16 %v3380, %v3379
        %v3649 = vpack.c.b16 %v3382, %v3381
        %v3650 = vpack.c.b16 %v3384, %v3383
        %v3651 = vpack.c.b16 %v3386, %v3385
        %v3652 = vpack.c.b16 %v3388, %v3387
        %v3653 = vpack.c.b16 %v3390, %v3389
        %v3654 = vpack.c.b16 %v3392, %v3391
        %v3655 = vpack.c.b16 %v3394, %v3393
        %v3656 = vpack.c.b16 %v3396, %v3395
        %v3657 = vpack.c.b16 %v3398, %v3397
        %v3658 = vpack.c.b16 %v3400, %v3399
        %v3659 = vpack.c.b16 %v3402, %v3401
        %v3660 = vpack.c.b16 %v3404, %v3403
        %v3661 = vpack.c.b16 %v3406, %v3405
        %v3662 = vpack.c.b16 %v3408, %v3407
        %v3663 = vpack.c.b16 %v3410, %v3409
        %v3664 = vpack.c.b16 %v3412, %v3411
        %v3665 = vpack.c.b16 %v3414, %v3413
        %v3666 = vpack.c.b16 %v3416, %v3415
        %v3667 = vpack.c.b16 %v3418, %v3417
        %v3668 = vpack.c.b16 %v3420, %v3419
        %v3669 = vpack.c.b16 %v3422, %v3421
        %v3670 = vpack.c.b16 %v3424, %v3423
        %v3671 = vpack.c.b16 %v3426, %v3425
        %v3672 = vpack.c.b16 %v3428, %v3427
        %v3673 = vpack.c.b16 %v3430, %v3429
        %v3674 = vpack.c.b16 %v3432, %v3431
        %v3675 = vpack.c.b16 %v3434, %v3433
        %v3676 = vpack.c.b16 %v3436, %v3435
        %v3677 = vpack.c.b16 %v3438, %v3437
        %v3678 = vpack.c.b16 %v3440, %v3439
        %v3679 = vpack.c.b16 %v3442, %v3441
        %v3680 = vpack.c.b16 %v3444, %v3443
        %v3681 = vpack.c.b16 %v3446, %v3445
        %v3682 = vpack.c.b16 %v3448, %v3447
        %v3683 = vpack.c.b16 %v3450, %v3449
        %v3684 = vpack.c.b16 %v3452, %v3451
        %v3685 = vpack.c.b16 %v3454, %v3453
        %v3686 = vpack.c.b16 %v3456, %v3455
        %v3687 = vpack.c.b16 %v3458, %v3457
        %v3688 = vpack.c.b16 %v3460, %v3459
        %v3689 = vpack.c.b16 %v3462, %v3461
        %v3690 = vpack.c.b16 %v3464, %v3463
        %v3691 = vpack.c.b16 %v3466, %v3465
        %v3692 = vpack.c.b16 %v3468, %v3467
        %v3693 = vpack.c.b16 %v3470, %v3469
        %v3694 = vpack.c.b16 %v3472, %v3471
        %v3695 = vpack.c.b16 %v3474, %v3473
        %v3696 = vpack.c.b16 %v3476, %v3475
        %v3697 = vpack.c.b16 %v3478, %v3477
        %v3698 = vpack.c.b16 %v3480, %v3479
        %v3699 = vpack.c.b16 %v3482, %v3481
        %v3700 = vpack.c.b16 %v3484, %v3483
        %v3701 = vpack.c.b16 %v3486, %v3485
        %v3702 = vpack.c.b16 %v3488, %v3487
        %v3703 = vpack.c.b16 %v3490, %v3489
        %v3704 = vpack.c.b16 %v3492, %v3491
        %v3705 = vpack.c.b16 %v3494, %v3493
        %v3706 = vpack.c.b16 %v3496, %v3495
        %v3707 = vpack.c.b16 %v3498, %v3497
        %v3708 = vpack.c.b16 %v3500, %v3499
        %v3709 = vpack.c.b16 %v3502, %v3501
        %v3710 = vpack.c.b16 %v3504, %v3503
        %v3711 = vpack.c.b16 %v3506, %v3505
        %v3712 = vpack.c.b16 %v3508, %v3507
        %v3713 = vpack.c.b16 %v3510, %v3509
        %v3714 = vpack.c.b16 %v3512, %v3511
        %v3715 = vpack.c.b16 %v3514, %v3513
        %v3716 = vpack.c.b16 %v3516, %v3515
        %v3717 = vpack.c.b16 %v3518, %v3517
        %v3718 = vpack.c.b16 %v3520, %v3519
        %v3719 = vpack.c.b16 %v3522, %v3521
        %v3720 = vpack.c.b16 %v3524, %v3523
        %v3721 = vpack.c.b16 %v3526, %v3525
        %v3722 = vpack.c.b16 %v3528, %v3527
        %v3723 = vpack.c.b16 %v3530, %v3529
        %v3724 = vpack.c.b16 %v3532, %v3531
        %3917 = vmatprep.subr.bf16.mxu0 0
        %3918 = vmatpush1.bf16.msra.mxu0 %v3533
        %3919 = vmatprep.subr.bf16.mxu0 0
        %3920 = vmatpush1.bf16.msra.mxu0 %v3534
        %3921 = vmatprep.subr.bf16.mxu0 0
        %3922 = vmatpush1.bf16.msra.mxu0 %v3535
        %3923 = vmatprep.subr.bf16.mxu0 0
        %3924 = vmatpush1.bf16.msra.mxu0 %v3536
        %3925 = vmatprep.subr.bf16.mxu0 0
        %3926 = vmatpush1.bf16.msra.mxu0 %v3537
        %3927 = vmatprep.subr.bf16.mxu0 0
        %3928 = vmatpush1.bf16.msra.mxu0 %v3538
        %3929 = vmatprep.subr.bf16.mxu0 0
        %3930 = vmatpush1.bf16.msra.mxu0 %v3539
        %3931 = vmatprep.subr.bf16.mxu0 0
        %3932 = vmatpush1.bf16.msra.mxu0 %v3540
        %3933 = vmatprep.subr.bf16.mxu0 0
        %3934 = vmatpush1.bf16.msra.mxu0 %v3541
        %3935 = vmatprep.subr.bf16.mxu0 0
        %3936 = vmatpush1.bf16.msra.mxu0 %v3542
        %3937 = vmatprep.subr.bf16.mxu0 0
        %3938 = vmatpush1.bf16.msra.mxu0 %v3543
        %3939 = vmatprep.subr.bf16.mxu0 0
        %3940 = vmatpush1.bf16.msra.mxu0 %v3544
        %3941 = vmatprep.subr.bf16.mxu0 0
        %3942 = vmatpush1.bf16.msra.mxu0 %v3545
        %3943 = vmatprep.subr.bf16.mxu0 0
        %3944 = vmatpush1.bf16.msra.mxu0 %v3546
        %3945 = vmatprep.subr.bf16.mxu0 0
        %3946 = vmatpush1.bf16.msra.mxu0 %v3547
        %3947 = vmatprep.subr.bf16.mxu0 0
        %3948 = vmatpush1.bf16.msra.mxu0 %v3548
        %3949 = vmatprep.mubr.bf16.mxu0 %v2351
        %3950 = vmatmul.mubr.bf16.gmra.mrb[0].mxu0 %v2350
        %v3951 = vpop.f32.mrb[0].mxu0
        %v3952 = vadd.f32 %v2763, %v3951
        %v3953 = vpop.f32.mrb[0].mxu0
        %v3954 = vpop.f32.mrb[0].mxu0
        %v3955 = vadd.f32 %v2763, %v3954
        %v3956 = vpop.f32.mrb[0].mxu0
        %3957 = vdwg.mxu0
        %3958 = vmatprep.subr.bf16.mxu0 0
        %3959 = vmatpush1.bf16.msra.mxu0 %v3549
        %3960 = vmatprep.subr.bf16.mxu0 0
        %3961 = vmatpush1.bf16.msra.mxu0 %v3550
        %3962 = vmatprep.subr.bf16.mxu0 0
        %3963 = vmatpush1.bf16.msra.mxu0 %v3551
        %3964 = vmatprep.subr.bf16.mxu0 0
        %3965 = vmatpush1.bf16.msra.mxu0 %v3552
        %3966 = vmatprep.subr.bf16.mxu0 0
        %3967 = vmatpush1.bf16.msra.mxu0 %v3553
        %3968 = vmatprep.subr.bf16.mxu0 0
        %3969 = vmatpush1.bf16.msra.mxu0 %v3554
        %3970 = vmatprep.subr.bf16.mxu0 0
        %3971 = vmatpush1.bf16.msra.mxu0 %v3555
        %3972 = vmatprep.subr.bf16.mxu0 0
        %3973 = vmatpush1.bf16.msra.mxu0 %v3556
        %3974 = vmatprep.subr.bf16.mxu0 0
        %3975 = vmatpush1.bf16.msra.mxu0 %v3557
        %3976 = vmatprep.subr.bf16.mxu0 0
        %3977 = vmatpush1.bf16.msra.mxu0 %v3558
        %3978 = vmatprep.subr.bf16.mxu0 0
        %3979 = vmatpush1.bf16.msra.mxu0 %v3559
        %3980 = vmatprep.subr.bf16.mxu0 0
        %3981 = vmatpush1.bf16.msra.mxu0 %v3560
        %3982 = vmatprep.subr.bf16.mxu0 0
        %3983 = vmatpush1.bf16.msra.mxu0 %v3561
        %3984 = vmatprep.subr.bf16.mxu0 0
        %3985 = vmatpush1.bf16.msra.mxu0 %v3562
        %3986 = vmatprep.subr.bf16.mxu0 0
        %3987 = vmatpush1.bf16.msra.mxu0 %v3563
        %3988 = vmatprep.subr.bf16.mxu0 0
        %3989 = vmatpush1.bf16.msra.mxu0 %v3564
        %3990 = vmatprep.mubr.bf16.mxu0 %v2353
        %3991 = vmatmul.mubr.bf16.gmra.mrb[0].mxu0 %v2352
        %v3992 = vpop.f32.mrb[0].mxu0
        %v3993 = vadd.f32 %v3952, %v3992
        %v3994 = vpop.f32.mrb[0].mxu0
        %v3995 = vpop.f32.mrb[0].mxu0
        %v3996 = vadd.f32 %v3955, %v3995
        %v3997 = vpop.f32.mrb[0].mxu0
        %3998 = vdwg.mxu0
        %3999 = vmatprep.subr.bf16.mxu0 0
        %4000 = vmatpush1.bf16.msra.mxu0 %v3565
        %4001 = vmatprep.subr.bf16.mxu0 0
        %4002 = vmatpush1.bf16.msra.mxu0 %v3566
        %4003 = vmatprep.subr.bf16.mxu0 0
        %4004 = vmatpush1.bf16.msra.mxu0 %v3567
        %4005 = vmatprep.subr.bf16.mxu0 0
        %4006 = vmatpush1.bf16.msra.mxu0 %v3568
        %4007 = vmatprep.subr.bf16.mxu0 0
        %4008 = vmatpush1.bf16.msra.mxu0 %v3569
        %4009 = vmatprep.subr.bf16.mxu0 0
        %4010 = vmatpush1.bf16.msra.mxu0 %v3570
        %4011 = vmatprep.subr.bf16.mxu0 0
        %4012 = vmatpush1.bf16.msra.mxu0 %v3571
        %4013 = vmatprep.subr.bf16.mxu0 0
        %4014 = vmatpush1.bf16.msra.mxu0 %v3572
        %4015 = vmatprep.subr.bf16.mxu0 0
        %4016 = vmatpush1.bf16.msra.mxu0 %v3573
        %4017 = vmatprep.subr.bf16.mxu0 0
        %4018 = vmatpush1.bf16.msra.mxu0 %v3574
        %4019 = vmatprep.subr.bf16.mxu0 0
        %4020 = vmatpush1.bf16.msra.mxu0 %v3575
        %4021 = vmatprep.subr.bf16.mxu0 0
        %4022 = vmatpush1.bf16.msra.mxu0 %v3576
        %4023 = vmatprep.subr.bf16.mxu0 0
        %4024 = vmatpush1.bf16.msra.mxu0 %v3577
        %4025 = vmatprep.subr.bf16.mxu0 0
        %4026 = vmatpush1.bf16.msra.mxu0 %v3578
        %4027 = vmatprep.subr.bf16.mxu0 0
        %4028 = vmatpush1.bf16.msra.mxu0 %v3579
        %4029 = vmatprep.subr.bf16.mxu0 0
        %4030 = vmatpush1.bf16.msra.mxu0 %v3580
        %4031 = vmatprep.mubr.bf16.mxu0 %v2355
        %4032 = vmatmul.mubr.bf16.gmra.mrb[0].mxu0 %v2354
        %v4033 = vpop.f32.mrb[0].mxu0
        %v4034 = vadd.f32 %v3993, %v4033
        %v4035 = vpop.f32.mrb[0].mxu0
        %v4036 = vpop.f32.mrb[0].mxu0
        %v4037 = vadd.f32 %v3996, %v4036
        %v4038 = vpop.f32.mrb[0].mxu0
        %4039 = vdwg.mxu0
        %4040 = vmatprep.subr.bf16.mxu0 0
        %4041 = vmatpush1.bf16.msra.mxu0 %v3581
        %4042 = vmatprep.subr.bf16.mxu0 0
        %4043 = vmatpush1.bf16.msra.mxu0 %v3582
        %4044 = vmatprep.subr.bf16.mxu0 0
        %4045 = vmatpush1.bf16.msra.mxu0 %v3583
        %4046 = vmatprep.subr.bf16.mxu0 0
        %4047 = vmatpush1.bf16.msra.mxu0 %v3584
        %4048 = vmatprep.subr.bf16.mxu0 0
        %4049 = vmatpush1.bf16.msra.mxu0 %v3585
        %4050 = vmatprep.subr.bf16.mxu0 0
        %4051 = vmatpush1.bf16.msra.mxu0 %v3586
        %4052 = vmatprep.subr.bf16.mxu0 0
        %4053 = vmatpush1.bf16.msra.mxu0 %v3587
        %4054 = vmatprep.subr.bf16.mxu0 0
        %4055 = vmatpush1.bf16.msra.mxu0 %v3588
        %4056 = vmatprep.subr.bf16.mxu0 0
        %4057 = vmatpush1.bf16.msra.mxu0 %v3589
        %4058 = vmatprep.subr.bf16.mxu0 0
        %4059 = vmatpush1.bf16.msra.mxu0 %v3590
        %4060 = vmatprep.subr.bf16.mxu0 0
        %4061 = vmatpush1.bf16.msra.mxu0 %v3591
        %4062 = vmatprep.subr.bf16.mxu0 0
        %4063 = vmatpush1.bf16.msra.mxu0 %v3592
        %4064 = vmatprep.subr.bf16.mxu0 0
        %4065 = vmatpush1.bf16.msra.mxu0 %v3593
        %4066 = vmatprep.subr.bf16.mxu0 0
        %4067 = vmatpush1.bf16.msra.mxu0 %v3594
        %4068 = vmatprep.subr.bf16.mxu0 0
        %4069 = vmatpush1.bf16.msra.mxu0 %v3595
        %4070 = vmatprep.subr.bf16.mxu0 0
        %4071 = vmatpush1.bf16.msra.mxu0 %v3596
        %4072 = vmatprep.mubr.bf16.mxu0 %v2357
        %4073 = vmatmul.mubr.bf16.gmra.mrb[0].mxu0 %v2356
        %v4074 = vpop.f32.mrb[0].mxu0
        %v4075 = vadd.f32 %v4034, %v4074
        %v4076 = vpop.f32.mrb[0].mxu0
        %v4077 = vpop.f32.mrb[0].mxu0
        %v4078 = vadd.f32 %v4037, %v4077
        %v4079 = vpop.f32.mrb[0].mxu0
        %4080 = vdwg.mxu0
        %4081 = vmatprep.subr.bf16.mxu0 0
        %4082 = vmatpush1.bf16.msra.mxu0 %v3597
        %4083 = vmatprep.subr.bf16.mxu0 0
        %4084 = vmatpush1.bf16.msra.mxu0 %v3598
        %4085 = vmatprep.subr.bf16.mxu0 0
        %4086 = vmatpush1.bf16.msra.mxu0 %v3599
        %4087 = vmatprep.subr.bf16.mxu0 0
        %4088 = vmatpush1.bf16.msra.mxu0 %v3600
        %4089 = vmatprep.subr.bf16.mxu0 0
        %4090 = vmatpush1.bf16.msra.mxu0 %v3601
        %4091 = vmatprep.subr.bf16.mxu0 0
        %4092 = vmatpush1.bf16.msra.mxu0 %v3602
        %4093 = vmatprep.subr.bf16.mxu0 0
        %4094 = vmatpush1.bf16.msra.mxu0 %v3603
        %4095 = vmatprep.subr.bf16.mxu0 0
        %4096 = vmatpush1.bf16.msra.mxu0 %v3604
        %4097 = vmatprep.subr.bf16.mxu0 0
        %4098 = vmatpush1.bf16.msra.mxu0 %v3605
        %4099 = vmatprep.subr.bf16.mxu0 0
        %4100 = vmatpush1.bf16.msra.mxu0 %v3606
        %4101 = vmatprep.subr.bf16.mxu0 0
        %4102 = vmatpush1.bf16.msra.mxu0 %v3607
        %4103 = vmatprep.subr.bf16.mxu0 0
        %4104 = vmatpush1.bf16.msra.mxu0 %v3608
        %4105 = vmatprep.subr.bf16.mxu0 0
        %4106 = vmatpush1.bf16.msra.mxu0 %v3609
        %4107 = vmatprep.subr.bf16.mxu0 0
        %4108 = vmatpush1.bf16.msra.mxu0 %v3610
        %4109 = vmatprep.subr.bf16.mxu0 0
        %4110 = vmatpush1.bf16.msra.mxu0 %v3611
        %4111 = vmatprep.subr.bf16.mxu0 0
        %4112 = vmatpush1.bf16.msra.mxu0 %v3612
        %4113 = vmatprep.mubr.bf16.mxu0 %v2359
        %4114 = vmatmul.mubr.bf16.gmra.mrb[0].mxu0 %v2358
        %v4115 = vpop.f32.mrb[0].mxu0
        %v4116 = vadd.f32 %v4075, %v4115
        %v4117 = vpop.f32.mrb[0].mxu0
        %v4118 = vpop.f32.mrb[0].mxu0
        %v4119 = vadd.f32 %v4078, %v4118
        %v4120 = vpop.f32.mrb[0].mxu0
        %4121 = vdwg.mxu0
        %4122 = vmatprep.subr.bf16.mxu0 0
        %4123 = vmatpush1.bf16.msra.mxu0 %v3613
        %4124 = vmatprep.subr.bf16.mxu0 0
        %4125 = vmatpush1.bf16.msra.mxu0 %v3614
        %4126 = vmatprep.subr.bf16.mxu0 0
        %4127 = vmatpush1.bf16.msra.mxu0 %v3615
        %4128 = vmatprep.subr.bf16.mxu0 0
        %4129 = vmatpush1.bf16.msra.mxu0 %v3616
        %4130 = vmatprep.subr.bf16.mxu0 0
        %4131 = vmatpush1.bf16.msra.mxu0 %v3617
        %4132 = vmatprep.subr.bf16.mxu0 0
        %4133 = vmatpush1.bf16.msra.mxu0 %v3618
        %4134 = vmatprep.subr.bf16.mxu0 0
        %4135 = vmatpush1.bf16.msra.mxu0 %v3619
        %4136 = vmatprep.subr.bf16.mxu0 0
        %4137 = vmatpush1.bf16.msra.mxu0 %v3620
        %4138 = vmatprep.subr.bf16.mxu0 0
        %4139 = vmatpush1.bf16.msra.mxu0 %v3621
        %4140 = vmatprep.subr.bf16.mxu0 0
        %4141 = vmatpush1.bf16.msra.mxu0 %v3622
        %4142 = vmatprep.subr.bf16.mxu0 0
        %4143 = vmatpush1.bf16.msra.mxu0 %v3623
        %4144 = vmatprep.subr.bf16.mxu0 0
        %4145 = vmatpush1.bf16.msra.mxu0 %v3624
        %4146 = vmatprep.subr.bf16.mxu0 0
        %4147 = vmatpush1.bf16.msra.mxu0 %v3625
        %4148 = vmatprep.subr.bf16.mxu0 0
        %4149 = vmatpush1.bf16.msra.mxu0 %v3626
        %4150 = vmatprep.subr.bf16.mxu0 0
        %4151 = vmatpush1.bf16.msra.mxu0 %v3627
        %4152 = vmatprep.subr.bf16.mxu0 0
        %4153 = vmatpush1.bf16.msra.mxu0 %v3628
        %4154 = vmatprep.mubr.bf16.mxu0 %v2361
        %4155 = vmatmul.mubr.bf16.gmra.mrb[0].mxu0 %v2360
        %v4156 = vpop.f32.mrb[0].mxu0
        %v4157 = vadd.f32 %v4116, %v4156
        %v4158 = vpop.f32.mrb[0].mxu0
        %v4159 = vpop.f32.mrb[0].mxu0
        %v4160 = vadd.f32 %v4119, %v4159
        %v4161 = vpop.f32.mrb[0].mxu0
        %4162 = vdwg.mxu0
        %4163 = vmatprep.subr.bf16.mxu0 0
        %4164 = vmatpush1.bf16.msra.mxu0 %v3629
        %4165 = vmatprep.subr.bf16.mxu0 0
        %4166 = vmatpush1.bf16.msra.mxu0 %v3630
        %4167 = vmatprep.subr.bf16.mxu0 0
        %4168 = vmatpush1.bf16.msra.mxu0 %v3631
        %4169 = vmatprep.subr.bf16.mxu0 0
        %4170 = vmatpush1.bf16.msra.mxu0 %v3632
        %4171 = vmatprep.subr.bf16.mxu0 0
        %4172 = vmatpush1.bf16.msra.mxu0 %v3633
        %4173 = vmatprep.subr.bf16.mxu0 0
        %4174 = vmatpush1.bf16.msra.mxu0 %v3634
        %4175 = vmatprep.subr.bf16.mxu0 0
        %4176 = vmatpush1.bf16.msra.mxu0 %v3635
        %4177 = vmatprep.subr.bf16.mxu0 0
        %4178 = vmatpush1.bf16.msra.mxu0 %v3636
        %4179 = vmatprep.subr.bf16.mxu0 0
        %4180 = vmatpush1.bf16.msra.mxu0 %v3637
        %4181 = vmatprep.subr.bf16.mxu0 0
        %4182 = vmatpush1.bf16.msra.mxu0 %v3638
        %4183 = vmatprep.subr.bf16.mxu0 0
        %4184 = vmatpush1.bf16.msra.mxu0 %v3639
        %4185 = vmatprep.subr.bf16.mxu0 0
        %4186 = vmatpush1.bf16.msra.mxu0 %v3640
        %4187 = vmatprep.subr.bf16.mxu0 0
        %4188 = vmatpush1.bf16.msra.mxu0 %v3641
        %4189 = vmatprep.subr.bf16.mxu0 0
        %4190 = vmatpush1.bf16.msra.mxu0 %v3642
        %4191 = vmatprep.subr.bf16.mxu0 0
        %4192 = vmatpush1.bf16.msra.mxu0 %v3643
        %4193 = vmatprep.subr.bf16.mxu0 0
        %4194 = vmatpush1.bf16.msra.mxu0 %v3644
        %4195 = vmatprep.mubr.bf16.mxu0 %v2363
        %4196 = vmatmul.mubr.bf16.gmra.mrb[0].mxu0 %v2362
        %v4197 = vpop.f32.mrb[0].mxu0
        %v4198 = vadd.f32 %v4157, %v4197
        %v4199 = vpop.f32.mrb[0].mxu0
        %v4200 = vpop.f32.mrb[0].mxu0
        %v4201 = vadd.f32 %v4160, %v4200
        %v4202 = vpop.f32.mrb[0].mxu0
        %4203 = vdwg.mxu0
        %4204 = vmatprep.subr.bf16.mxu0 0
        %4205 = vmatpush1.bf16.msra.mxu0 %v3645
        %4206 = vmatprep.subr.bf16.mxu0 0
        %4207 = vmatpush1.bf16.msra.mxu0 %v3646
        %4208 = vmatprep.subr.bf16.mxu0 0
        %4209 = vmatpush1.bf16.msra.mxu0 %v3647
        %4210 = vmatprep.subr.bf16.mxu0 0
        %4211 = vmatpush1.bf16.msra.mxu0 %v3648
        %4212 = vmatprep.subr.bf16.mxu0 0
        %4213 = vmatpush1.bf16.msra.mxu0 %v3649
        %4214 = vmatprep.subr.bf16.mxu0 0
        %4215 = vmatpush1.bf16.msra.mxu0 %v3650
        %4216 = vmatprep.subr.bf16.mxu0 0
        %4217 = vmatpush1.bf16.msra.mxu0 %v3651
        %4218 = vmatprep.subr.bf16.mxu0 0
        %4219 = vmatpush1.bf16.msra.mxu0 %v3652
        %4220 = vmatprep.subr.bf16.mxu0 0
        %4221 = vmatpush1.bf16.msra.mxu0 %v3653
        %4222 = vmatprep.subr.bf16.mxu0 0
        %4223 = vmatpush1.bf16.msra.mxu0 %v3654
        %4224 = vmatprep.subr.bf16.mxu0 0
        %4225 = vmatpush1.bf16.msra.mxu0 %v3655
        %4226 = vmatprep.subr.bf16.mxu0 0
        %4227 = vmatpush1.bf16.msra.mxu0 %v3656
        %4228 = vmatprep.subr.bf16.mxu0 0
        %4229 = vmatpush1.bf16.msra.mxu0 %v3657
        %4230 = vmatprep.subr.bf16.mxu0 0
        %4231 = vmatpush1.bf16.msra.mxu0 %v3658
        %4232 = vmatprep.subr.bf16.mxu0 0
        %4233 = vmatpush1.bf16.msra.mxu0 %v3659
        %4234 = vmatprep.subr.bf16.mxu0 0
        %4235 = vmatpush1.bf16.msra.mxu0 %v3660
        %4236 = vmatprep.mubr.bf16.mxu0 %v2365
        %4237 = vmatmul.mubr.bf16.gmra.mrb[0].mxu0 %v2364
        %v4238 = vpop.f32.mrb[0].mxu0
        %v4239 = vadd.f32 %v4198, %v4238
        %v4240 = vpop.f32.mrb[0].mxu0
        %v4241 = vpop.f32.mrb[0].mxu0
        %v4242 = vadd.f32 %v4201, %v4241
        %v4243 = vpop.f32.mrb[0].mxu0
        %4244 = vdwg.mxu0
        %4245 = vmatprep.subr.bf16.mxu0 0
        %4246 = vmatpush1.bf16.msra.mxu0 %v3661
        %4247 = vmatprep.subr.bf16.mxu0 0
        %4248 = vmatpush1.bf16.msra.mxu0 %v3662
        %4249 = vmatprep.subr.bf16.mxu0 0
        %4250 = vmatpush1.bf16.msra.mxu0 %v3663
        %4251 = vmatprep.subr.bf16.mxu0 0
        %4252 = vmatpush1.bf16.msra.mxu0 %v3664
        %4253 = vmatprep.subr.bf16.mxu0 0
        %4254 = vmatpush1.bf16.msra.mxu0 %v3665
        %4255 = vmatprep.subr.bf16.mxu0 0
        %4256 = vmatpush1.bf16.msra.mxu0 %v3666
        %4257 = vmatprep.subr.bf16.mxu0 0
        %4258 = vmatpush1.bf16.msra.mxu0 %v3667
        %4259 = vmatprep.subr.bf16.mxu0 0
        %4260 = vmatpush1.bf16.msra.mxu0 %v3668
        %4261 = vmatprep.subr.bf16.mxu0 0
        %4262 = vmatpush1.bf16.msra.mxu0 %v3669
        %4263 = vmatprep.subr.bf16.mxu0 0
        %4264 = vmatpush1.bf16.msra.mxu0 %v3670
        %4265 = vmatprep.subr.bf16.mxu0 0
        %4266 = vmatpush1.bf16.msra.mxu0 %v3671
        %4267 = vmatprep.subr.bf16.mxu0 0
        %4268 = vmatpush1.bf16.msra.mxu0 %v3672
        %4269 = vmatprep.subr.bf16.mxu0 0
        %4270 = vmatpush1.bf16.msra.mxu0 %v3673
        %4271 = vmatprep.subr.bf16.mxu0 0
        %4272 = vmatpush1.bf16.msra.mxu0 %v3674
        %4273 = vmatprep.subr.bf16.mxu0 0
        %4274 = vmatpush1.bf16.msra.mxu0 %v3675
        %4275 = vmatprep.subr.bf16.mxu0 0
        %4276 = vmatpush1.bf16.msra.mxu0 %v3676
        %4277 = vmatprep.mubr.bf16.mxu0 %v2367
        %4278 = vmatmul.mubr.bf16.gmra.mrb[0].mxu0 %v2366
        %v4279 = vpop.f32.mrb[0].mxu0
        %v4280 = vadd.f32 %v4239, %v4279
        %v4281 = vpop.f32.mrb[0].mxu0
        %v4282 = vpop.f32.mrb[0].mxu0
        %v4283 = vadd.f32 %v4242, %v4282
        %v4284 = vpop.f32.mrb[0].mxu0
        %4285 = vdwg.mxu0
        %4286 = vmatprep.subr.bf16.mxu0 0
        %4287 = vmatpush1.bf16.msra.mxu0 %v3677
        %4288 = vmatprep.subr.bf16.mxu0 0
        %4289 = vmatpush1.bf16.msra.mxu0 %v3678
        %4290 = vmatprep.subr.bf16.mxu0 0
        %4291 = vmatpush1.bf16.msra.mxu0 %v3679
        %4292 = vmatprep.subr.bf16.mxu0 0
        %4293 = vmatpush1.bf16.msra.mxu0 %v3680
        %4294 = vmatprep.subr.bf16.mxu0 0
        %4295 = vmatpush1.bf16.msra.mxu0 %v3681
        %4296 = vmatprep.subr.bf16.mxu0 0
        %4297 = vmatpush1.bf16.msra.mxu0 %v3682
        %4298 = vmatprep.subr.bf16.mxu0 0
        %4299 = vmatpush1.bf16.msra.mxu0 %v3683
        %4300 = vmatprep.subr.bf16.mxu0 0
        %4301 = vmatpush1.bf16.msra.mxu0 %v3684
        %4302 = vmatprep.subr.bf16.mxu0 0
        %4303 = vmatpush1.bf16.msra.mxu0 %v3685
        %4304 = vmatprep.subr.bf16.mxu0 0
        %4305 = vmatpush1.bf16.msra.mxu0 %v3686
        %4306 = vmatprep.subr.bf16.mxu0 0
        %4307 = vmatpush1.bf16.msra.mxu0 %v3687
        %4308 = vmatprep.subr.bf16.mxu0 0
        %4309 = vmatpush1.bf16.msra.mxu0 %v3688
        %4310 = vmatprep.subr.bf16.mxu0 0
        %4311 = vmatpush1.bf16.msra.mxu0 %v3689
        %4312 = vmatprep.subr.bf16.mxu0 0
        %4313 = vmatpush1.bf16.msra.mxu0 %v3690
        %4314 = vmatprep.subr.bf16.mxu0 0
        %4315 = vmatpush1.bf16.msra.mxu0 %v3691
        %4316 = vmatprep.subr.bf16.mxu0 0
        %4317 = vmatpush1.bf16.msra.mxu0 %v3692
        %4318 = vmatprep.mubr.bf16.mxu0 %v2369
        %4319 = vmatmul.mubr.bf16.gmra.mrb[0].mxu0 %v2368
        %v4320 = vpop.f32.mrb[0].mxu0
        %v4321 = vadd.f32 %v4280, %v4320
        %v4322 = vpop.f32.mrb[0].mxu0
        %v4323 = vpop.f32.mrb[0].mxu0
        %v4324 = vadd.f32 %v4283, %v4323
        %v4325 = vpop.f32.mrb[0].mxu0
        %4326 = vdwg.mxu0
        %4327 = vmatprep.subr.bf16.mxu0 0
        %4328 = vmatpush1.bf16.msra.mxu0 %v3693
        %4329 = vmatprep.subr.bf16.mxu0 0
        %4330 = vmatpush1.bf16.msra.mxu0 %v3694
        %4331 = vmatprep.subr.bf16.mxu0 0
        %4332 = vmatpush1.bf16.msra.mxu0 %v3695
        %4333 = vmatprep.subr.bf16.mxu0 0
        %4334 = vmatpush1.bf16.msra.mxu0 %v3696
        %4335 = vmatprep.subr.bf16.mxu0 0
        %4336 = vmatpush1.bf16.msra.mxu0 %v3697
        %4337 = vmatprep.subr.bf16.mxu0 0
        %4338 = vmatpush1.bf16.msra.mxu0 %v3698
        %4339 = vmatprep.subr.bf16.mxu0 0
        %4340 = vmatpush1.bf16.msra.mxu0 %v3699
        %4341 = vmatprep.subr.bf16.mxu0 0
        %4342 = vmatpush1.bf16.msra.mxu0 %v3700
        %4343 = vmatprep.subr.bf16.mxu0 0
        %4344 = vmatpush1.bf16.msra.mxu0 %v3701
        %4345 = vmatprep.subr.bf16.mxu0 0
        %4346 = vmatpush1.bf16.msra.mxu0 %v3702
        %4347 = vmatprep.subr.bf16.mxu0 0
        %4348 = vmatpush1.bf16.msra.mxu0 %v3703
        %4349 = vmatprep.subr.bf16.mxu0 0
        %4350 = vmatpush1.bf16.msra.mxu0 %v3704
        %4351 = vmatprep.subr.bf16.mxu0 0
        %4352 = vmatpush1.bf16.msra.mxu0 %v3705
        %4353 = vmatprep.subr.bf16.mxu0 0
        %4354 = vmatpush1.bf16.msra.mxu0 %v3706
        %4355 = vmatprep.subr.bf16.mxu0 0
        %4356 = vmatpush1.bf16.msra.mxu0 %v3707
        %4357 = vmatprep.subr.bf16.mxu0 0
        %4358 = vmatpush1.bf16.msra.mxu0 %v3708
        %4359 = vmatprep.mubr.bf16.mxu0 %v2371
        %4360 = vmatmul.mubr.bf16.gmra.mrb[0].mxu0 %v2370
        %v4361 = vpop.f32.mrb[0].mxu0
        %v4362 = vadd.f32 %v4321, %v4361
        %v4363 = vpop.f32.mrb[0].mxu0
        %v4364 = vpop.f32.mrb[0].mxu0
        %v4365 = vadd.f32 %v4324, %v4364
        %v4366 = vpop.f32.mrb[0].mxu0
        %4367 = vdwg.mxu0
        %4368 = vmatprep.subr.bf16.mxu0 0
        %4369 = vmatpush1.bf16.msra.mxu0 %v3709
        %4370 = vmatprep.subr.bf16.mxu0 0
        %4371 = vmatpush1.bf16.msra.mxu0 %v3710
        %4372 = vmatprep.subr.bf16.mxu0 0
        %4373 = vmatpush1.bf16.msra.mxu0 %v3711
        %4374 = vmatprep.subr.bf16.mxu0 0
        %4375 = vmatpush1.bf16.msra.mxu0 %v3712
        %4376 = vmatprep.subr.bf16.mxu0 0
        %4377 = vmatpush1.bf16.msra.mxu0 %v3713
        %4378 = vmatprep.subr.bf16.mxu0 0
        %4379 = vmatpush1.bf16.msra.mxu0 %v3714
        %4380 = vmatprep.subr.bf16.mxu0 0
        %4381 = vmatpush1.bf16.msra.mxu0 %v3715
        %4382 = vmatprep.subr.bf16.mxu0 0
        %4383 = vmatpush1.bf16.msra.mxu0 %v3716
        %4384 = vmatprep.subr.bf16.mxu0 0
        %4385 = vmatpush1.bf16.msra.mxu0 %v3717
        %4386 = vmatprep.subr.bf16.mxu0 0
        %4387 = vmatpush1.bf16.msra.mxu0 %v3718
        %4388 = vmatprep.subr.bf16.mxu0 0
        %4389 = vmatpush1.bf16.msra.mxu0 %v3719
        %4390 = vmatprep.subr.bf16.mxu0 0
        %4391 = vmatpush1.bf16.msra.mxu0 %v3720
        %4392 = vmatprep.subr.bf16.mxu0 0
        %4393 = vmatpush1.bf16.msra.mxu0 %v3721
        %4394 = vmatprep.subr.bf16.mxu0 0
        %4395 = vmatpush1.bf16.msra.mxu0 %v3722
        %4396 = vmatprep.subr.bf16.mxu0 0
        %4397 = vmatpush1.bf16.msra.mxu0 %v3723
        %4398 = vmatprep.subr.bf16.mxu0 0
        %4399 = vmatpush1.bf16.msra.mxu0 %v3724
        %4400 = vmatprep.mubr.bf16.mxu0 %v2373
        %4401 = vmatmul.mubr.bf16.gmra.mrb[0].mxu0 %v2372
        %v4402 = vpop.f32.mrb[0].mxu0
        %v4403 = vadd.f32 %v4362, %v4402
        %v4404 = vpop.f32.mrb[0].mxu0
        %v4405 = vpop.f32.mrb[0].mxu0
        %v4406 = vadd.f32 %v4365, %v4405
        %v4407 = vpop.f32.mrb[0].mxu0
        %4408 = vdwg.mxu0
        %s4409 = smul.u32 %s21, 16
        %v4410 = vlaneseq
        %v4411 = vshrl.u32 %v4410, 7
        %v4412 = vadd.s32 %v4411, 8
        %v4413 = vstv %s4409
        %v4414 = vadd.s32 %v4413, %v4411
        %v4415 = vadd.s32 %v4413, %v4412
        %vm4416 = vcmp.lt.s32.totalorder %v4414, 12
        %vm4417 = vcmp.lt.s32.totalorder %v4415, 12
        %v4418 = vsel %vm4416, 1, 0
        %v4419 = vsel %vm4417, 1, 0
        %v4420 = vcvt.s32.f32 %v4418
        %v4421 = vcvt.s32.f32 %v4419
        %v4422 = vmax.f32 %v4403, 0.0
        %v4423 = vmax.f32 %v4406, 0.0
        %v4424 = vmul.f32 %v4403, %v4420
        %v4425 = vmul.f32 %v4406, %v4421
        %v4426 = vsub.f32 %v4422, %v4424
        %v4427 = vsub.f32 %v4423, %v4425
        %v4428 = vand.u32 2147483647, %v4403
        %v4429 = vand.u32 2147483647, %v4406
        %v4430 = vsub.f32 0.0, %v4428
        %v4431 = vsub.f32 0.0, %v4429
        %v4432 = vmul.f32 %v4430, 1.442695
        %v4433 = vpow.pop %v4432
        %v4434 = vmul.f32 %v4431, 1.442695
        %v4435 = vpow.pop %v4434
        %v4436 = vadd.f32 %v4433, 1.0
        %v4437 = vlog2.pop %v4436
        %v4438 = vmul.f32 %v4437, 0.6931472
        %v4439 = vmul.f32 -0.5, %v4433
        %v4440 = vadd.f32 %v4439, 1.0
        %v4441 = vmul.f32 %v4440, %v4433
        %v4442 = vand.u32 2147483647, %v4433
        %vm4443 = vcmp.lt.f32.partialorder %v4442, 0.0004427343
        %v4444 = vsel %vm4443, %v4441, %v4438
        %v4445 = vadd.f32 %v4435, 1.0
        %v4446 = vlog2.pop %v4445
        %v4447 = vmul.f32 %v4446, 0.6931472
        %v4448 = vmul.f32 -0.5, %v4435
        %v4449 = vadd.f32 %v4448, 1.0
        %v4450 = vmul.f32 %v4449, %v4435
        %v4451 = vand.u32 2147483647, %v4435
        %vm4452 = vcmp.lt.f32.partialorder %v4451, 0.0004427343
        %v4453 = vsel %vm4452, %v4450, %v4447
        %v4454 = vadd.f32 %v4426, %v4444
        %v4455 = vadd.f32 %v4427, %v4453
        %vm4456 = vcmask 7168
        %4457 = vst.msk [vmem:[%s247] sm:$0xff] %vm4456, %v4403
        %4458 = vst.msk [vmem:[%s247 + $0x8] sm:$0xff] %vm4456, %v4406
        %4461 = vrot.lane.b32.xlu0 %v4454, 1
        %v4462 = vpop.permute.xlu0 %4461
        %4463 = vrot.lane.b32.xlu0 %v4455, 1
        %v4464 = vpop.permute.xlu0 %4463
        %vm4467 = vcmask 15368
        %4468 = vst.msk [vmem:[%s247] sm:$0xff] %vm4467, %v4462
        %4469 = vst.msk [vmem:[%s247 + $0x8] sm:$0xff] %vm4467, %v4464
        %s4470 = smul.u32 2, %s21
        %p4471 = scmp.lt.s32.totalorder %s4470, 3
        %s4472 = scalar_select %p4471, %s4470, 3
        %s4473 = smul.addr %s4472, 8
        %s4474 = scalar_lea.vmem %s5, %s4473
        // Predicated region
        $region45: #{tpu_custom_call.1} parent=39 // pred_check
          %p4475 = pneg %p149
        $region46: #{tpu_custom_call.1} parent=39 // pred_check_branch
          %4477 = sbr.rel (%p4475) target = $region48
        $region47: #{tpu_custom_call.1} parent=39 // pred_region
          %s4478 = smul.u32 2, %s21
        $region48: #{tpu_custom_call.1} parent=39 // pred_fallthru
          _
      $region40: #{tpu_custom_call.1} parent=5 // pred_fallthru
        _
      %p4479 = scmp.le.s32.totalorder 2, %s16
      // Predicated region
      $region49: #{tpu_custom_call.1} parent=5 // pred_check
        %p4480 = pneg %p4479
      $region50: #{tpu_custom_call.1} parent=5 // pred_check_branch
        %4482 = sbr.rel (%p4480) target = $region52
      $region51: #{tpu_custom_call.1} parent=5 // pred_region
        %s4483 = ssub.s32 %s16, 2
        // Predicated region
        $region53: #{tpu_custom_call.1} parent=51 // pred_check
          %p4484 = pneg %p155
        $region54: #{tpu_custom_call.1} parent=51 // pred_check_branch
          %4486 = sbr.rel (%p4484) target = $region56
        $region55: #{tpu_custom_call.1} parent=51 // pred_region
          %s4487 = smul.u32 2, %s22
          %p4488 = scmp.lt.s32.totalorder %s4487, 3
          %s4489 = scalar_select %p4488, %s4487, 3
          %s4490 = smul.addr %s4489, 8
          %s4491 = scalar_lea.vmem %s5, %s4490
        $region56: #{tpu_custom_call.1} parent=51 // pred_fallthru
          _
      $region52: #{tpu_custom_call.1} parent=5 // pred_fallthru
        _
    $region6: #{tpu_custom_call.1} parent=1 // loop_footer
      %s20 = sadd.s32 1, %s16
    $region7: #{tpu_custom_call.1} parent=1 // loop_footer_branch
      %15 = sbr.rel target = $region3
    $region8: #{tpu_custom_call.1} parent=1 // loop_exit
      _
    %4492 = vsyncpa [#allocation4], 1
    %s4493 = scalar_lea.sflag [#allocation4], 1
    %4494 = vsyncpa %s4493, 1

</llo_original>
